<compile_context>
chip_gen: v7x
topology: tpu7x:2x2x1
jax: 0.10.0
libtpu: 0.0.40
codegen_flags: <defaults>
</compile_context>

<pallas_src>
import functools

import jax
import jax.numpy as jnp
import numpy as np
from jax import lax
from jax.experimental import pallas as pl
from jax.experimental.pallas import tpu as pltpu

EPS = 1e-5


# ----------------------------- Pallas kernels -------------------------------

def _fc_bn_relu_kernel(x_ref, w_ref, b_ref, g_ref, be_ref, sel_ref, selt_ref,
                       o_ref, *, inv_count):
    """Layer 0: 1x1x1-input ConvTranspose3d == dense matmul, fused with training-mode
    BatchNorm3d (batch statistics) + ReLU.

    x:(N,Cin) @ w:(Cin,S*Cout) -> y:(N,S*Cout); columns ordered (spatial, channel).
    sel:(S*Cout,Cout) / selt:(Cout,S*Cout) are 0/1 channel selectors used to reduce /
    re-broadcast per-channel statistics without any in-kernel reshape."""
    y = jnp.dot(x_ref[...], w_ref[...], preferred_element_type=jnp.float32)
    y = y + b_ref[...]
    s1 = jnp.dot(jnp.sum(y, axis=0, keepdims=True), sel_ref[...])       # (1, Cout)
    s2 = jnp.dot(jnp.sum(y * y, axis=0, keepdims=True), sel_ref[...])   # (1, Cout)
    mean = s1 * inv_count
    var = jnp.maximum(s2 * inv_count - mean * mean, 0.0)  # clamp: f32 cancellation
    inv = g_ref[...] * lax.rsqrt(var + EPS)
    shift = be_ref[...] - mean * inv
    scale_cols = jnp.dot(inv, selt_ref[...])                            # (1, S*Cout)
    shift_cols = jnp.dot(shift, selt_ref[...])                          # (1, S*Cout)
    o_ref[...] = jnp.maximum(y * scale_cols + shift_cols, 0.0).astype(o_ref.dtype)


def _deconv_bn_relu_kernel(w_ref, p_ref, b_ref, g_ref, be_ref, sel_ref, selt_ref,
                           o_ref, *, inv_count):
    """Stride-2 ConvTranspose3d (sub-pixel matmul form) + BatchNorm3d + ReLU.

    w:(8*Cout,27*Cin) @ p:(27*Cin,M) -> y:(8*Cout,M); rows are (channel, phase),
    columns are (n, d, h, w) -> lane-dense output.  Channel statistics reduce over the
    8 phase-rows of each channel and all M columns."""
    y = jnp.dot(w_ref[...], p_ref[...], preferred_element_type=jnp.float32)
    y = y + b_ref[...]
    s1 = jnp.dot(sel_ref[...], jnp.sum(y, axis=1, keepdims=True))       # (Cout, 1)
    s2 = jnp.dot(sel_ref[...], jnp.sum(y * y, axis=1, keepdims=True))   # (Cout, 1)
    mean = s1 * inv_count
    var = jnp.maximum(s2 * inv_count - mean * mean, 0.0)
    inv = g_ref[...] * lax.rsqrt(var + EPS)
    shift = be_ref[...] - mean * inv
    scale_rows = jnp.dot(selt_ref[...], inv)                            # (8*Cout, 1)
    shift_rows = jnp.dot(selt_ref[...], shift)                          # (8*Cout, 1)
    o_ref[...] = jnp.maximum(y * scale_rows + shift_rows, 0.0).astype(o_ref.dtype)


def _deconv_sigmoid_kernel(w_ref, p_ref, b_ref, o_ref):
    """Final stride-2 ConvTranspose3d (sub-pixel matmul form) + Sigmoid.
    Exact sigmoid via tanh: one EUP op, no exp overflow, no approx-reciprocal error."""
    y = jnp.dot(w_ref[...], p_ref[...], preferred_element_type=jnp.float32)
    y = y + b_ref[...]
    o_ref[...] = (0.5 * jnp.tanh(0.5 * y) + 0.5).astype(o_ref.dtype)


# ---------------------- One-time parameter preparation -----------------------

def _subpixel_weight_t(w):
    """w: (Cin, Cout, 4, 4, 4) PyTorch ConvTranspose3d weight ->
    (8*Cout, 27*Cin) sub-pixel weight for k=4, s=2, p=1.
    Rows ordered (co, qd, qh, qw) [q = output parity]; columns (td, th, tw, ci).
    Tap (q, t) uses kernel index j = 3 + q - 2*t per dim (zero if out of range)."""
    Cin, Cout = w.shape[0], w.shape[1]
    wt = jnp.transpose(w, (1, 0, 2, 3, 4))            # (Cout, Cin, 4, 4, 4)
    zero = jnp.zeros((Cout, Cin), w.dtype)
    qrows = []
    for qd in range(2):
        for qh in range(2):
            for qw in range(2):
                taps = []
                for td in range(3):
                    jd = 3 + qd - 2 * td
                    for th in range(3):
                        jh = 3 + qh - 2 * th
                        for tw in range(3):
                            jw = 3 + qw - 2 * tw
                            valid = (0 <= jd < 4) and (0 <= jh < 4) and (0 <= jw < 4)
                            taps.append(wt[:, :, jd, jh, jw] if valid else zero)
                qrows.append(jnp.stack(taps, axis=1))     # (Cout, 27, Cin)
    wq = jnp.stack(qrows, axis=1)                         # (Cout, 8, 27, Cin)
    return wq.reshape(8 * Cout, 27 * Cin)


def prepare_params(params, latent_size, channel_sizes, kernel_sizes,
                   stride_sizes, padding_sizes):
    """All weight re-layouts, bf16 casts, bias rows/columns and BN selector matrices are
    built here exactly once; the per-call forward only issues the kernels + gathers."""
    prepped = []
    for idx, lp in enumerate(params):
        cout = channel_sizes[idx]
        k, s, p = kernel_sizes[idx], stride_sizes[idx], padding_sizes[idx]
        w, b = lp["w"], lp["b"]
        if idx == 0:
            assert cout != 1, "first decoder layer is expected to be conv+BN+ReLU"
            o = k - 2 * p                              # output extent for 1x1x1 input
            S = o * o * o
            cin = w.shape[0]
            wc = w[:, :, p:p + o, p:p + o, p:p + o]
            wm = jnp.transpose(wc, (0, 2, 3, 4, 1)).reshape(cin, S * cout)
            eye = jnp.eye(cout, dtype=jnp.float32)
            entry = {
                "wm": wm.astype(jnp.bfloat16),                       # (Cin, S*Cout)
                "b_cols": jnp.tile(b, S).reshape(1, S * cout),       # (1, S*Cout)
                "gamma": lp["gamma"].reshape(1, cout),
                "beta": lp["beta"].reshape(1, cout),
                "sel": jnp.tile(eye, (S, 1)),                        # (S*Cout, Cout)
                "selt": jnp.tile(eye, (S, 1)).T,                     # (Cout, S*Cout)
            }
        else:
            ksp = (k, s, p)
            # TODO(synk): general (k, s, p) upsampling layers; this config uses (4, 2, 1).
            assert ksp == (4, 2, 1), f"unsupported ConvTranspose3d config {ksp}"
            entry = {
                "wt": _subpixel_weight_t(w).astype(jnp.bfloat16),    # (8*Cout, 27*Cin)
                "b_rows": jnp.repeat(b, 8).reshape(8 * cout, 1),     # (8*Cout, 1)
            }
            if cout != 1:
                sel = jnp.repeat(jnp.eye(cout, dtype=jnp.float32), 8, axis=1)
                entry.update({
                    "gamma": lp["gamma"].reshape(cout, 1),
                    "beta": lp["beta"].reshape(cout, 1),
                    "sel": sel,                                      # (Cout, 8*Cout)
                    "selt": sel.T,                                   # (8*Cout, Cout)
                })
        prepped.append(entry)
    return prepped


# -------------------- Trace-time (numpy) gather index maps --------------------

def _np_srcvol_from_layer0(N, o, C):
    """Flat indices into the layer-0 kernel output (N, o^3*C) [cols ordered (d,h,w,c)]
    laid out as a channels-first volume (C, N, o, o, o)."""
    n = np.arange(N).reshape(1, N, 1, 1, 1)
    d = np.arange(o).reshape(1, 1, o, 1, 1)
    h = np.arange(o).reshape(1, 1, 1, o, 1)
    w = np.arange(o).reshape(1, 1, 1, 1, o)
    c = np.arange(C).reshape(C, 1, 1, 1, 1)
    return (n * (o ** 3 * C) + ((d * o + h) * o + w) * C + c).astype(np.int32)


def _np_srcvol_from_deconv(N, Din, Cout):
    """Flat indices into a stride-2 deconv kernel output (8*Cout, N*Din^3)
    [rows (co, qd, qh, qw), cols (n, d, h, w)] laid out as the channels-first output
    volume (Cout, N, 2*Din, 2*Din, 2*Din)."""
    Do = 2 * Din
    M = N * Din ** 3
    co = np.arange(Cout).reshape(Cout, 1, 1, 1, 1)
    n = np.arange(N).reshape(1, N, 1, 1, 1)
    DD = np.arange(Do).reshape(1, 1, Do, 1, 1)
    HH = np.arange(Do).reshape(1, 1, 1, Do, 1)
    WW = np.arange(Do).reshape(1, 1, 1, 1, Do)
    row = co * 8 + (DD % 2) * 4 + (HH % 2) * 2 + (WW % 2)
    col = ((n * Din + DD // 2) * Din + HH // 2) * Din + WW // 2
    return (row * M + col).astype(np.int32)


def _np_patch_index_map(src_idx_vol, zero_idx):
    """src_idx_vol: (C, N, D, H, W) flat indices into the previous kernel output.
    Returns the (27*C, N*D*H*W) gather map for the 3x3x3 windows of the 1-padded
    volume; rows ordered (td, th, tw, ci), padded positions point at `zero_idx`."""
    C, N, D, H, W = src_idx_vol.shape
    padded = np.full((C, N, D + 2, H + 2, W + 2), zero_idx, dtype=np.int32)
    padded[:, :, 1:1 + D, 1:1 + H, 1:1 + W] = src_idx_vol
    taps = []
    for td in range(3):
        for th in range(3):
            for tw in range(3):
                taps.append(padded[:, :, td:td + D, th:th + H, tw:tw + W].reshape(C, -1))
    return np.stack(taps, axis=0).reshape(27 * C, N * D * H * W)


def _gather_patches(y, src_vol):
    """Single constant gather: previous kernel output -> (27*Cin, M) patch matrix."""
    zero_idx = y.size                                  # appended zero slot (padding)
    idx = jnp.asarray(_np_patch_index_map(src_vol, zero_idx))
    flat = jnp.concatenate([y.reshape(-1), jnp.zeros((1,), y.dtype)])
    return jnp.take(flat, idx, axis=0, mode="clip")


# ------------------------------ Layer wrappers --------------------------------

def _layer0_conv_bn_relu(x2, lp, N, o, Cout, out_dtype):
    """x2: (N, Cin) bf16.  Returns (N, o^3*Cout), columns ordered (d, h, w, c)."""
    Cin = lp["wm"].shape[0]
    S = o * o * o
    return pl.pallas_call(
        functools.partial(_fc_bn_relu_kernel, inv_count=1.0 / (N * S)),
        out_shape=jax.ShapeDtypeStruct((N, S * Cout), out_dtype),
        grid=(1,),
        in_specs=[pl.BlockSpec((N, Cin), lambda i: (0, 0)),
                  pl.BlockSpec((Cin, S * Cout), lambda i: (0, 0)),
                  pl.BlockSpec((1, S * Cout), lambda i: (0, 0)),
                  pl.BlockSpec((1, Cout), lambda i: (0, 0)),
                  pl.BlockSpec((1, Cout), lambda i: (0, 0)),
                  pl.BlockSpec((S * Cout, Cout), lambda i: (0, 0)),
                  pl.BlockSpec((Cout, S * Cout), lambda i: (0, 0))],
        out_specs=pl.BlockSpec((N, S * Cout), lambda i: (0, 0)),
        compiler_params=pltpu.CompilerParams(dimension_semantics=("arbitrary",)),
    )(x2, lp["wm"], lp["b_cols"], lp["gamma"], lp["beta"], lp["sel"], lp["selt"])


def _deconv_s2_bn_relu(patch, lp, Cout, M, out_dtype):
    """patch: (27*Cin, M) bf16.  Returns (8*Cout, M); rows (co, phase), cols (n,d,h,w)."""
    K = lp["wt"].shape[1]
    return pl.pallas_call(
        functools.partial(_deconv_bn_relu_kernel, inv_count=1.0 / (8 * M)),
        out_shape=jax.ShapeDtypeStruct((8 * Cout, M), out_dtype),
        grid=(1,),
        in_specs=[pl.BlockSpec((8 * Cout, K), lambda i: (0, 0)),
                  pl.BlockSpec((K, M), lambda i: (0, 0)),
                  pl.BlockSpec((8 * Cout, 1), lambda i: (0, 0)),
                  pl.BlockSpec((Cout, 1), lambda i: (0, 0)),
                  pl.BlockSpec((Cout, 1), lambda i: (0, 0)),
                  pl.BlockSpec((Cout, 8 * Cout), lambda i: (0, 0)),
                  pl.BlockSpec((8 * Cout, Cout), lambda i: (0, 0))],
        out_specs=pl.BlockSpec((8 * Cout, M), lambda i: (0, 0)),
        compiler_params=pltpu.CompilerParams(dimension_semantics=("arbitrary",)),
    )(lp["wt"], patch, lp["b_rows"], lp["gamma"], lp["beta"], lp["sel"], lp["selt"])


def _deconv_s2_sigmoid(patch, lp, Cout, M):
    K = lp["wt"].shape[1]
    return pl.pallas_call(
        _deconv_sigmoid_kernel,
        out_shape=jax.ShapeDtypeStruct((8 * Cout, M), jnp.float32),
        grid=(1,),
        in_specs=[pl.BlockSpec((8 * Cout, K), lambda i: (0, 0)),
                  pl.BlockSpec((K, M), lambda i: (0, 0)),
                  pl.BlockSpec((8 * Cout, 1), lambda i: (0, 0))],
        out_specs=pl.BlockSpec((8 * Cout, M), lambda i: (0, 0)),
        compiler_params=pltpu.CompilerParams(dimension_semantics=("arbitrary",)),
    )(lp["wt"], patch, lp["b_rows"])


# ------------------------------ Decoder forward --------------------------------

def decoder_forward(x, prepped, latent_size, channel_sizes, kernel_sizes,
                    stride_sizes, padding_sizes):
    del stride_sizes  # layout choices fixed at prepare_params time
    L = len(channel_sizes)
    x2 = x.reshape(-1, latent_size).astype(jnp.bfloat16)   # X.view(-1, latent, 1, 1, 1)
    N = x2.shape[0]

    # Layer 0: the 1x1x1 spatial input makes the transposed conv a plain matmul.
    o = kernel_sizes[0] - 2 * padding_sizes[0]
    Cout = channel_sizes[0]
    out_dtype0 = jnp.float32 if L == 1 else jnp.bfloat16
    y = _layer0_conv_bn_relu(x2, prepped[0], N, o, Cout, out_dtype0)

    # Flat-index description of y as a channels-first volume (for the next gather).
    src_vol = _np_srcvol_from_layer0(N, o, Cout)
    spatial = o

    # Remaining layers: sub-pixel decomposition of the k=4, s=2, p=1 upsampling convs.
    # Between layers: ONE constant gather builds the next (27*Cin, M) patch matrix
    # directly from the previous kernel's output (no unphase/pad/27-slice round trips).
    for idx in range(1, L):
        lp = prepped[idx]
        Cout = channel_sizes[idx]
        M = N * spatial ** 3
        patch = _gather_patches(y, src_vol)             # (27*Cin, M)
        if patch.dtype != jnp.bfloat16:
            patch = patch.astype(jnp.bfloat16)
        if Cout == 1:
            y = _deconv_s2_sigmoid(patch, lp, Cout, M)                       # f32
        else:
            out_dtype = jnp.float32 if idx == L - 1 else jnp.bfloat16
            y = _deconv_s2_bn_relu(patch, lp, Cout, M, out_dtype)
        src_vol = _np_srcvol_from_deconv(N, spatial, Cout)
        spatial *= 2

    # Final de-phase to NCDHW: one constant gather.
    out_idx = jnp.asarray(np.transpose(src_vol, (1, 0, 2, 3, 4)))  # (N, C, S, S, S)
    return jnp.take(y.reshape(-1), out_idx, axis=0, mode="clip")
    # TODO(synk): BatchNorm running_mean/running_var buffer updates are a training-time
    # side effect that does not affect the forward output; not reproduced here.


def init_params(key, latent_size, channel_sizes, kernel_sizes):
    params = []
    cin = latent_size
    for idx, cout in enumerate(channel_sizes):
        k = kernel_sizes[idx]
        key, kw, kb = jax.random.split(key, 3)
        bound = 1.0 / np.sqrt(cin * k ** 3)
        layer = {
            "w": jax.random.uniform(kw, (cin, cout, k, k, k), jnp.float32,
                                    -bound, bound),
            "b": jax.random.uniform(kb, (cout,), jnp.float32, -bound, bound),
        }
        if cout != 1:
            layer["gamma"] = jnp.ones((cout,), jnp.float32)   # PyTorch BN default init
            layer["beta"] = jnp.zeros((cout,), jnp.float32)
        params.append(layer)
        cin = cout
    return params


# ------------------------------ Pure-JAX reference ------------------------------

def _ref_conv_transpose(x, w, b, k, s, p):
    wr = jnp.transpose(w[:, :, ::-1, ::-1, ::-1], (1, 0, 2, 3, 4))  # (Cout,Cin,k,k,k)
    pad = k - 1 - p
    y = lax.conv_general_dilated(
        x, wr, window_strides=(1, 1, 1), padding=[(pad, pad)] * 3,
        lhs_dilation=(s, s, s), dimension_numbers=("NCDHW", "OIDHW", "NCDHW"))
    return y + b.reshape(1, -1, 1, 1, 1)


def ref_forward(x, params, latent_size, channel_sizes, kernel_sizes,
                stride_sizes, padding_sizes):
    x = x.reshape(-1, latent_size, 1, 1, 1)
    for idx, cout in enumerate(channel_sizes):
        lp = params[idx]
        k, s, p = kernel_sizes[idx], stride_sizes[idx], padding_sizes[idx]
        y = _ref_conv_transpose(x, lp["w"], lp["b"], k, s, p)
        if cout == 1:
            x = jax.nn.sigmoid(y)
        else:
            mean = y.mean(axis=(0, 2, 3, 4), keepdims=True)
            var = y.var(axis=(0, 2, 3, 4), keepdims=True)
            yhat = (y - mean) * lax.rsqrt(var + EPS)
            yhat = yhat * lp["gamma"].reshape(1, -1, 1, 1, 1) \
                 + lp["beta"].reshape(1, -1, 1, 1, 1)
            x = jnp.maximum(yhat, 0.0)
    return x


# ------------------------------------ Main --------------------------------------

if __name__ == "__main__":
    latent_size = 32
    channel_sizes = [16, 8, 1]
    kernel_sizes = [4, 4, 4]
    stride_sizes = [1, 2, 2]
    padding_sizes = [0, 1, 1]

    key = jax.random.PRNGKey(0)
    key, kx = jax.random.split(key)
    x = jax.random.normal(kx, (2, latent_size), jnp.float32)
    params = init_params(key, latent_size, channel_sizes, kernel_sizes)

    # One-time parameter preparation (weight re-layouts, bf16 casts, selectors).
    prepped = jax.block_until_ready(prepare_params(
        params, latent_size, channel_sizes, kernel_sizes, stride_sizes, padding_sizes))

    fwd = jax.jit(lambda xx, pp: decoder_forward(
        xx, pp, latent_size, channel_sizes, kernel_sizes, stride_sizes, padding_sizes))
    out = jax.block_until_ready(fwd(x, prepped))

    assert out.shape == (2, 1, 16, 16, 16), out.shape

    ref = ref_forward(x, params, latent_size, channel_sizes, kernel_sizes,
                      stride_sizes, padding_sizes)
    max_diff = float(jnp.max(jnp.abs(out - ref)))
    assert np.isfinite(max_diff) and max_diff < 5e-2, f"max diff {max_diff}"

    print("KERNEL_OK")
</pallas_src>

<mosaic_0001>
module attributes {stable_mosaic.version = 11 : i64} {
  func.func private @main(%arg0: i32) attributes {dimension_semantics = [#tpu.dimension_semantics<core_parallel>], iteration_bounds = array<i64: 2>, tpu.core_type = #tpu.core_type<sc_scalar_subcore>, window_params = []} {
    return
  }
}

module attributes {stable_mosaic.version = 11 : i64} {
  func.func private @main(%arg0: i32) attributes {dimension_semantics = [#tpu.dimension_semantics<core_parallel>], iteration_bounds = array<i64: 2>, tpu.core_type = #tpu.core_type<sc_scalar_subcore>, window_params = []} {
    return
  }
}

module attributes {stable_mosaic.version = 11 : i64} {
  func.func @_fc_bn_relu_kernel(%arg0: i32, %arg1: memref<2x32xbf16, #tpu.memory_space<vmem>>, %arg2: memref<32x1024xbf16, #tpu.memory_space<vmem>>, %arg3: memref<1x1024xf32, #tpu.memory_space<vmem>>, %arg4: memref<1x16xf32, #tpu.memory_space<vmem>>, %arg5: memref<1x16xf32, #tpu.memory_space<vmem>>, %arg6: memref<1024x16xf32, #tpu.memory_space<vmem>>, %arg7: memref<16x1024xf32, #tpu.memory_space<vmem>>, %arg8: memref<2x1024xbf16, #tpu.memory_space<vmem>>) attributes {dimension_semantics = [#tpu.dimension_semantics<arbitrary>], iteration_bounds = array<i64: 1>, scalar_prefetch = 0 : i64, scratch_operands = 0 : i64, tpu.core_type = #tpu.core_type<tc>, window_params = [{pipeline_mode = #tpu.pipeline_mode<synchronous>, transform_indices = @transform_0, window_bounds = array<i64: 2, 32>}, {pipeline_mode = #tpu.pipeline_mode<synchronous>, transform_indices = @transform_1, window_bounds = array<i64: 32, 1024>}, {pipeline_mode = #tpu.pipeline_mode<synchronous>, transform_indices = @transform_2, window_bounds = array<i64: 1, 1024>}, {pipeline_mode = #tpu.pipeline_mode<synchronous>, transform_indices = @transform_3, window_bounds = array<i64: 1, 16>}, {pipeline_mode = #tpu.pipeline_mode<synchronous>, transform_indices = @transform_4, window_bounds = array<i64: 1, 16>}, {pipeline_mode = #tpu.pipeline_mode<synchronous>, transform_indices = @transform_5, window_bounds = array<i64: 1024, 16>}, {pipeline_mode = #tpu.pipeline_mode<synchronous>, transform_indices = @transform_6, window_bounds = array<i64: 16, 1024>}, {pipeline_mode = #tpu.pipeline_mode<synchronous>, transform_indices = @transform_7, window_bounds = array<i64: 2, 1024>}]} {
    %c0 = arith.constant 0 : index
    %c0_0 = arith.constant 0 : index
    %0 = vector.load %arg1[%c0, %c0_0] : memref<2x32xbf16, #tpu.memory_space<vmem>>, vector<2x32xbf16>
    %c0_1 = arith.constant 0 : index
    %c0_2 = arith.constant 0 : index
    %1 = vector.load %arg2[%c0_1, %c0_2] : memref<32x1024xbf16, #tpu.memory_space<vmem>>, vector<32x1024xbf16>
    %cst = arith.constant dense<0.000000e+00> : vector<2x1024xf32>
    %2 = tpu.matmul %0, %1, %cst {dimension_numbers = #tpu.dot_dimension_numbers<[1], [0], [0], [1], [0, 0, 1, 1], [], []>} : vector<2x32xbf16>, vector<32x1024xbf16>, vector<2x1024xf32> -> vector<2x1024xf32>
    %c0_3 = arith.constant 0 : index
    %c0_4 = arith.constant 0 : index
    %3 = vector.load %arg3[%c0_3, %c0_4] : memref<1x1024xf32, #tpu.memory_space<vmem>>, vector<1x1024xf32>
    %4 = vector.broadcast %3 : vector<1x1024xf32> to vector<2x1024xf32>
    %5 = arith.addf %2, %4 : vector<2x1024xf32>
    %cst_5 = arith.constant dense<0.000000e+00> : vector<1024xf32>
    %6 = vector.multi_reduction <add>, %5, %cst_5 [0] : vector<2x1024xf32> to vector<1024xf32>
    %7 = vector.shape_cast %6 : vector<1024xf32> to vector<1x1024xf32>
    %c0_6 = arith.constant 0 : index
    %c0_7 = arith.constant 0 : index
    %8 = vector.load %arg6[%c0_6, %c0_7] : memref<1024x16xf32, #tpu.memory_space<vmem>>, vector<1024x16xf32>
    %cst_8 = arith.constant dense<0.000000e+00> : vector<1x16xf32>
    %9 = tpu.matmul %7, %8, %cst_8 {dimension_numbers = #tpu.dot_dimension_numbers<[1], [0], [0], [1], [0, 0, 1, 1], [], []>} : vector<1x1024xf32>, vector<1024x16xf32>, vector<1x16xf32> -> vector<1x16xf32>
    %10 = arith.mulf %5, %5 : vector<2x1024xf32>
    %cst_9 = arith.constant dense<0.000000e+00> : vector<1024xf32>
    %11 = vector.multi_reduction <add>, %10, %cst_9 [0] : vector<2x1024xf32> to vector<1024xf32>
    %12 = vector.shape_cast %11 : vector<1024xf32> to vector<1x1024xf32>
    %c0_10 = arith.constant 0 : index
    %c0_11 = arith.constant 0 : index
    %13 = vector.load %arg6[%c0_10, %c0_11] : memref<1024x16xf32, #tpu.memory_space<vmem>>, vector<1024x16xf32>
    %cst_12 = arith.constant dense<0.000000e+00> : vector<1x16xf32>
    %14 = tpu.matmul %12, %13, %cst_12 {dimension_numbers = #tpu.dot_dimension_numbers<[1], [0], [0], [1], [0, 0, 1, 1], [], []>} : vector<1x1024xf32>, vector<1024x16xf32>, vector<1x16xf32> -> vector<1x16xf32>
    %cst_13 = arith.constant 7.812500e-03 : f32
    %15 = vector.broadcast %cst_13 : f32 to vector<1x16xf32>
    %16 = arith.mulf %9, %15 : vector<1x16xf32>
    %cst_14 = arith.constant 7.812500e-03 : f32
    %17 = vector.broadcast %cst_14 : f32 to vector<1x16xf32>
    %18 = arith.mulf %14, %17 : vector<1x16xf32>
    %19 = arith.mulf %16, %16 : vector<1x16xf32>
    %20 = arith.subf %18, %19 : vector<1x16xf32>
    %cst_15 = arith.constant 0.000000e+00 : f32
    %21 = vector.broadcast %cst_15 : f32 to vector<1x16xf32>
    %22 = arith.maximumf %20, %21 : vector<1x16xf32>
    %c0_16 = arith.constant 0 : index
    %c0_17 = arith.constant 0 : index
    %23 = vector.load %arg4[%c0_16, %c0_17] : memref<1x16xf32, #tpu.memory_space<vmem>>, vector<1x16xf32>
    %cst_18 = arith.constant 9.99999974E-6 : f32
    %24 = vector.broadcast %cst_18 : f32 to vector<1x16xf32>
    %25 = arith.addf %22, %24 : vector<1x16xf32>
    %26 = math.rsqrt %25 : vector<1x16xf32>
    %27 = arith.mulf %23, %26 : vector<1x16xf32>
    %c0_19 = arith.constant 0 : index
    %c0_20 = arith.constant 0 : index
    %28 = vector.load %arg5[%c0_19, %c0_20] : memref<1x16xf32, #tpu.memory_space<vmem>>, vector<1x16xf32>
    %29 = arith.mulf %16, %27 : vector<1x16xf32>
    %30 = arith.subf %28, %29 : vector<1x16xf32>
    %c0_21 = arith.constant 0 : index
    %c0_22 = arith.constant 0 : index
    %31 = vector.load %arg7[%c0_21, %c0_22] : memref<16x1024xf32, #tpu.memory_space<vmem>>, vector<16x1024xf32>
    %cst_23 = arith.constant dense<0.000000e+00> : vector<1x1024xf32>
    %32 = tpu.matmul %27, %31, %cst_23 {dimension_numbers = #tpu.dot_dimension_numbers<[1], [0], [0], [1], [0, 0, 1, 1], [], []>} : vector<1x16xf32>, vector<16x1024xf32>, vector<1x1024xf32> -> vector<1x1024xf32>
    %c0_24 = arith.constant 0 : index
    %c0_25 = arith.constant 0 : index
    %33 = vector.load %arg7[%c0_24, %c0_25] : memref<16x1024xf32, #tpu.memory_space<vmem>>, vector<16x1024xf32>
    %cst_26 = arith.constant dense<0.000000e+00> : vector<1x1024xf32>
    %34 = tpu.matmul %30, %33, %cst_26 {dimension_numbers = #tpu.dot_dimension_numbers<[1], [0], [0], [1], [0, 0, 1, 1], [], []>} : vector<1x16xf32>, vector<16x1024xf32>, vector<1x1024xf32> -> vector<1x1024xf32>
    %35 = vector.broadcast %32 : vector<1x1024xf32> to vector<2x1024xf32>
    %36 = arith.mulf %5, %35 : vector<2x1024xf32>
    %37 = vector.broadcast %34 : vector<1x1024xf32> to vector<2x1024xf32>
    %38 = arith.addf %36, %37 : vector<2x1024xf32>
    %cst_27 = arith.constant 0.000000e+00 : f32
    %39 = vector.broadcast %cst_27 : f32 to vector<2x1024xf32>
    %40 = arith.maximumf %38, %39 : vector<2x1024xf32>
    %41 = arith.truncf %40 : vector<2x1024xf32> to vector<2x1024xbf16>
    %c0_28 = arith.constant 0 : index
    %c0_29 = arith.constant 0 : index
    %42 = vector.load %arg8[%c0_28, %c0_29] : memref<2x1024xbf16, #tpu.memory_space<vmem>>, vector<2x1024xbf16>
    tpu.vector_store %arg8[%c0_28, %c0_29], %41 {strides = array<i32>} : memref<2x1024xbf16, #tpu.memory_space<vmem>>, vector<2x1024xbf16>,
    return
  }
  func.func @transform_0(%arg0: i32) -> (i32, i32) {
    %c0_i32 = arith.constant 0 : i32
    %c0_i32_0 = arith.constant 0 : i32
    %c0_i32_1 = arith.constant 0 : i32
    return %c0_i32, %c0_i32_0 : i32, i32
  }
  func.func @transform_1(%arg0: i32) -> (i32, i32) {
    %c0_i32 = arith.constant 0 : i32
    %c0_i32_0 = arith.constant 0 : i32
    %c0_i32_1 = arith.constant 0 : i32
    return %c0_i32, %c0_i32_0 : i32, i32
  }
  func.func @transform_2(%arg0: i32) -> (i32, i32) {
    %c0_i32 = arith.constant 0 : i32
    %c0_i32_0 = arith.constant 0 : i32
    %c0_i32_1 = arith.constant 0 : i32
    return %c0_i32, %c0_i32_0 : i32, i32
  }
  func.func @transform_3(%arg0: i32) -> (i32, i32) {
    %c0_i32 = arith.constant 0 : i32
    %c0_i32_0 = arith.constant 0 : i32
    %c0_i32_1 = arith.constant 0 : i32
    return %c0_i32, %c0_i32_0 : i32, i32
  }
  func.func @transform_4(%arg0: i32) -> (i32, i32) {
    %c0_i32 = arith.constant 0 : i32
    %c0_i32_0 = arith.constant 0 : i32
    %c0_i32_1 = arith.constant 0 : i32
    return %c0_i32, %c0_i32_0 : i32, i32
  }
  func.func @transform_5(%arg0: i32) -> (i32, i32) {
    %c0_i32 = arith.constant 0 : i32
    %c0_i32_0 = arith.constant 0 : i32
    %c0_i32_1 = arith.constant 0 : i32
    return %c0_i32, %c0_i32_0 : i32, i32
  }
  func.func @transform_6(%arg0: i32) -> (i32, i32) {
    %c0_i32 = arith.constant 0 : i32
    %c0_i32_0 = arith.constant 0 : i32
    %c0_i32_1 = arith.constant 0 : i32
    return %c0_i32, %c0_i32_0 : i32, i32
  }
  func.func @transform_7(%arg0: i32) -> (i32, i32) {
    %c0_i32 = arith.constant 0 : i32
    %c0_i32_0 = arith.constant 0 : i32
    %c0_i32_1 = arith.constant 0 : i32
    return %c0_i32, %c0_i32_0 : i32, i32
  }
}

module attributes {stable_mosaic.version = 11 : i64} {
  func.func @_deconv_bn_relu_kernel(%arg0: i32, %arg1: memref<64x432xbf16, #tpu.memory_space<vmem>>, %arg2: memref<432x128xbf16, #tpu.memory_space<vmem>>, %arg3: memref<64x1xf32, #tpu.memory_space<vmem>>, %arg4: memref<8x1xf32, #tpu.memory_space<vmem>>, %arg5: memref<8x1xf32, #tpu.memory_space<vmem>>, %arg6: memref<8x64xf32, #tpu.memory_space<vmem>>, %arg7: memref<64x8xf32, #tpu.memory_space<vmem>>, %arg8: memref<64x128xbf16, #tpu.memory_space<vmem>>) attributes {dimension_semantics = [#tpu.dimension_semantics<arbitrary>], iteration_bounds = array<i64: 1>, scalar_prefetch = 0 : i64, scratch_operands = 0 : i64, tpu.core_type = #tpu.core_type<tc>, window_params = [{pipeline_mode = #tpu.pipeline_mode<synchronous>, transform_indices = @transform_0, window_bounds = array<i64: 64, 432>}, {pipeline_mode = #tpu.pipeline_mode<synchronous>, transform_indices = @transform_1, window_bounds = array<i64: 432, 128>}, {pipeline_mode = #tpu.pipeline_mode<synchronous>, transform_indices = @transform_2, window_bounds = array<i64: 64, 1>}, {pipeline_mode = #tpu.pipeline_mode<synchronous>, transform_indices = @transform_3, window_bounds = array<i64: 8, 1>}, {pipeline_mode = #tpu.pipeline_mode<synchronous>, transform_indices = @transform_4, window_bounds = array<i64: 8, 1>}, {pipeline_mode = #tpu.pipeline_mode<synchronous>, transform_indices = @transform_5, window_bounds = array<i64: 8, 64>}, {pipeline_mode = #tpu.pipeline_mode<synchronous>, transform_indices = @transform_6, window_bounds = array<i64: 64, 8>}, {pipeline_mode = #tpu.pipeline_mode<synchronous>, transform_indices = @transform_7, window_bounds = array<i64: 64, 128>}]} {
    %c0 = arith.constant 0 : index
    %c0_0 = arith.constant 0 : index
    %0 = vector.load %arg1[%c0, %c0_0] : memref<64x432xbf16, #tpu.memory_space<vmem>>, vector<64x432xbf16>
    %c0_1 = arith.constant 0 : index
    %c0_2 = arith.constant 0 : index
    %1 = vector.load %arg2[%c0_1, %c0_2] : memref<432x128xbf16, #tpu.memory_space<vmem>>, vector<432x128xbf16>
    %cst = arith.constant dense<0.000000e+00> : vector<64x128xf32>
    %2 = tpu.matmul %0, %1, %cst {dimension_numbers = #tpu.dot_dimension_numbers<[1], [0], [0], [1], [0, 0, 1, 1], [], []>} : vector<64x432xbf16>, vector<432x128xbf16>, vector<64x128xf32> -> vector<64x128xf32>
    %c0_3 = arith.constant 0 : index
    %c0_4 = arith.constant 0 : index
    %3 = vector.load %arg3[%c0_3, %c0_4] : memref<64x1xf32, #tpu.memory_space<vmem>>, vector<64x1xf32>
    %4 = vector.broadcast %3 : vector<64x1xf32> to vector<64x128xf32>
    %5 = arith.addf %2, %4 : vector<64x128xf32>
    %c0_5 = arith.constant 0 : index
    %c0_6 = arith.constant 0 : index
    %6 = vector.load %arg6[%c0_5, %c0_6] : memref<8x64xf32, #tpu.memory_space<vmem>>, vector<8x64xf32>
    %cst_7 = arith.constant dense<0.000000e+00> : vector<64xf32>
    %7 = vector.multi_reduction <add>, %5, %cst_7 [1] : vector<64x128xf32> to vector<64xf32>
    %8 = vector.shape_cast %7 : vector<64xf32> to vector<64x1xf32>
    %cst_8 = arith.constant dense<0.000000e+00> : vector<8x1xf32>
    %9 = tpu.matmul %6, %8, %cst_8 {dimension_numbers = #tpu.dot_dimension_numbers<[1], [0], [0], [1], [0, 0, 1, 1], [], []>} : vector<8x64xf32>, vector<64x1xf32>, vector<8x1xf32> -> vector<8x1xf32>
    %c0_9 = arith.constant 0 : index
    %c0_10 = arith.constant 0 : index
    %10 = vector.load %arg6[%c0_9, %c0_10] : memref<8x64xf32, #tpu.memory_space<vmem>>, vector<8x64xf32>
    %11 = arith.mulf %5, %5 : vector<64x128xf32>
    %cst_11 = arith.constant dense<0.000000e+00> : vector<64xf32>
    %12 = vector.multi_reduction <add>, %11, %cst_11 [1] : vector<64x128xf32> to vector<64xf32>
    %13 = vector.shape_cast %12 : vector<64xf32> to vector<64x1xf32>
    %cst_12 = arith.constant dense<0.000000e+00> : vector<8x1xf32>
    %14 = tpu.matmul %10, %13, %cst_12 {dimension_numbers = #tpu.dot_dimension_numbers<[1], [0], [0], [1], [0, 0, 1, 1], [], []>} : vector<8x64xf32>, vector<64x1xf32>, vector<8x1xf32> -> vector<8x1xf32>
    %cst_13 = arith.constant 9.765625E-4 : f32
    %15 = vector.broadcast %cst_13 : f32 to vector<8x1xf32>
    %16 = arith.mulf %9, %15 : vector<8x1xf32>
    %cst_14 = arith.constant 9.765625E-4 : f32
    %17 = vector.broadcast %cst_14 : f32 to vector<8x1xf32>
    %18 = arith.mulf %14, %17 : vector<8x1xf32>
    %19 = arith.mulf %16, %16 : vector<8x1xf32>
    %20 = arith.subf %18, %19 : vector<8x1xf32>
    %cst_15 = arith.constant 0.000000e+00 : f32
    %21 = vector.broadcast %cst_15 : f32 to vector<8x1xf32>
    %22 = arith.maximumf %20, %21 : vector<8x1xf32>
    %c0_16 = arith.constant 0 : index
    %c0_17 = arith.constant 0 : index
    %23 = vector.load %arg4[%c0_16, %c0_17] : memref<8x1xf32, #tpu.memory_space<vmem>>, vector<8x1xf32>
    %cst_18 = arith.constant 9.99999974E-6 : f32
    %24 = vector.broadcast %cst_18 : f32 to vector<8x1xf32>
    %25 = arith.addf %22, %24 : vector<8x1xf32>
    %26 = math.rsqrt %25 : vector<8x1xf32>
    %27 = arith.mulf %23, %26 : vector<8x1xf32>
    %c0_19 = arith.constant 0 : index
    %c0_20 = arith.constant 0 : index
    %28 = vector.load %arg5[%c0_19, %c0_20] : memref<8x1xf32, #tpu.memory_space<vmem>>, vector<8x1xf32>
    %29 = arith.mulf %16, %27 : vector<8x1xf32>
    %30 = arith.subf %28, %29 : vector<8x1xf32>
    %c0_21 = arith.constant 0 : index
    %c0_22 = arith.constant 0 : index
    %31 = vector.load %arg7[%c0_21, %c0_22] : memref<64x8xf32, #tpu.memory_space<vmem>>, vector<64x8xf32>
    %cst_23 = arith.constant dense<0.000000e+00> : vector<64x1xf32>
    %32 = tpu.matmul %31, %27, %cst_23 {dimension_numbers = #tpu.dot_dimension_numbers<[1], [0], [0], [1], [0, 0, 1, 1], [], []>} : vector<64x8xf32>, vector<8x1xf32>, vector<64x1xf32> -> vector<64x1xf32>
    %c0_24 = arith.constant 0 : index
    %c0_25 = arith.constant 0 : index
    %33 = vector.load %arg7[%c0_24, %c0_25] : memref<64x8xf32, #tpu.memory_space<vmem>>, vector<64x8xf32>
    %cst_26 = arith.constant dense<0.000000e+00> : vector<64x1xf32>
    %34 = tpu.matmul %33, %30, %cst_26 {dimension_numbers = #tpu.dot_dimension_numbers<[1], [0], [0], [1], [0, 0, 1, 1], [], []>} : vector<64x8xf32>, vector<8x1xf32>, vector<64x1xf32> -> vector<64x1xf32>
    %35 = vector.broadcast %32 : vector<64x1xf32> to vector<64x128xf32>
    %36 = arith.mulf %5, %35 : vector<64x128xf32>
    %37 = vector.broadcast %34 : vector<64x1xf32> to vector<64x128xf32>
    %38 = arith.addf %36, %37 : vector<64x128xf32>
    %cst_27 = arith.constant 0.000000e+00 : f32
    %39 = vector.broadcast %cst_27 : f32 to vector<64x128xf32>
    %40 = arith.maximumf %38, %39 : vector<64x128xf32>
    %41 = arith.truncf %40 : vector<64x128xf32> to vector<64x128xbf16>
    %c0_28 = arith.constant 0 : index
    %c0_29 = arith.constant 0 : index
    %42 = vector.load %arg8[%c0_28, %c0_29] : memref<64x128xbf16, #tpu.memory_space<vmem>>, vector<64x128xbf16>
    tpu.vector_store %arg8[%c0_28, %c0_29], %41 {strides = array<i32>} : memref<64x128xbf16, #tpu.memory_space<vmem>>, vector<64x128xbf16>,
    return
  }
  func.func @transform_0(%arg0: i32) -> (i32, i32) {
    %c0_i32 = arith.constant 0 : i32
    %c0_i32_0 = arith.constant 0 : i32
    %c0_i32_1 = arith.constant 0 : i32
    return %c0_i32, %c0_i32_0 : i32, i32
  }
  func.func @transform_1(%arg0: i32) -> (i32, i32) {
    %c0_i32 = arith.constant 0 : i32
    %c0_i32_0 = arith.constant 0 : i32
    %c0_i32_1 = arith.constant 0 : i32
    return %c0_i32, %c0_i32_0 : i32, i32
  }
  func.func @transform_2(%arg0: i32) -> (i32, i32) {
    %c0_i32 = arith.constant 0 : i32
    %c0_i32_0 = arith.constant 0 : i32
    %c0_i32_1 = arith.constant 0 : i32
    return %c0_i32, %c0_i32_0 : i32, i32
  }
  func.func @transform_3(%arg0: i32) -> (i32, i32) {
    %c0_i32 = arith.constant 0 : i32
    %c0_i32_0 = arith.constant 0 : i32
    %c0_i32_1 = arith.constant 0 : i32
    return %c0_i32, %c0_i32_0 : i32, i32
  }
  func.func @transform_4(%arg0: i32) -> (i32, i32) {
    %c0_i32 = arith.constant 0 : i32
    %c0_i32_0 = arith.constant 0 : i32
    %c0_i32_1 = arith.constant 0 : i32
    return %c0_i32, %c0_i32_0 : i32, i32
  }
  func.func @transform_5(%arg0: i32) -> (i32, i32) {
    %c0_i32 = arith.constant 0 : i32
    %c0_i32_0 = arith.constant 0 : i32
    %c0_i32_1 = arith.constant 0 : i32
    return %c0_i32, %c0_i32_0 : i32, i32
  }
  func.func @transform_6(%arg0: i32) -> (i32, i32) {
    %c0_i32 = arith.constant 0 : i32
    %c0_i32_0 = arith.constant 0 : i32
    %c0_i32_1 = arith.constant 0 : i32
    return %c0_i32, %c0_i32_0 : i32, i32
  }
  func.func @transform_7(%arg0: i32) -> (i32, i32) {
    %c0_i32 = arith.constant 0 : i32
    %c0_i32_0 = arith.constant 0 : i32
    %c0_i32_1 = arith.constant 0 : i32
    return %c0_i32, %c0_i32_0 : i32, i32
  }
}

module attributes {stable_mosaic.version = 11 : i64} {
  func.func @_deconv_sigmoid_kernel(%arg0: i32, %arg1: memref<8x216xbf16, #tpu.memory_space<vmem>>, %arg2: memref<216x1024xbf16, #tpu.memory_space<vmem>>, %arg3: memref<8x1xf32, #tpu.memory_space<vmem>>, %arg4: memref<8x1024xf32, #tpu.memory_space<vmem>>) attributes {dimension_semantics = [#tpu.dimension_semantics<arbitrary>], iteration_bounds = array<i64: 1>, scalar_prefetch = 0 : i64, scratch_operands = 0 : i64, tpu.core_type = #tpu.core_type<tc>, window_params = [{pipeline_mode = #tpu.pipeline_mode<synchronous>, transform_indices = @transform_0, window_bounds = array<i64: 8, 216>}, {pipeline_mode = #tpu.pipeline_mode<synchronous>, transform_indices = @transform_1, window_bounds = array<i64: 216, 1024>}, {pipeline_mode = #tpu.pipeline_mode<synchronous>, transform_indices = @transform_2, window_bounds = array<i64: 8, 1>}, {pipeline_mode = #tpu.pipeline_mode<synchronous>, transform_indices = @transform_3, window_bounds = array<i64: 8, 1024>}]} {
    %c0 = arith.constant 0 : index
    %c0_0 = arith.constant 0 : index
    %0 = vector.load %arg1[%c0, %c0_0] : memref<8x216xbf16, #tpu.memory_space<vmem>>, vector<8x216xbf16>
    %c0_1 = arith.constant 0 : index
    %c0_2 = arith.constant 0 : index
    %1 = vector.load %arg2[%c0_1, %c0_2] : memref<216x1024xbf16, #tpu.memory_space<vmem>>, vector<216x1024xbf16>
    %cst = arith.constant dense<0.000000e+00> : vector<8x1024xf32>
    %2 = tpu.matmul %0, %1, %cst {dimension_numbers = #tpu.dot_dimension_numbers<[1], [0], [0], [1], [0, 0, 1, 1], [], []>} : vector<8x216xbf16>, vector<216x1024xbf16>, vector<8x1024xf32> -> vector<8x1024xf32>
    %c0_3 = arith.constant 0 : index
    %c0_4 = arith.constant 0 : index
    %3 = vector.load %arg3[%c0_3, %c0_4] : memref<8x1xf32, #tpu.memory_space<vmem>>, vector<8x1xf32>
    %4 = vector.broadcast %3 : vector<8x1xf32> to vector<8x1024xf32>
    %5 = arith.addf %2, %4 : vector<8x1024xf32>
    %cst_5 = arith.constant 5.000000e-01 : f32
    %6 = vector.broadcast %cst_5 : f32 to vector<8x1024xf32>
    %7 = arith.mulf %6, %5 : vector<8x1024xf32>
    %8 = math.tanh %7 : vector<8x1024xf32>
    %cst_6 = arith.constant 5.000000e-01 : f32
    %9 = vector.broadcast %cst_6 : f32 to vector<8x1024xf32>
    %10 = arith.mulf %9, %8 : vector<8x1024xf32>
    %cst_7 = arith.constant 5.000000e-01 : f32
    %11 = vector.broadcast %cst_7 : f32 to vector<8x1024xf32>
    %12 = arith.addf %10, %11 : vector<8x1024xf32>
    %c0_8 = arith.constant 0 : index
    %c0_9 = arith.constant 0 : index
    %13 = vector.load %arg4[%c0_8, %c0_9] : memref<8x1024xf32, #tpu.memory_space<vmem>>, vector<8x1024xf32>
    tpu.vector_store %arg4[%c0_8, %c0_9], %12 {strides = array<i32>} : memref<8x1024xf32, #tpu.memory_space<vmem>>, vector<8x1024xf32>,
    return
  }
  func.func @transform_0(%arg0: i32) -> (i32, i32) {
    %c0_i32 = arith.constant 0 : i32
    %c0_i32_0 = arith.constant 0 : i32
    %c0_i32_1 = arith.constant 0 : i32
    return %c0_i32, %c0_i32_0 : i32, i32
  }
  func.func @transform_1(%arg0: i32) -> (i32, i32) {
    %c0_i32 = arith.constant 0 : i32
    %c0_i32_0 = arith.constant 0 : i32
    %c0_i32_1 = arith.constant 0 : i32
    return %c0_i32, %c0_i32_0 : i32, i32
  }
  func.func @transform_2(%arg0: i32) -> (i32, i32) {
    %c0_i32 = arith.constant 0 : i32
    %c0_i32_0 = arith.constant 0 : i32
    %c0_i32_1 = arith.constant 0 : i32
    return %c0_i32, %c0_i32_0 : i32, i32
  }
  func.func @transform_3(%arg0: i32) -> (i32, i32) {
    %c0_i32 = arith.constant 0 : i32
    %c0_i32_0 = arith.constant 0 : i32
    %c0_i32_1 = arith.constant 0 : i32
    return %c0_i32, %c0_i32_0 : i32, i32
  }
}

</mosaic_0001>

<llo_original>
// kernel: _lambda_.3
$region0: #{_lambda_.3}
  #allocation0 [shape = 'u32[]', space=smem, size = 0x4, offset = 0x4, fixed_abs, tag = 'smem constant byte address 0x4 - core index']
  #allocation1 [shape = 'u32[144,128]{1,0:T(1,128)}', space=vmem, size = 0x12000, scoped, tag = 'internal scratch']
  %s0 = inlined_call_operand.vmem [shape: bf16[2,32], index: 0, kind: input, shape index: {}]
  %s1 = inlined_call_operand.vmem [shape: bf16[32,1024], index: 1, kind: input, shape index: {}]
  %s2 = inlined_call_operand.vmem [shape: f32[1,1024], index: 2, kind: input, shape index: {}]
  %s3 = inlined_call_operand.vmem [shape: f32[1,16], index: 3, kind: input, shape index: {}]
  %s4 = inlined_call_operand.vmem [shape: f32[1,16], index: 4, kind: input, shape index: {}]
  %s5 = inlined_call_operand.vmem [shape: f32[1024,16], index: 5, kind: input, shape index: {}]
  %s6 = inlined_call_operand.vmem [shape: f32[16,1024], index: 6, kind: input, shape index: {}]
  %s7 = inlined_call_operand.vmem [shape: bf16[2,1024], index: 7, kind: output, shape index: {}]
  %s8 = sld [smem:[#allocation0]]
  $region38: #{_lambda_.3} parent=0
    _
  %s10 = ssub.s32 1, %s8
  %s11 = scalar_select 0, %s10, %s8
  // Predicated region
  $region2: #{_lambda_.3} parent=0 // pred_check
    _
  $region3: #{_lambda_.3} parent=0 // pred_check_branch
    %13 = sbr.rel (0) target = $region5
  $region4: #{_lambda_.3} parent=0 // pred_region
    _
  $region5: #{_lambda_.3} parent=0 // pred_fallthru
    _
  // Predicated region
  $region6: #{_lambda_.3} parent=0 // pred_check
    _
  $region7: #{_lambda_.3} parent=0 // pred_check_branch
    %15 = sbr.rel (0) target = $region9
  $region8: #{_lambda_.3} parent=0 // pred_region
    _
  $region9: #{_lambda_.3} parent=0 // pred_fallthru
    _
  // Predicated region
  $region10: #{_lambda_.3} parent=0 // pred_check
    _
  $region11: #{_lambda_.3} parent=0 // pred_check_branch
    %17 = sbr.rel (0) target = $region13
  $region12: #{_lambda_.3} parent=0 // pred_region
    _
  $region13: #{_lambda_.3} parent=0 // pred_fallthru
    _
  // Predicated region
  $region14: #{_lambda_.3} parent=0 // pred_check
    _
  $region15: #{_lambda_.3} parent=0 // pred_check_branch
    %19 = sbr.rel (0) target = $region17
  $region16: #{_lambda_.3} parent=0 // pred_region
    _
  $region17: #{_lambda_.3} parent=0 // pred_fallthru
    _
  // Predicated region
  $region18: #{_lambda_.3} parent=0 // pred_check
    _
  $region19: #{_lambda_.3} parent=0 // pred_check_branch
    %21 = sbr.rel (0) target = $region21
  $region20: #{_lambda_.3} parent=0 // pred_region
    _
  $region21: #{_lambda_.3} parent=0 // pred_fallthru
    _
  // Predicated region
  $region22: #{_lambda_.3} parent=0 // pred_check
    _
  $region23: #{_lambda_.3} parent=0 // pred_check_branch
    %23 = sbr.rel (0) target = $region25
  $region24: #{_lambda_.3} parent=0 // pred_region
    _
  $region25: #{_lambda_.3} parent=0 // pred_fallthru
    _
  // Predicated region
  $region26: #{_lambda_.3} parent=0 // pred_check
    _
  $region27: #{_lambda_.3} parent=0 // pred_check_branch
    %25 = sbr.rel (0) target = $region29
  $region28: #{_lambda_.3} parent=0 // pred_region
    _
  $region29: #{_lambda_.3} parent=0 // pred_fallthru
    _
  %v27 = vld [vmem:[%s0] sm:$0x1]
  %v28 = vld [vmem:[%s1] sm:$0xff]
  %v29 = vld [vmem:[%s1 + $0x8] sm:$0xff]
  %v30 = vld [vmem:[%s1 + $0x10] sm:$0xff]
  %v31 = vld [vmem:[%s1 + $0x18] sm:$0xff]
  %v32 = vld [vmem:[%s1 + $0x20] sm:$0xff]
  %v33 = vld [vmem:[%s1 + $0x28] sm:$0xff]
  %v34 = vld [vmem:[%s1 + $0x30] sm:$0xff]
  %v35 = vld [vmem:[%s1 + $0x38] sm:$0xff]
  %v36 = vld [vmem:[%s1 + $0x40] sm:$0xff]
  %v37 = vld [vmem:[%s1 + $0x48] sm:$0xff]
  %v38 = vld [vmem:[%s1 + $0x50] sm:$0xff]
  %v39 = vld [vmem:[%s1 + $0x58] sm:$0xff]
  %v40 = vld [vmem:[%s1 + $0x60] sm:$0xff]
  %v41 = vld [vmem:[%s1 + $0x68] sm:$0xff]
  %v42 = vld [vmem:[%s1 + $0x70] sm:$0xff]
  %v43 = vld [vmem:[%s1 + $0x78] sm:$0xff]
  %v44 = vld [vmem:[%s2] sm:$0xff]
  %v46 = vlaneseq
  %v47 = vshrl.u32 %v46, 7
  %v48 = vsub.s32 0, %v47
  %v49 = vrot.slane %v44, %v48
  %v50 = vlaneseq
  %v51 = vshrl.u32 %v50, 7
  %v52 = vsub.s32 1, %v51
  %v53 = vrot.slane %v44, %v52
  %v54 = vlaneseq
  %v55 = vshrl.u32 %v54, 7
  %v56 = vsub.s32 2, %v55
  %v57 = vrot.slane %v44, %v56
  %v58 = vlaneseq
  %v59 = vshrl.u32 %v58, 7
  %v60 = vsub.s32 3, %v59
  %v61 = vrot.slane %v44, %v60
  %v62 = vlaneseq
  %v63 = vshrl.u32 %v62, 7
  %v64 = vsub.s32 4, %v63
  %v65 = vrot.slane %v44, %v64
  %v66 = vlaneseq
  %v67 = vshrl.u32 %v66, 7
  %v68 = vsub.s32 5, %v67
  %v69 = vrot.slane %v44, %v68
  %v70 = vlaneseq
  %v71 = vshrl.u32 %v70, 7
  %v72 = vsub.s32 6, %v71
  %v73 = vrot.slane %v44, %v72
  %v74 = vlaneseq
  %v75 = vshrl.u32 %v74, 7
  %v76 = vsub.s32 7, %v75
  %v77 = vrot.slane %v44, %v76
  %v102 = vunpack.c.l.b16 %v28
  %v103 = vunpack.c.h.b16 %v28
  %v104 = vunpack.c.l.b16 %v29
  %v105 = vunpack.c.h.b16 %v29
  %v106 = vunpack.c.l.b16 %v30
  %v107 = vunpack.c.h.b16 %v30
  %v108 = vunpack.c.l.b16 %v31
  %v109 = vunpack.c.h.b16 %v31
  %v110 = vunpack.c.l.b16 %v32
  %v111 = vunpack.c.h.b16 %v32
  %v112 = vunpack.c.l.b16 %v33
  %v113 = vunpack.c.h.b16 %v33
  %v114 = vunpack.c.l.b16 %v34
  %v115 = vunpack.c.h.b16 %v34
  %v116 = vunpack.c.l.b16 %v35
  %v117 = vunpack.c.h.b16 %v35
  %v118 = vunpack.c.l.b16 %v36
  %v119 = vunpack.c.h.b16 %v36
  %v120 = vunpack.c.l.b16 %v37
  %v121 = vunpack.c.h.b16 %v37
  %v122 = vunpack.c.l.b16 %v38
  %v123 = vunpack.c.h.b16 %v38
  %v124 = vunpack.c.l.b16 %v39
  %v125 = vunpack.c.h.b16 %v39
  %v126 = vunpack.c.l.b16 %v40
  %v127 = vunpack.c.h.b16 %v40
  %v128 = vunpack.c.l.b16 %v41
  %v129 = vunpack.c.h.b16 %v41
  %v130 = vunpack.c.l.b16 %v42
  %v131 = vunpack.c.h.b16 %v42
  %v132 = vunpack.c.l.b16 %v43
  %v133 = vunpack.c.h.b16 %v43
  %v134 = vpack.c.b16 %v110, %v102
  %v135 = vpack.c.b16 %v111, %v103
  %v136 = vpack.c.b16 %v112, %v104
  %v137 = vpack.c.b16 %v113, %v105
  %v138 = vpack.c.b16 %v114, %v106
  %v139 = vpack.c.b16 %v115, %v107
  %v140 = vpack.c.b16 %v116, %v108
  %v141 = vpack.c.b16 %v117, %v109
  %v142 = vpack.c.b16 %v126, %v118
  %v143 = vpack.c.b16 %v127, %v119
  %v144 = vpack.c.b16 %v128, %v120
  %v145 = vpack.c.b16 %v129, %v121
  %v146 = vpack.c.b16 %v130, %v122
  %v147 = vpack.c.b16 %v131, %v123
  %v148 = vpack.c.b16 %v132, %v124
  %v149 = vpack.c.b16 %v133, %v125
  %vm166 = vcmask 261120
  %v168 = vsel %vm166, %v27, 0
  %170 = vmatprep.subr.bf16.mxu0 %v135
  %171 = vmatpush1.bf16.msra.mxu0 %v134
  %172 = vmatprep.subr.bf16.mxu0 %v143
  %173 = vmatpush1.bf16.msra.mxu0 %v142
  %174 = vmatprep.subr.bf16.mxu0 0
  %175 = vmatpush1.bf16.msra.mxu0 0
  %176 = vmatprep.subr.bf16.mxu0 0
  %177 = vmatpush1.bf16.msra.mxu0 0
  %178 = vmatprep.subr.bf16.mxu0 0
  %179 = vmatpush1.bf16.msra.mxu0 0
  %180 = vmatprep.subr.bf16.mxu0 0
  %181 = vmatpush1.bf16.msra.mxu0 0
  %182 = vmatprep.subr.bf16.mxu0 0
  %183 = vmatpush1.bf16.msra.mxu0 0
  %184 = vmatprep.subr.bf16.mxu0 0
  %185 = vmatpush1.bf16.msra.mxu0 0
  %186 = vmatprep.subr.bf16.mxu0 0
  %187 = vmatpush1.bf16.msra.mxu0 0
  %188 = vmatprep.subr.bf16.mxu0 0
  %189 = vmatpush1.bf16.msra.mxu0 0
  %190 = vmatprep.subr.bf16.mxu0 0
  %191 = vmatpush1.bf16.msra.mxu0 0
  %192 = vmatprep.subr.bf16.mxu0 0
  %193 = vmatpush1.bf16.msra.mxu0 0
  %194 = vmatprep.subr.bf16.mxu0 0
  %195 = vmatpush1.bf16.msra.mxu0 0
  %196 = vmatprep.subr.bf16.mxu0 0
  %197 = vmatpush1.bf16.msra.mxu0 0
  %198 = vmatprep.subr.bf16.mxu0 0
  %199 = vmatpush1.bf16.msra.mxu0 0
  %200 = vmatprep.subr.bf16.mxu0 0
  %201 = vmatpush1.bf16.msra.mxu0 0
  %202 = vmatprep.mubr.bf16.mxu0 0
  %203 = vmatmul.mubr.bf16.gmra.mrb[0].mxu0 %v168
  %v204 = vpop.f32.mrb[0].mxu0
  %v205 = vadd.f32 %v49, %v204
  %v206 = vpop.f32.mrb[0].mxu0
  %v207 = vadd.f32 %v53, %v206
  %v208 = vpop.f32.mrb[0].mxu0
  %v209 = vpop.f32.mrb[0].mxu0
  %210 = vdwg.mxu0
  %211 = vmatprep.subr.bf16.mxu0 %v137
  %212 = vmatpush1.bf16.msra.mxu0 %v136
  %213 = vmatprep.subr.bf16.mxu0 %v145
  %214 = vmatpush1.bf16.msra.mxu0 %v144
  %215 = vmatprep.subr.bf16.mxu0 0
  %216 = vmatpush1.bf16.msra.mxu0 0
  %217 = vmatprep.subr.bf16.mxu0 0
  %218 = vmatpush1.bf16.msra.mxu0 0
  %219 = vmatprep.subr.bf16.mxu0 0
  %220 = vmatpush1.bf16.msra.mxu0 0
  %221 = vmatprep.subr.bf16.mxu0 0
  %222 = vmatpush1.bf16.msra.mxu0 0
  %223 = vmatprep.subr.bf16.mxu0 0
  %224 = vmatpush1.bf16.msra.mxu0 0
  %225 = vmatprep.subr.bf16.mxu0 0
  %226 = vmatpush1.bf16.msra.mxu0 0
  %227 = vmatprep.subr.bf16.mxu0 0
  %228 = vmatpush1.bf16.msra.mxu0 0
  %229 = vmatprep.subr.bf16.mxu0 0
  %230 = vmatpush1.bf16.msra.mxu0 0
  %231 = vmatprep.subr.bf16.mxu0 0
  %232 = vmatpush1.bf16.msra.mxu0 0
  %233 = vmatprep.subr.bf16.mxu0 0
  %234 = vmatpush1.bf16.msra.mxu0 0
  %235 = vmatprep.subr.bf16.mxu0 0
  %236 = vmatpush1.bf16.msra.mxu0 0
  %237 = vmatprep.subr.bf16.mxu0 0
  %238 = vmatpush1.bf16.msra.mxu0 0
  %239 = vmatprep.subr.bf16.mxu0 0
  %240 = vmatpush1.bf16.msra.mxu0 0
  %241 = vmatprep.subr.bf16.mxu0 0
  %242 = vmatpush1.bf16.msra.mxu0 0
  %243 = vmatprep.mubr.bf16.mxu0 0
  %244 = vmatmul.mubr.bf16.gmra.mrb[0].mxu0 %v168
  %v245 = vpop.f32.mrb[0].mxu0
  %v246 = vadd.f32 %v57, %v245
  %v247 = vpop.f32.mrb[0].mxu0
  %v248 = vadd.f32 %v61, %v247
  %v249 = vpop.f32.mrb[0].mxu0
  %v250 = vpop.f32.mrb[0].mxu0
  %251 = vdwg.mxu0
  %252 = vmatprep.subr.bf16.mxu0 %v139
  %253 = vmatpush1.bf16.msra.mxu0 %v138
  %254 = vmatprep.subr.bf16.mxu0 %v147
  %255 = vmatpush1.bf16.msra.mxu0 %v146
  %256 = vmatprep.subr.bf16.mxu0 0
  %257 = vmatpush1.bf16.msra.mxu0 0
  %258 = vmatprep.subr.bf16.mxu0 0
  %259 = vmatpush1.bf16.msra.mxu0 0
  %260 = vmatprep.subr.bf16.mxu0 0
  %261 = vmatpush1.bf16.msra.mxu0 0
  %262 = vmatprep.subr.bf16.mxu0 0
  %263 = vmatpush1.bf16.msra.mxu0 0
  %264 = vmatprep.subr.bf16.mxu0 0
  %265 = vmatpush1.bf16.msra.mxu0 0
  %266 = vmatprep.subr.bf16.mxu0 0
  %267 = vmatpush1.bf16.msra.mxu0 0
  %268 = vmatprep.subr.bf16.mxu0 0
  %269 = vmatpush1.bf16.msra.mxu0 0
  %270 = vmatprep.subr.bf16.mxu0 0
  %271 = vmatpush1.bf16.msra.mxu0 0
  %272 = vmatprep.subr.bf16.mxu0 0
  %273 = vmatpush1.bf16.msra.mxu0 0
  %274 = vmatprep.subr.bf16.mxu0 0
  %275 = vmatpush1.bf16.msra.mxu0 0
  %276 = vmatprep.subr.bf16.mxu0 0
  %277 = vmatpush1.bf16.msra.mxu0 0
  %278 = vmatprep.subr.bf16.mxu0 0
  %279 = vmatpush1.bf16.msra.mxu0 0
  %280 = vmatprep.subr.bf16.mxu0 0
  %281 = vmatpush1.bf16.msra.mxu0 0
  %282 = vmatprep.subr.bf16.mxu0 0
  %283 = vmatpush1.bf16.msra.mxu0 0
  %284 = vmatprep.mubr.bf16.mxu0 0
  %285 = vmatmul.mubr.bf16.gmra.mrb[0].mxu0 %v168
  %v286 = vpop.f32.mrb[0].mxu0
  %v287 = vadd.f32 %v65, %v286
  %v288 = vpop.f32.mrb[0].mxu0
  %v289 = vadd.f32 %v69, %v288
  %v290 = vpop.f32.mrb[0].mxu0
  %v291 = vpop.f32.mrb[0].mxu0
  %292 = vdwg.mxu0
  %293 = vmatprep.subr.bf16.mxu0 %v141
  %294 = vmatpush1.bf16.msra.mxu0 %v140
  %295 = vmatprep.subr.bf16.mxu0 %v149
  %296 = vmatpush1.bf16.msra.mxu0 %v148
  %297 = vmatprep.subr.bf16.mxu0 0
  %298 = vmatpush1.bf16.msra.mxu0 0
  %299 = vmatprep.subr.bf16.mxu0 0
  %300 = vmatpush1.bf16.msra.mxu0 0
  %301 = vmatprep.subr.bf16.mxu0 0
  %302 = vmatpush1.bf16.msra.mxu0 0
  %303 = vmatprep.subr.bf16.mxu0 0
  %304 = vmatpush1.bf16.msra.mxu0 0
  %305 = vmatprep.subr.bf16.mxu0 0
  %306 = vmatpush1.bf16.msra.mxu0 0
  %307 = vmatprep.subr.bf16.mxu0 0
  %308 = vmatpush1.bf16.msra.mxu0 0
  %309 = vmatprep.subr.bf16.mxu0 0
  %310 = vmatpush1.bf16.msra.mxu0 0
  %311 = vmatprep.subr.bf16.mxu0 0
  %312 = vmatpush1.bf16.msra.mxu0 0
  %313 = vmatprep.subr.bf16.mxu0 0
  %314 = vmatpush1.bf16.msra.mxu0 0
  %315 = vmatprep.subr.bf16.mxu0 0
  %316 = vmatpush1.bf16.msra.mxu0 0
  %317 = vmatprep.subr.bf16.mxu0 0
  %318 = vmatpush1.bf16.msra.mxu0 0
  %319 = vmatprep.subr.bf16.mxu0 0
  %320 = vmatpush1.bf16.msra.mxu0 0
  %321 = vmatprep.subr.bf16.mxu0 0
  %322 = vmatpush1.bf16.msra.mxu0 0
  %323 = vmatprep.subr.bf16.mxu0 0
  %324 = vmatpush1.bf16.msra.mxu0 0
  %325 = vmatprep.mubr.bf16.mxu0 0
  %326 = vmatmul.mubr.bf16.gmra.mrb[0].mxu0 %v168
  %v327 = vpop.f32.mrb[0].mxu0
  %v328 = vadd.f32 %v73, %v327
  %v329 = vpop.f32.mrb[0].mxu0
  %v330 = vadd.f32 %v77, %v329
  %v331 = vpop.f32.mrb[0].mxu0
  %v332 = vpop.f32.mrb[0].mxu0
  %333 = vdwg.mxu0
  %vm334 = vcmask 1041408
  %v335 = vsel %vm334, %v205, 0.0
  %v336 = vrot.slane %v335, 4
  %v337 = vadd.f32 %v335, %v336
  %v338 = vrot.slane %v337, 2
  %v339 = vadd.f32 %v337, %v338
  %v340 = vrot.slane %v339, 1
  %v341 = vadd.f32 %v339, %v340
  %v342 = vsel %vm334, %v207, 0.0
  %v343 = vrot.slane %v342, 4
  %v344 = vadd.f32 %v342, %v343
  %v345 = vrot.slane %v344, 2
  %v346 = vadd.f32 %v344, %v345
  %v347 = vrot.slane %v346, 1
  %v348 = vadd.f32 %v346, %v347
  %v349 = vsel %vm334, %v246, 0.0
  %v350 = vrot.slane %v349, 4
  %v351 = vadd.f32 %v349, %v350
  %v352 = vrot.slane %v351, 2
  %v353 = vadd.f32 %v351, %v352
  %v354 = vrot.slane %v353, 1
  %v355 = vadd.f32 %v353, %v354
  %v356 = vsel %vm334, %v248, 0.0
  %v357 = vrot.slane %v356, 4
  %v358 = vadd.f32 %v356, %v357
  %v359 = vrot.slane %v358, 2
  %v360 = vadd.f32 %v358, %v359
  %v361 = vrot.slane %v360, 1
  %v362 = vadd.f32 %v360, %v361
  %v363 = vsel %vm334, %v287, 0.0
  %v364 = vrot.slane %v363, 4
  %v365 = vadd.f32 %v363, %v364
  %v366 = vrot.slane %v365, 2
  %v367 = vadd.f32 %v365, %v366
  %v368 = vrot.slane %v367, 1
  %v369 = vadd.f32 %v367, %v368
  %v370 = vsel %vm334, %v289, 0.0
  %v371 = vrot.slane %v370, 4
  %v372 = vadd.f32 %v370, %v371
  %v373 = vrot.slane %v372, 2
  %v374 = vadd.f32 %v372, %v373
  %v375 = vrot.slane %v374, 1
  %v376 = vadd.f32 %v374, %v375
  %v377 = vsel %vm334, %v328, 0.0
  %v378 = vrot.slane %v377, 4
  %v379 = vadd.f32 %v377, %v378
  %v380 = vrot.slane %v379, 2
  %v381 = vadd.f32 %v379, %v380
  %v382 = vrot.slane %v381, 1
  %v383 = vadd.f32 %v381, %v382
  %v384 = vsel %vm334, %v330, 0.0
  %v385 = vrot.slane %v384, 4
  %v386 = vadd.f32 %v384, %v385
  %v387 = vrot.slane %v386, 2
  %v388 = vadd.f32 %v386, %v387
  %v389 = vrot.slane %v388, 1
  %v390 = vadd.f32 %v388, %v389
  %v391 = vld [vmem:[%s5] sm:$0xff]
  %v392 = vld [vmem:[%s5 + $0x8] sm:$0xff]
  %v393 = vld [vmem:[%s5 + $0x10] sm:$0xff]
  %v394 = vld [vmem:[%s5 + $0x18] sm:$0xff]
  %v395 = vld [vmem:[%s5 + $0x20] sm:$0xff]
  %v396 = vld [vmem:[%s5 + $0x28] sm:$0xff]
  %v397 = vld [vmem:[%s5 + $0x30] sm:$0xff]
  %v398 = vld [vmem:[%s5 + $0x38] sm:$0xff]
  %v399 = vld [vmem:[%s5 + $0x40] sm:$0xff]
  %v400 = vld [vmem:[%s5 + $0x48] sm:$0xff]
  %v401 = vld [vmem:[%s5 + $0x50] sm:$0xff]
  %v402 = vld [vmem:[%s5 + $0x58] sm:$0xff]
  %v403 = vld [vmem:[%s5 + $0x60] sm:$0xff]
  %v404 = vld [vmem:[%s5 + $0x68] sm:$0xff]
  %v405 = vld [vmem:[%s5 + $0x70] sm:$0xff]
  %v406 = vld [vmem:[%s5 + $0x78] sm:$0xff]
  %v407 = vld [vmem:[%s5 + $0x80] sm:$0xff]
  %v408 = vld [vmem:[%s5 + $0x88] sm:$0xff]
  %v409 = vld [vmem:[%s5 + $0x90] sm:$0xff]
  %v410 = vld [vmem:[%s5 + $0x98] sm:$0xff]
  %v411 = vld [vmem:[%s5 + $0xa0] sm:$0xff]
  %v412 = vld [vmem:[%s5 + $0xa8] sm:$0xff]
  %v413 = vld [vmem:[%s5 + $0xb0] sm:$0xff]
  %v414 = vld [vmem:[%s5 + $0xb8] sm:$0xff]
  %v415 = vld [vmem:[%s5 + $0xc0] sm:$0xff]
  %v416 = vld [vmem:[%s5 + $0xc8] sm:$0xff]
  %v417 = vld [vmem:[%s5 + $0xd0] sm:$0xff]
  %v418 = vld [vmem:[%s5 + $0xd8] sm:$0xff]
  %v419 = vld [vmem:[%s5 + $0xe0] sm:$0xff]
  %v420 = vld [vmem:[%s5 + $0xe8] sm:$0xff]
  %v421 = vld [vmem:[%s5 + $0xf0] sm:$0xff]
  %v422 = vld [vmem:[%s5 + $0xf8] sm:$0xff]
  %v423 = vld [vmem:[%s5 + $0x100] sm:$0xff]
  %v424 = vld [vmem:[%s5 + $0x108] sm:$0xff]
  %v425 = vld [vmem:[%s5 + $0x110] sm:$0xff]
  %v426 = vld [vmem:[%s5 + $0x118] sm:$0xff]
  %v427 = vld [vmem:[%s5 + $0x120] sm:$0xff]
  %v428 = vld [vmem:[%s5 + $0x128] sm:$0xff]
  %v429 = vld [vmem:[%s5 + $0x130] sm:$0xff]
  %v430 = vld [vmem:[%s5 + $0x138] sm:$0xff]
  %v431 = vld [vmem:[%s5 + $0x140] sm:$0xff]
  %v432 = vld [vmem:[%s5 + $0x148] sm:$0xff]
  %v433 = vld [vmem:[%s5 + $0x150] sm:$0xff]
  %v434 = vld [vmem:[%s5 + $0x158] sm:$0xff]
  %v435 = vld [vmem:[%s5 + $0x160] sm:$0xff]
  %v436 = vld [vmem:[%s5 + $0x168] sm:$0xff]
  %v437 = vld [vmem:[%s5 + $0x170] sm:$0xff]
  %v438 = vld [vmem:[%s5 + $0x178] sm:$0xff]
  %v439 = vld [vmem:[%s5 + $0x180] sm:$0xff]
  %v440 = vld [vmem:[%s5 + $0x188] sm:$0xff]
  %v441 = vld [vmem:[%s5 + $0x190] sm:$0xff]
  %v442 = vld [vmem:[%s5 + $0x198] sm:$0xff]
  %v443 = vld [vmem:[%s5 + $0x1a0] sm:$0xff]
  %v444 = vld [vmem:[%s5 + $0x1a8] sm:$0xff]
  %v445 = vld [vmem:[%s5 + $0x1b0] sm:$0xff]
  %v446 = vld [vmem:[%s5 + $0x1b8] sm:$0xff]
  %v447 = vld [vmem:[%s5 + $0x1c0] sm:$0xff]
  %v448 = vld [vmem:[%s5 + $0x1c8] sm:$0xff]
  %v449 = vld [vmem:[%s5 + $0x1d0] sm:$0xff]
  %v450 = vld [vmem:[%s5 + $0x1d8] sm:$0xff]
  %v451 = vld [vmem:[%s5 + $0x1e0] sm:$0xff]
  %v452 = vld [vmem:[%s5 + $0x1e8] sm:$0xff]
  %v453 = vld [vmem:[%s5 + $0x1f0] sm:$0xff]
  %v454 = vld [vmem:[%s5 + $0x1f8] sm:$0xff]
  %v455 = vld [vmem:[%s5 + $0x200] sm:$0xff]
  %v456 = vld [vmem:[%s5 + $0x208] sm:$0xff]
  %v457 = vld [vmem:[%s5 + $0x210] sm:$0xff]
  %v458 = vld [vmem:[%s5 + $0x218] sm:$0xff]
  %v459 = vld [vmem:[%s5 + $0x220] sm:$0xff]
  %v460 = vld [vmem:[%s5 + $0x228] sm:$0xff]
  %v461 = vld [vmem:[%s5 + $0x230] sm:$0xff]
  %v462 = vld [vmem:[%s5 + $0x238] sm:$0xff]
  %v463 = vld [vmem:[%s5 + $0x240] sm:$0xff]
  %v464 = vld [vmem:[%s5 + $0x248] sm:$0xff]
  %v465 = vld [vmem:[%s5 + $0x250] sm:$0xff]
  %v466 = vld [vmem:[%s5 + $0x258] sm:$0xff]
  %v467 = vld [vmem:[%s5 + $0x260] sm:$0xff]
  %v468 = vld [vmem:[%s5 + $0x268] sm:$0xff]
  %v469 = vld [vmem:[%s5 + $0x270] sm:$0xff]
  %v470 = vld [vmem:[%s5 + $0x278] sm:$0xff]
  %v471 = vld [vmem:[%s5 + $0x280] sm:$0xff]
  %v472 = vld [vmem:[%s5 + $0x288] sm:$0xff]
  %v473 = vld [vmem:[%s5 + $0x290] sm:$0xff]
  %v474 = vld [vmem:[%s5 + $0x298] sm:$0xff]
  %v475 = vld [vmem:[%s5 + $0x2a0] sm:$0xff]
  %v476 = vld [vmem:[%s5 + $0x2a8] sm:$0xff]
  %v477 = vld [vmem:[%s5 + $0x2b0] sm:$0xff]
  %v478 = vld [vmem:[%s5 + $0x2b8] sm:$0xff]
  %v479 = vld [vmem:[%s5 + $0x2c0] sm:$0xff]
  %v480 = vld [vmem:[%s5 + $0x2c8] sm:$0xff]
  %v481 = vld [vmem:[%s5 + $0x2d0] sm:$0xff]
  %v482 = vld [vmem:[%s5 + $0x2d8] sm:$0xff]
  %v483 = vld [vmem:[%s5 + $0x2e0] sm:$0xff]
  %v484 = vld [vmem:[%s5 + $0x2e8] sm:$0xff]
  %v485 = vld [vmem:[%s5 + $0x2f0] sm:$0xff]
  %v486 = vld [vmem:[%s5 + $0x2f8] sm:$0xff]
  %v487 = vld [vmem:[%s5 + $0x300] sm:$0xff]
  %v488 = vld [vmem:[%s5 + $0x308] sm:$0xff]
  %v489 = vld [vmem:[%s5 + $0x310] sm:$0xff]
  %v490 = vld [vmem:[%s5 + $0x318] sm:$0xff]
  %v491 = vld [vmem:[%s5 + $0x320] sm:$0xff]
  %v492 = vld [vmem:[%s5 + $0x328] sm:$0xff]
  %v493 = vld [vmem:[%s5 + $0x330] sm:$0xff]
  %v494 = vld [vmem:[%s5 + $0x338] sm:$0xff]
  %v495 = vld [vmem:[%s5 + $0x340] sm:$0xff]
  %v496 = vld [vmem:[%s5 + $0x348] sm:$0xff]
  %v497 = vld [vmem:[%s5 + $0x350] sm:$0xff]
  %v498 = vld [vmem:[%s5 + $0x358] sm:$0xff]
  %v499 = vld [vmem:[%s5 + $0x360] sm:$0xff]
  %v500 = vld [vmem:[%s5 + $0x368] sm:$0xff]
  %v501 = vld [vmem:[%s5 + $0x370] sm:$0xff]
  %v502 = vld [vmem:[%s5 + $0x378] sm:$0xff]
  %v503 = vld [vmem:[%s5 + $0x380] sm:$0xff]
  %v504 = vld [vmem:[%s5 + $0x388] sm:$0xff]
  %v505 = vld [vmem:[%s5 + $0x390] sm:$0xff]
  %v506 = vld [vmem:[%s5 + $0x398] sm:$0xff]
  %v507 = vld [vmem:[%s5 + $0x3a0] sm:$0xff]
  %v508 = vld [vmem:[%s5 + $0x3a8] sm:$0xff]
  %v509 = vld [vmem:[%s5 + $0x3b0] sm:$0xff]
  %v510 = vld [vmem:[%s5 + $0x3b8] sm:$0xff]
  %v511 = vld [vmem:[%s5 + $0x3c0] sm:$0xff]
  %v512 = vld [vmem:[%s5 + $0x3c8] sm:$0xff]
  %v513 = vld [vmem:[%s5 + $0x3d0] sm:$0xff]
  %v514 = vld [vmem:[%s5 + $0x3d8] sm:$0xff]
  %v515 = vld [vmem:[%s5 + $0x3e0] sm:$0xff]
  %v516 = vld [vmem:[%s5 + $0x3e8] sm:$0xff]
  %v517 = vld [vmem:[%s5 + $0x3f0] sm:$0xff]
  %v518 = vld [vmem:[%s5 + $0x3f8] sm:$0xff]
  %519 = vmatprep.subr.mxu0 0.0
  %520 = vmatpush1.msra.mxu0 %v391
  %521 = vmatprep.subr.mxu0 0.0
  %522 = vmatpush1.msra.mxu0 %v392
  %523 = vmatprep.subr.mxu0 0.0
  %524 = vmatpush1.msra.mxu0 %v393
  %525 = vmatprep.subr.mxu0 0.0
  %526 = vmatpush1.msra.mxu0 %v394
  %527 = vmatprep.subr.mxu0 0.0
  %528 = vmatpush1.msra.mxu0 %v395
  %529 = vmatprep.subr.mxu0 0.0
  %530 = vmatpush1.msra.mxu0 %v396
  %531 = vmatprep.subr.mxu0 0.0
  %532 = vmatpush1.msra.mxu0 %v397
  %533 = vmatprep.subr.mxu0 0.0
  %534 = vmatpush1.msra.mxu0 %v398
  %535 = vmatprep.subr.mxu0 0.0
  %536 = vmatpush1.msra.mxu0 %v399
  %537 = vmatprep.subr.mxu0 0.0
  %538 = vmatpush1.msra.mxu0 %v400
  %539 = vmatprep.subr.mxu0 0.0
  %540 = vmatpush1.msra.mxu0 %v401
  %541 = vmatprep.subr.mxu0 0.0
  %542 = vmatpush1.msra.mxu0 %v402
  %543 = vmatprep.subr.mxu0 0.0
  %544 = vmatpush1.msra.mxu0 %v403
  %545 = vmatprep.subr.mxu0 0.0
  %546 = vmatpush1.msra.mxu0 %v404
  %547 = vmatprep.subr.mxu0 0.0
  %548 = vmatpush1.msra.mxu0 %v405
  %549 = vmatprep.subr.mxu0 0.0
  %550 = vmatpush1.msra.mxu0 %v406
  %551 = vmatprep.subr.mxu0 0.0
  %552 = vmatpush1.msra.mxu0 %v407
  %553 = vmatprep.subr.mxu0 0.0
  %554 = vmatpush1.msra.mxu0 %v408
  %555 = vmatprep.subr.mxu0 0.0
  %556 = vmatpush1.msra.mxu0 %v409
  %557 = vmatprep.subr.mxu0 0.0
  %558 = vmatpush1.msra.mxu0 %v410
  %559 = vmatprep.subr.mxu0 0.0
  %560 = vmatpush1.msra.mxu0 %v411
  %561 = vmatprep.subr.mxu0 0.0
  %562 = vmatpush1.msra.mxu0 %v412
  %563 = vmatprep.subr.mxu0 0.0
  %564 = vmatpush1.msra.mxu0 %v413
  %565 = vmatprep.subr.mxu0 0.0
  %566 = vmatpush1.msra.mxu0 %v414
  %567 = vmatprep.subr.mxu0 0.0
  %568 = vmatpush1.msra.mxu0 %v415
  %569 = vmatprep.subr.mxu0 0.0
  %570 = vmatpush1.msra.mxu0 %v416
  %571 = vmatprep.subr.mxu0 0.0
  %572 = vmatpush1.msra.mxu0 %v417
  %573 = vmatprep.subr.mxu0 0.0
  %574 = vmatpush1.msra.mxu0 %v418
  %575 = vmatprep.subr.mxu0 0.0
  %576 = vmatpush1.msra.mxu0 %v419
  %577 = vmatprep.subr.mxu0 0.0
  %578 = vmatpush1.msra.mxu0 %v420
  %579 = vmatprep.subr.mxu0 0.0
  %580 = vmatpush1.msra.mxu0 %v421
  %581 = vmatprep.subr.mxu0 0.0
  %582 = vmatpush1.msra.mxu0 %v422
  %583 = vmatprep.mubr.f32.mxu0 %v348
  %584 = vmatmul.mubr.f32.gmra.mrb[0].mxu0 %v341
  %v585 = vpop.f32.mrb[0].mxu0
  %v586 = vadd.f32 0.0, %v585
  %v587 = vpop.f32.mrb[0].mxu0
  %588 = vdwg.mxu0
  %589 = vmatprep.subr.mxu0 0.0
  %590 = vmatpush1.msra.mxu0 %v423
  %591 = vmatprep.subr.mxu0 0.0
  %592 = vmatpush1.msra.mxu0 %v424
  %593 = vmatprep.subr.mxu0 0.0
  %594 = vmatpush1.msra.mxu0 %v425
  %595 = vmatprep.subr.mxu0 0.0
  %596 = vmatpush1.msra.mxu0 %v426
  %597 = vmatprep.subr.mxu0 0.0
  %598 = vmatpush1.msra.mxu0 %v427
  %599 = vmatprep.subr.mxu0 0.0
  %600 = vmatpush1.msra.mxu0 %v428
  %601 = vmatprep.subr.mxu0 0.0
  %602 = vmatpush1.msra.mxu0 %v429
  %603 = vmatprep.subr.mxu0 0.0
  %604 = vmatpush1.msra.mxu0 %v430
  %605 = vmatprep.subr.mxu0 0.0
  %606 = vmatpush1.msra.mxu0 %v431
  %607 = vmatprep.subr.mxu0 0.0
  %608 = vmatpush1.msra.mxu0 %v432
  %609 = vmatprep.subr.mxu0 0.0
  %610 = vmatpush1.msra.mxu0 %v433
  %611 = vmatprep.subr.mxu0 0.0
  %612 = vmatpush1.msra.mxu0 %v434
  %613 = vmatprep.subr.mxu0 0.0
  %614 = vmatpush1.msra.mxu0 %v435
  %615 = vmatprep.subr.mxu0 0.0
  %616 = vmatpush1.msra.mxu0 %v436
  %617 = vmatprep.subr.mxu0 0.0
  %618 = vmatpush1.msra.mxu0 %v437
  %619 = vmatprep.subr.mxu0 0.0
  %620 = vmatpush1.msra.mxu0 %v438
  %621 = vmatprep.subr.mxu0 0.0
  %622 = vmatpush1.msra.mxu0 %v439
  %623 = vmatprep.subr.mxu0 0.0
  %624 = vmatpush1.msra.mxu0 %v440
  %625 = vmatprep.subr.mxu0 0.0
  %626 = vmatpush1.msra.mxu0 %v441
  %627 = vmatprep.subr.mxu0 0.0
  %628 = vmatpush1.msra.mxu0 %v442
  %629 = vmatprep.subr.mxu0 0.0
  %630 = vmatpush1.msra.mxu0 %v443
  %631 = vmatprep.subr.mxu0 0.0
  %632 = vmatpush1.msra.mxu0 %v444
  %633 = vmatprep.subr.mxu0 0.0
  %634 = vmatpush1.msra.mxu0 %v445
  %635 = vmatprep.subr.mxu0 0.0
  %636 = vmatpush1.msra.mxu0 %v446
  %637 = vmatprep.subr.mxu0 0.0
  %638 = vmatpush1.msra.mxu0 %v447
  %639 = vmatprep.subr.mxu0 0.0
  %640 = vmatpush1.msra.mxu0 %v448
  %641 = vmatprep.subr.mxu0 0.0
  %642 = vmatpush1.msra.mxu0 %v449
  %643 = vmatprep.subr.mxu0 0.0
  %644 = vmatpush1.msra.mxu0 %v450
  %645 = vmatprep.subr.mxu0 0.0
  %646 = vmatpush1.msra.mxu0 %v451
  %647 = vmatprep.subr.mxu0 0.0
  %648 = vmatpush1.msra.mxu0 %v452
  %649 = vmatprep.subr.mxu0 0.0
  %650 = vmatpush1.msra.mxu0 %v453
  %651 = vmatprep.subr.mxu0 0.0
  %652 = vmatpush1.msra.mxu0 %v454
  %653 = vmatprep.mubr.f32.mxu0 %v362
  %654 = vmatmul.mubr.f32.gmra.mrb[0].mxu0 %v355
  %v655 = vpop.f32.mrb[0].mxu0
  %v656 = vadd.f32 %v586, %v655
  %v657 = vpop.f32.mrb[0].mxu0
  %658 = vdwg.mxu0
  %659 = vmatprep.subr.mxu0 0.0
  %660 = vmatpush1.msra.mxu0 %v455
  %661 = vmatprep.subr.mxu0 0.0
  %662 = vmatpush1.msra.mxu0 %v456
  %663 = vmatprep.subr.mxu0 0.0
  %664 = vmatpush1.msra.mxu0 %v457
  %665 = vmatprep.subr.mxu0 0.0
  %666 = vmatpush1.msra.mxu0 %v458
  %667 = vmatprep.subr.mxu0 0.0
  %668 = vmatpush1.msra.mxu0 %v459
  %669 = vmatprep.subr.mxu0 0.0
  %670 = vmatpush1.msra.mxu0 %v460
  %671 = vmatprep.subr.mxu0 0.0
  %672 = vmatpush1.msra.mxu0 %v461
  %673 = vmatprep.subr.mxu0 0.0
  %674 = vmatpush1.msra.mxu0 %v462
  %675 = vmatprep.subr.mxu0 0.0
  %676 = vmatpush1.msra.mxu0 %v463
  %677 = vmatprep.subr.mxu0 0.0
  %678 = vmatpush1.msra.mxu0 %v464
  %679 = vmatprep.subr.mxu0 0.0
  %680 = vmatpush1.msra.mxu0 %v465
  %681 = vmatprep.subr.mxu0 0.0
  %682 = vmatpush1.msra.mxu0 %v466
  %683 = vmatprep.subr.mxu0 0.0
  %684 = vmatpush1.msra.mxu0 %v467
  %685 = vmatprep.subr.mxu0 0.0
  %686 = vmatpush1.msra.mxu0 %v468
  %687 = vmatprep.subr.mxu0 0.0
  %688 = vmatpush1.msra.mxu0 %v469
  %689 = vmatprep.subr.mxu0 0.0
  %690 = vmatpush1.msra.mxu0 %v470
  %691 = vmatprep.subr.mxu0 0.0
  %692 = vmatpush1.msra.mxu0 %v471
  %693 = vmatprep.subr.mxu0 0.0
  %694 = vmatpush1.msra.mxu0 %v472
  %695 = vmatprep.subr.mxu0 0.0
  %696 = vmatpush1.msra.mxu0 %v473
  %697 = vmatprep.subr.mxu0 0.0
  %698 = vmatpush1.msra.mxu0 %v474
  %699 = vmatprep.subr.mxu0 0.0
  %700 = vmatpush1.msra.mxu0 %v475
  %701 = vmatprep.subr.mxu0 0.0
  %702 = vmatpush1.msra.mxu0 %v476
  %703 = vmatprep.subr.mxu0 0.0
  %704 = vmatpush1.msra.mxu0 %v477
  %705 = vmatprep.subr.mxu0 0.0
  %706 = vmatpush1.msra.mxu0 %v478
  %707 = vmatprep.subr.mxu0 0.0
  %708 = vmatpush1.msra.mxu0 %v479
  %709 = vmatprep.subr.mxu0 0.0
  %710 = vmatpush1.msra.mxu0 %v480
  %711 = vmatprep.subr.mxu0 0.0
  %712 = vmatpush1.msra.mxu0 %v481
  %713 = vmatprep.subr.mxu0 0.0
  %714 = vmatpush1.msra.mxu0 %v482
  %715 = vmatprep.subr.mxu0 0.0
  %716 = vmatpush1.msra.mxu0 %v483
  %717 = vmatprep.subr.mxu0 0.0
  %718 = vmatpush1.msra.mxu0 %v484
  %719 = vmatprep.subr.mxu0 0.0
  %720 = vmatpush1.msra.mxu0 %v485
  %721 = vmatprep.subr.mxu0 0.0
  %722 = vmatpush1.msra.mxu0 %v486
  %723 = vmatprep.mubr.f32.mxu0 %v376
  %724 = vmatmul.mubr.f32.gmra.mrb[0].mxu0 %v369
  %v725 = vpop.f32.mrb[0].mxu0
  %v726 = vadd.f32 %v656, %v725
  %v727 = vpop.f32.mrb[0].mxu0
  %728 = vdwg.mxu0
  %729 = vmatprep.subr.mxu0 0.0
  %730 = vmatpush1.msra.mxu0 %v487
  %731 = vmatprep.subr.mxu0 0.0
  %732 = vmatpush1.msra.mxu0 %v488
  %733 = vmatprep.subr.mxu0 0.0
  %734 = vmatpush1.msra.mxu0 %v489
  %735 = vmatprep.subr.mxu0 0.0
  %736 = vmatpush1.msra.mxu0 %v490
  %737 = vmatprep.subr.mxu0 0.0
  %738 = vmatpush1.msra.mxu0 %v491
  %739 = vmatprep.subr.mxu0 0.0
  %740 = vmatpush1.msra.mxu0 %v492
  %741 = vmatprep.subr.mxu0 0.0
  %742 = vmatpush1.msra.mxu0 %v493
  %743 = vmatprep.subr.mxu0 0.0
  %744 = vmatpush1.msra.mxu0 %v494
  %745 = vmatprep.subr.mxu0 0.0
  %746 = vmatpush1.msra.mxu0 %v495
  %747 = vmatprep.subr.mxu0 0.0
  %748 = vmatpush1.msra.mxu0 %v496
  %749 = vmatprep.subr.mxu0 0.0
  %750 = vmatpush1.msra.mxu0 %v497
  %751 = vmatprep.subr.mxu0 0.0
  %752 = vmatpush1.msra.mxu0 %v498
  %753 = vmatprep.subr.mxu0 0.0
  %754 = vmatpush1.msra.mxu0 %v499
  %755 = vmatprep.subr.mxu0 0.0
  %756 = vmatpush1.msra.mxu0 %v500
  %757 = vmatprep.subr.mxu0 0.0
  %758 = vmatpush1.msra.mxu0 %v501
  %759 = vmatprep.subr.mxu0 0.0
  %760 = vmatpush1.msra.mxu0 %v502
  %761 = vmatprep.subr.mxu0 0.0
  %762 = vmatpush1.msra.mxu0 %v503
  %763 = vmatprep.subr.mxu0 0.0
  %764 = vmatpush1.msra.mxu0 %v504
  %765 = vmatprep.subr.mxu0 0.0
  %766 = vmatpush1.msra.mxu0 %v505
  %767 = vmatprep.subr.mxu0 0.0
  %768 = vmatpush1.msra.mxu0 %v506
  %769 = vmatprep.subr.mxu0 0.0
  %770 = vmatpush1.msra.mxu0 %v507
  %771 = vmatprep.subr.mxu0 0.0
  %772 = vmatpush1.msra.mxu0 %v508
  %773 = vmatprep.subr.mxu0 0.0
  %774 = vmatpush1.msra.mxu0 %v509
  %775 = vmatprep.subr.mxu0 0.0
  %776 = vmatpush1.msra.mxu0 %v510
  %777 = vmatprep.subr.mxu0 0.0
  %778 = vmatpush1.msra.mxu0 %v511
  %779 = vmatprep.subr.mxu0 0.0
  %780 = vmatpush1.msra.mxu0 %v512
  %781 = vmatprep.subr.mxu0 0.0
  %782 = vmatpush1.msra.mxu0 %v513
  %783 = vmatprep.subr.mxu0 0.0
  %784 = vmatpush1.msra.mxu0 %v514
  %785 = vmatprep.subr.mxu0 0.0
  %786 = vmatpush1.msra.mxu0 %v515
  %787 = vmatprep.subr.mxu0 0.0
  %788 = vmatpush1.msra.mxu0 %v516
  %789 = vmatprep.subr.mxu0 0.0
  %790 = vmatpush1.msra.mxu0 %v517
  %791 = vmatprep.subr.mxu0 0.0
  %792 = vmatpush1.msra.mxu0 %v518
  %793 = vmatprep.mubr.f32.mxu0 %v390
  %794 = vmatmul.mubr.f32.gmra.mrb[0].mxu0 %v383
  %v795 = vpop.f32.mrb[0].mxu0
  %v796 = vadd.f32 %v726, %v795
  %v797 = vpop.f32.mrb[0].mxu0
  %798 = vdwg.mxu0
  %v799 = vmul.f32 %v205, %v205
  %v800 = vmul.f32 %v207, %v207
  %v801 = vmul.f32 %v246, %v246
  %v802 = vmul.f32 %v248, %v248
  %v803 = vmul.f32 %v287, %v287
  %v804 = vmul.f32 %v289, %v289
  %v805 = vmul.f32 %v328, %v328
  %v806 = vmul.f32 %v330, %v330
  %v807 = vsel %vm334, %v799, 0.0
  %v808 = vrot.slane %v807, 4
  %v809 = vadd.f32 %v807, %v808
  %v810 = vrot.slane %v809, 2
  %v811 = vadd.f32 %v809, %v810
  %v812 = vrot.slane %v811, 1
  %v813 = vadd.f32 %v811, %v812
  %v814 = vsel %vm334, %v800, 0.0
  %v815 = vrot.slane %v814, 4
  %v816 = vadd.f32 %v814, %v815
  %v817 = vrot.slane %v816, 2
  %v818 = vadd.f32 %v816, %v817
  %v819 = vrot.slane %v818, 1
  %v820 = vadd.f32 %v818, %v819
  %v821 = vsel %vm334, %v801, 0.0
  %v822 = vrot.slane %v821, 4
  %v823 = vadd.f32 %v821, %v822
  %v824 = vrot.slane %v823, 2
  %v825 = vadd.f32 %v823, %v824
  %v826 = vrot.slane %v825, 1
  %v827 = vadd.f32 %v825, %v826
  %v828 = vsel %vm334, %v802, 0.0
  %v829 = vrot.slane %v828, 4
  %v830 = vadd.f32 %v828, %v829
  %v831 = vrot.slane %v830, 2
  %v832 = vadd.f32 %v830, %v831
  %v833 = vrot.slane %v832, 1
  %v834 = vadd.f32 %v832, %v833
  %v835 = vsel %vm334, %v803, 0.0
  %v836 = vrot.slane %v835, 4
  %v837 = vadd.f32 %v835, %v836
  %v838 = vrot.slane %v837, 2
  %v839 = vadd.f32 %v837, %v838
  %v840 = vrot.slane %v839, 1
  %v841 = vadd.f32 %v839, %v840
  %v842 = vsel %vm334, %v804, 0.0
  %v843 = vrot.slane %v842, 4
  %v844 = vadd.f32 %v842, %v843
  %v845 = vrot.slane %v844, 2
  %v846 = vadd.f32 %v844, %v845
  %v847 = vrot.slane %v846, 1
  %v848 = vadd.f32 %v846, %v847
  %v849 = vsel %vm334, %v805, 0.0
  %v850 = vrot.slane %v849, 4
  %v851 = vadd.f32 %v849, %v850
  %v852 = vrot.slane %v851, 2
  %v853 = vadd.f32 %v851, %v852
  %v854 = vrot.slane %v853, 1
  %v855 = vadd.f32 %v853, %v854
  %v856 = vsel %vm334, %v806, 0.0
  %v857 = vrot.slane %v856, 4
  %v858 = vadd.f32 %v856, %v857
  %v859 = vrot.slane %v858, 2
  %v860 = vadd.f32 %v858, %v859
  %v861 = vrot.slane %v860, 1
  %v862 = vadd.f32 %v860, %v861
  %863 = vmatprep.subr.mxu0 0.0
  %864 = vmatpush1.msra.mxu0 %v391
  %865 = vmatprep.subr.mxu0 0.0
  %866 = vmatpush1.msra.mxu0 %v392
  %867 = vmatprep.subr.mxu0 0.0
  %868 = vmatpush1.msra.mxu0 %v393
  %869 = vmatprep.subr.mxu0 0.0
  %870 = vmatpush1.msra.mxu0 %v394
  %871 = vmatprep.subr.mxu0 0.0
  %872 = vmatpush1.msra.mxu0 %v395
  %873 = vmatprep.subr.mxu0 0.0
  %874 = vmatpush1.msra.mxu0 %v396
  %875 = vmatprep.subr.mxu0 0.0
  %876 = vmatpush1.msra.mxu0 %v397
  %877 = vmatprep.subr.mxu0 0.0
  %878 = vmatpush1.msra.mxu0 %v398
  %879 = vmatprep.subr.mxu0 0.0
  %880 = vmatpush1.msra.mxu0 %v399
  %881 = vmatprep.subr.mxu0 0.0
  %882 = vmatpush1.msra.mxu0 %v400
  %883 = vmatprep.subr.mxu0 0.0
  %884 = vmatpush1.msra.mxu0 %v401
  %885 = vmatprep.subr.mxu0 0.0
  %886 = vmatpush1.msra.mxu0 %v402
  %887 = vmatprep.subr.mxu0 0.0
  %888 = vmatpush1.msra.mxu0 %v403
  %889 = vmatprep.subr.mxu0 0.0
  %890 = vmatpush1.msra.mxu0 %v404
  %891 = vmatprep.subr.mxu0 0.0
  %892 = vmatpush1.msra.mxu0 %v405
  %893 = vmatprep.subr.mxu0 0.0
  %894 = vmatpush1.msra.mxu0 %v406
  %895 = vmatprep.subr.mxu0 0.0
  %896 = vmatpush1.msra.mxu0 %v407
  %897 = vmatprep.subr.mxu0 0.0
  %898 = vmatpush1.msra.mxu0 %v408
  %899 = vmatprep.subr.mxu0 0.0
  %900 = vmatpush1.msra.mxu0 %v409
  %901 = vmatprep.subr.mxu0 0.0
  %902 = vmatpush1.msra.mxu0 %v410
  %903 = vmatprep.subr.mxu0 0.0
  %904 = vmatpush1.msra.mxu0 %v411
  %905 = vmatprep.subr.mxu0 0.0
  %906 = vmatpush1.msra.mxu0 %v412
  %907 = vmatprep.subr.mxu0 0.0
  %908 = vmatpush1.msra.mxu0 %v413
  %909 = vmatprep.subr.mxu0 0.0
  %910 = vmatpush1.msra.mxu0 %v414
  %911 = vmatprep.subr.mxu0 0.0
  %912 = vmatpush1.msra.mxu0 %v415
  %913 = vmatprep.subr.mxu0 0.0
  %914 = vmatpush1.msra.mxu0 %v416
  %915 = vmatprep.subr.mxu0 0.0
  %916 = vmatpush1.msra.mxu0 %v417
  %917 = vmatprep.subr.mxu0 0.0
  %918 = vmatpush1.msra.mxu0 %v418
  %919 = vmatprep.subr.mxu0 0.0
  %920 = vmatpush1.msra.mxu0 %v419
  %921 = vmatprep.subr.mxu0 0.0
  %922 = vmatpush1.msra.mxu0 %v420
  %923 = vmatprep.subr.mxu0 0.0
  %924 = vmatpush1.msra.mxu0 %v421
  %925 = vmatprep.subr.mxu0 0.0
  %926 = vmatpush1.msra.mxu0 %v422
  %927 = vmatprep.mubr.f32.mxu0 %v820
  %928 = vmatmul.mubr.f32.gmra.mrb[0].mxu0 %v813
  %v929 = vpop.f32.mrb[0].mxu0
  %v930 = vadd.f32 0.0, %v929
  %v931 = vpop.f32.mrb[0].mxu0
  %932 = vdwg.mxu0
  %933 = vmatprep.subr.mxu0 0.0
  %934 = vmatpush1.msra.mxu0 %v423
  %935 = vmatprep.subr.mxu0 0.0
  %936 = vmatpush1.msra.mxu0 %v424
  %937 = vmatprep.subr.mxu0 0.0
  %938 = vmatpush1.msra.mxu0 %v425
  %939 = vmatprep.subr.mxu0 0.0
  %940 = vmatpush1.msra.mxu0 %v426
  %941 = vmatprep.subr.mxu0 0.0
  %942 = vmatpush1.msra.mxu0 %v427
  %943 = vmatprep.subr.mxu0 0.0
  %944 = vmatpush1.msra.mxu0 %v428
  %945 = vmatprep.subr.mxu0 0.0
  %946 = vmatpush1.msra.mxu0 %v429
  %947 = vmatprep.subr.mxu0 0.0
  %948 = vmatpush1.msra.mxu0 %v430
  %949 = vmatprep.subr.mxu0 0.0
  %950 = vmatpush1.msra.mxu0 %v431
  %951 = vmatprep.subr.mxu0 0.0
  %952 = vmatpush1.msra.mxu0 %v432
  %953 = vmatprep.subr.mxu0 0.0
  %954 = vmatpush1.msra.mxu0 %v433
  %955 = vmatprep.subr.mxu0 0.0
  %956 = vmatpush1.msra.mxu0 %v434
  %957 = vmatprep.subr.mxu0 0.0
  %958 = vmatpush1.msra.mxu0 %v435
  %959 = vmatprep.subr.mxu0 0.0
  %960 = vmatpush1.msra.mxu0 %v436
  %961 = vmatprep.subr.mxu0 0.0
  %962 = vmatpush1.msra.mxu0 %v437
  %963 = vmatprep.subr.mxu0 0.0
  %964 = vmatpush1.msra.mxu0 %v438
  %965 = vmatprep.subr.mxu0 0.0
  %966 = vmatpush1.msra.mxu0 %v439
  %967 = vmatprep.subr.mxu0 0.0
  %968 = vmatpush1.msra.mxu0 %v440
  %969 = vmatprep.subr.mxu0 0.0
  %970 = vmatpush1.msra.mxu0 %v441
  %971 = vmatprep.subr.mxu0 0.0
  %972 = vmatpush1.msra.mxu0 %v442
  %973 = vmatprep.subr.mxu0 0.0
  %974 = vmatpush1.msra.mxu0 %v443
  %975 = vmatprep.subr.mxu0 0.0
  %976 = vmatpush1.msra.mxu0 %v444
  %977 = vmatprep.subr.mxu0 0.0
  %978 = vmatpush1.msra.mxu0 %v445
  %979 = vmatprep.subr.mxu0 0.0
  %980 = vmatpush1.msra.mxu0 %v446
  %981 = vmatprep.subr.mxu0 0.0
  %982 = vmatpush1.msra.mxu0 %v447
  %983 = vmatprep.subr.mxu0 0.0
  %984 = vmatpush1.msra.mxu0 %v448
  %985 = vmatprep.subr.mxu0 0.0
  %986 = vmatpush1.msra.mxu0 %v449
  %987 = vmatprep.subr.mxu0 0.0
  %988 = vmatpush1.msra.mxu0 %v450
  %989 = vmatprep.subr.mxu0 0.0
  %990 = vmatpush1.msra.mxu0 %v451
  %991 = vmatprep.subr.mxu0 0.0
  %992 = vmatpush1.msra.mxu0 %v452
  %993 = vmatprep.subr.mxu0 0.0
  %994 = vmatpush1.msra.mxu0 %v453
  %995 = vmatprep.subr.mxu0 0.0
  %996 = vmatpush1.msra.mxu0 %v454
  %997 = vmatprep.mubr.f32.mxu0 %v834
  %998 = vmatmul.mubr.f32.gmra.mrb[0].mxu0 %v827
  %v999 = vpop.f32.mrb[0].mxu0
  %v1000 = vadd.f32 %v930, %v999
  %v1001 = vpop.f32.mrb[0].mxu0
  %1002 = vdwg.mxu0
  %1003 = vmatprep.subr.mxu0 0.0
  %1004 = vmatpush1.msra.mxu0 %v455
  %1005 = vmatprep.subr.mxu0 0.0
  %1006 = vmatpush1.msra.mxu0 %v456
  %1007 = vmatprep.subr.mxu0 0.0
  %1008 = vmatpush1.msra.mxu0 %v457
  %1009 = vmatprep.subr.mxu0 0.0
  %1010 = vmatpush1.msra.mxu0 %v458
  %1011 = vmatprep.subr.mxu0 0.0
  %1012 = vmatpush1.msra.mxu0 %v459
  %1013 = vmatprep.subr.mxu0 0.0
  %1014 = vmatpush1.msra.mxu0 %v460
  %1015 = vmatprep.subr.mxu0 0.0
  %1016 = vmatpush1.msra.mxu0 %v461
  %1017 = vmatprep.subr.mxu0 0.0
  %1018 = vmatpush1.msra.mxu0 %v462
  %1019 = vmatprep.subr.mxu0 0.0
  %1020 = vmatpush1.msra.mxu0 %v463
  %1021 = vmatprep.subr.mxu0 0.0
  %1022 = vmatpush1.msra.mxu0 %v464
  %1023 = vmatprep.subr.mxu0 0.0
  %1024 = vmatpush1.msra.mxu0 %v465
  %1025 = vmatprep.subr.mxu0 0.0
  %1026 = vmatpush1.msra.mxu0 %v466
  %1027 = vmatprep.subr.mxu0 0.0
  %1028 = vmatpush1.msra.mxu0 %v467
  %1029 = vmatprep.subr.mxu0 0.0
  %1030 = vmatpush1.msra.mxu0 %v468
  %1031 = vmatprep.subr.mxu0 0.0
  %1032 = vmatpush1.msra.mxu0 %v469
  %1033 = vmatprep.subr.mxu0 0.0
  %1034 = vmatpush1.msra.mxu0 %v470
  %1035 = vmatprep.subr.mxu0 0.0
  %1036 = vmatpush1.msra.mxu0 %v471
  %1037 = vmatprep.subr.mxu0 0.0
  %1038 = vmatpush1.msra.mxu0 %v472
  %1039 = vmatprep.subr.mxu0 0.0
  %1040 = vmatpush1.msra.mxu0 %v473
  %1041 = vmatprep.subr.mxu0 0.0
  %1042 = vmatpush1.msra.mxu0 %v474
  %1043 = vmatprep.subr.mxu0 0.0
  %1044 = vmatpush1.msra.mxu0 %v475
  %1045 = vmatprep.subr.mxu0 0.0
  %1046 = vmatpush1.msra.mxu0 %v476
  %1047 = vmatprep.subr.mxu0 0.0
  %1048 = vmatpush1.msra.mxu0 %v477
  %1049 = vmatprep.subr.mxu0 0.0
  %1050 = vmatpush1.msra.mxu0 %v478
  %1051 = vmatprep.subr.mxu0 0.0
  %1052 = vmatpush1.msra.mxu0 %v479
  %1053 = vmatprep.subr.mxu0 0.0
  %1054 = vmatpush1.msra.mxu0 %v480
  %1055 = vmatprep.subr.mxu0 0.0
  %1056 = vmatpush1.msra.mxu0 %v481
  %1057 = vmatprep.subr.mxu0 0.0
  %1058 = vmatpush1.msra.mxu0 %v482
  %1059 = vmatprep.subr.mxu0 0.0
  %1060 = vmatpush1.msra.mxu0 %v483
  %1061 = vmatprep.subr.mxu0 0.0
  %1062 = vmatpush1.msra.mxu0 %v484
  %1063 = vmatprep.subr.mxu0 0.0
  %1064 = vmatpush1.msra.mxu0 %v485
  %1065 = vmatprep.subr.mxu0 0.0
  %1066 = vmatpush1.msra.mxu0 %v486
  %1067 = vmatprep.mubr.f32.mxu0 %v848
  %1068 = vmatmul.mubr.f32.gmra.mrb[0].mxu0 %v841
  %v1069 = vpop.f32.mrb[0].mxu0
  %v1070 = vadd.f32 %v1000, %v1069
  %v1071 = vpop.f32.mrb[0].mxu0
  %1072 = vdwg.mxu0
  %1073 = vmatprep.subr.mxu0 0.0
  %1074 = vmatpush1.msra.mxu0 %v487
  %1075 = vmatprep.subr.mxu0 0.0
  %1076 = vmatpush1.msra.mxu0 %v488
  %1077 = vmatprep.subr.mxu0 0.0
  %1078 = vmatpush1.msra.mxu0 %v489
  %1079 = vmatprep.subr.mxu0 0.0
  %1080 = vmatpush1.msra.mxu0 %v490
  %1081 = vmatprep.subr.mxu0 0.0
  %1082 = vmatpush1.msra.mxu0 %v491
  %1083 = vmatprep.subr.mxu0 0.0
  %1084 = vmatpush1.msra.mxu0 %v492
  %1085 = vmatprep.subr.mxu0 0.0
  %1086 = vmatpush1.msra.mxu0 %v493
  %1087 = vmatprep.subr.mxu0 0.0
  %1088 = vmatpush1.msra.mxu0 %v494
  %1089 = vmatprep.subr.mxu0 0.0
  %1090 = vmatpush1.msra.mxu0 %v495
  %1091 = vmatprep.subr.mxu0 0.0
  %1092 = vmatpush1.msra.mxu0 %v496
  %1093 = vmatprep.subr.mxu0 0.0
  %1094 = vmatpush1.msra.mxu0 %v497
  %1095 = vmatprep.subr.mxu0 0.0
  %1096 = vmatpush1.msra.mxu0 %v498
  %1097 = vmatprep.subr.mxu0 0.0
  %1098 = vmatpush1.msra.mxu0 %v499
  %1099 = vmatprep.subr.mxu0 0.0
  %1100 = vmatpush1.msra.mxu0 %v500
  %1101 = vmatprep.subr.mxu0 0.0
  %1102 = vmatpush1.msra.mxu0 %v501
  %1103 = vmatprep.subr.mxu0 0.0
  %1104 = vmatpush1.msra.mxu0 %v502
  %1105 = vmatprep.subr.mxu0 0.0
  %1106 = vmatpush1.msra.mxu0 %v503
  %1107 = vmatprep.subr.mxu0 0.0
  %1108 = vmatpush1.msra.mxu0 %v504
  %1109 = vmatprep.subr.mxu0 0.0
  %1110 = vmatpush1.msra.mxu0 %v505
  %1111 = vmatprep.subr.mxu0 0.0
  %1112 = vmatpush1.msra.mxu0 %v506
  %1113 = vmatprep.subr.mxu0 0.0
  %1114 = vmatpush1.msra.mxu0 %v507
  %1115 = vmatprep.subr.mxu0 0.0
  %1116 = vmatpush1.msra.mxu0 %v508
  %1117 = vmatprep.subr.mxu0 0.0
  %1118 = vmatpush1.msra.mxu0 %v509
  %1119 = vmatprep.subr.mxu0 0.0
  %1120 = vmatpush1.msra.mxu0 %v510
  %1121 = vmatprep.subr.mxu0 0.0
  %1122 = vmatpush1.msra.mxu0 %v511
  %1123 = vmatprep.subr.mxu0 0.0
  %1124 = vmatpush1.msra.mxu0 %v512
  %1125 = vmatprep.subr.mxu0 0.0
  %1126 = vmatpush1.msra.mxu0 %v513
  %1127 = vmatprep.subr.mxu0 0.0
  %1128 = vmatpush1.msra.mxu0 %v514
  %1129 = vmatprep.subr.mxu0 0.0
  %1130 = vmatpush1.msra.mxu0 %v515
  %1131 = vmatprep.subr.mxu0 0.0
  %1132 = vmatpush1.msra.mxu0 %v516
  %1133 = vmatprep.subr.mxu0 0.0
  %1134 = vmatpush1.msra.mxu0 %v517
  %1135 = vmatprep.subr.mxu0 0.0
  %1136 = vmatpush1.msra.mxu0 %v518
  %1137 = vmatprep.mubr.f32.mxu0 %v862
  %1138 = vmatmul.mubr.f32.gmra.mrb[0].mxu0 %v855
  %v1139 = vpop.f32.mrb[0].mxu0
  %v1140 = vadd.f32 %v1070, %v1139
  %v1141 = vpop.f32.mrb[0].mxu0
  %1142 = vdwg.mxu0
  %v1143 = vmul.f32 %v796, 0.0078125
  %v1144 = vmul.f32 %v1140, 0.0078125
  %v1145 = vmul.f32 %v1143, %v1143
  %v1146 = vsub.f32 %v1144, %v1145
  %v1147 = vmax.f32 %v1146, 0.0
  %v1148 = vld [vmem:[%s3] sm:$0x1]
  %v1149 = vadd.f32 %v1147, 1e-05
  %v1150 = vrsqrt.pop %v1149
  %v1151 = vmul.f32 %v1148, %v1150
  %v1152 = vld [vmem:[%s4] sm:$0x1]
  %v1153 = vmul.f32 %v1143, %v1151
  %v1154 = vsub.f32 %v1152, %v1153
  %v1155 = vld [vmem:[%s6] sm:$0xff]
  %v1156 = vld [vmem:[%s6 + $0x8] sm:$0xff]
  %v1157 = vld [vmem:[%s6 + $0x10] sm:$0xff]
  %v1158 = vld [vmem:[%s6 + $0x18] sm:$0xff]
  %v1159 = vld [vmem:[%s6 + $0x20] sm:$0xff]
  %v1160 = vld [vmem:[%s6 + $0x28] sm:$0xff]
  %v1161 = vld [vmem:[%s6 + $0x30] sm:$0xff]
  %v1162 = vld [vmem:[%s6 + $0x38] sm:$0xff]
  %v1163 = vld [vmem:[%s6 + $0x40] sm:$0xff]
  %v1164 = vld [vmem:[%s6 + $0x48] sm:$0xff]
  %v1165 = vld [vmem:[%s6 + $0x50] sm:$0xff]
  %v1166 = vld [vmem:[%s6 + $0x58] sm:$0xff]
  %v1167 = vld [vmem:[%s6 + $0x60] sm:$0xff]
  %v1168 = vld [vmem:[%s6 + $0x68] sm:$0xff]
  %v1169 = vld [vmem:[%s6 + $0x70] sm:$0xff]
  %v1170 = vld [vmem:[%s6 + $0x78] sm:$0xff]
  %vm1171 = vcmask 130048
  %v1173 = vsel %vm1171, %v1151, 0
  %1175 = vmatprep.subr.mxu0 %v1156
  %1176 = vmatpush1.msra.mxu0 %v1155
  %1177 = vmatprep.subr.mxu0 %v1164
  %1178 = vmatpush1.msra.mxu0 %v1163
  %1179 = vmatprep.subr.mxu0 0.0
  %1180 = vmatpush1.msra.mxu0 0.0
  %1181 = vmatprep.subr.mxu0 0.0
  %1182 = vmatpush1.msra.mxu0 0.0
  %1183 = vmatprep.subr.mxu0 0.0
  %1184 = vmatpush1.msra.mxu0 0.0
  %1185 = vmatprep.subr.mxu0 0.0
  %1186 = vmatpush1.msra.mxu0 0.0
  %1187 = vmatprep.subr.mxu0 0.0
  %1188 = vmatpush1.msra.mxu0 0.0
  %1189 = vmatprep.subr.mxu0 0.0
  %1190 = vmatpush1.msra.mxu0 0.0
  %1191 = vmatprep.subr.mxu0 0.0
  %1192 = vmatpush1.msra.mxu0 0.0
  %1193 = vmatprep.subr.mxu0 0.0
  %1194 = vmatpush1.msra.mxu0 0.0
  %1195 = vmatprep.subr.mxu0 0.0
  %1196 = vmatpush1.msra.mxu0 0.0
  %1197 = vmatprep.subr.mxu0 0.0
  %1198 = vmatpush1.msra.mxu0 0.0
  %1199 = vmatprep.subr.mxu0 0.0
  %1200 = vmatpush1.msra.mxu0 0.0
  %1201 = vmatprep.subr.mxu0 0.0
  %1202 = vmatpush1.msra.mxu0 0.0
  %1203 = vmatprep.subr.mxu0 0.0
  %1204 = vmatpush1.msra.mxu0 0.0
  %1205 = vmatprep.subr.mxu0 0.0
  %1206 = vmatpush1.msra.mxu0 0.0
  %1207 = vmatprep.subr.mxu0 0.0
  %1208 = vmatpush1.msra.mxu0 0.0
  %1209 = vmatprep.subr.mxu0 0.0
  %1210 = vmatpush1.msra.mxu0 0.0
  %1211 = vmatprep.subr.mxu0 0.0
  %1212 = vmatpush1.msra.mxu0 0.0
  %1213 = vmatprep.subr.mxu0 0.0
  %1214 = vmatpush1.msra.mxu0 0.0
  %1215 = vmatprep.subr.mxu0 0.0
  %1216 = vmatpush1.msra.mxu0 0.0
  %1217 = vmatprep.subr.mxu0 0.0
  %1218 = vmatpush1.msra.mxu0 0.0
  %1219 = vmatprep.subr.mxu0 0.0
  %1220 = vmatpush1.msra.mxu0 0.0
  %1221 = vmatprep.subr.mxu0 0.0
  %1222 = vmatpush1.msra.mxu0 0.0
  %1223 = vmatprep.subr.mxu0 0.0
  %1224 = vmatpush1.msra.mxu0 0.0
  %1225 = vmatprep.subr.mxu0 0.0
  %1226 = vmatpush1.msra.mxu0 0.0
  %1227 = vmatprep.subr.mxu0 0.0
  %1228 = vmatpush1.msra.mxu0 0.0
  %1229 = vmatprep.subr.mxu0 0.0
  %1230 = vmatpush1.msra.mxu0 0.0
  %1231 = vmatprep.subr.mxu0 0.0
  %1232 = vmatpush1.msra.mxu0 0.0
  %1233 = vmatprep.subr.mxu0 0.0
  %1234 = vmatpush1.msra.mxu0 0.0
  %1235 = vmatprep.subr.mxu0 0.0
  %1236 = vmatpush1.msra.mxu0 0.0
  %1237 = vmatprep.subr.mxu0 0.0
  %1238 = vmatpush1.msra.mxu0 0.0
  %1239 = vmatprep.mubr.f32.mxu0 0.0
  %1240 = vmatmul.mubr.f32.gmra.mrb[0].mxu0 %v1173
  %v1241 = vpop.f32.mrb[0].mxu0
  %v1242 = vadd.f32 0.0, %v1241
  %v1243 = vpop.f32.mrb[0].mxu0
  %v1244 = vadd.f32 0.0, %v1243
  %1245 = vdwg.mxu0
  %1246 = vmatprep.subr.mxu0 %v1158
  %1247 = vmatpush1.msra.mxu0 %v1157
  %1248 = vmatprep.subr.mxu0 %v1166
  %1249 = vmatpush1.msra.mxu0 %v1165
  %1250 = vmatprep.subr.mxu0 0.0
  %1251 = vmatpush1.msra.mxu0 0.0
  %1252 = vmatprep.subr.mxu0 0.0
  %1253 = vmatpush1.msra.mxu0 0.0
  %1254 = vmatprep.subr.mxu0 0.0
  %1255 = vmatpush1.msra.mxu0 0.0
  %1256 = vmatprep.subr.mxu0 0.0
  %1257 = vmatpush1.msra.mxu0 0.0
  %1258 = vmatprep.subr.mxu0 0.0
  %1259 = vmatpush1.msra.mxu0 0.0
  %1260 = vmatprep.subr.mxu0 0.0
  %1261 = vmatpush1.msra.mxu0 0.0
  %1262 = vmatprep.subr.mxu0 0.0
  %1263 = vmatpush1.msra.mxu0 0.0
  %1264 = vmatprep.subr.mxu0 0.0
  %1265 = vmatpush1.msra.mxu0 0.0
  %1266 = vmatprep.subr.mxu0 0.0
  %1267 = vmatpush1.msra.mxu0 0.0
  %1268 = vmatprep.subr.mxu0 0.0
  %1269 = vmatpush1.msra.mxu0 0.0
  %1270 = vmatprep.subr.mxu0 0.0
  %1271 = vmatpush1.msra.mxu0 0.0
  %1272 = vmatprep.subr.mxu0 0.0
  %1273 = vmatpush1.msra.mxu0 0.0
  %1274 = vmatprep.subr.mxu0 0.0
  %1275 = vmatpush1.msra.mxu0 0.0
  %1276 = vmatprep.subr.mxu0 0.0
  %1277 = vmatpush1.msra.mxu0 0.0
  %1278 = vmatprep.subr.mxu0 0.0
  %1279 = vmatpush1.msra.mxu0 0.0
  %1280 = vmatprep.subr.mxu0 0.0
  %1281 = vmatpush1.msra.mxu0 0.0
  %1282 = vmatprep.subr.mxu0 0.0
  %1283 = vmatpush1.msra.mxu0 0.0
  %1284 = vmatprep.subr.mxu0 0.0
  %1285 = vmatpush1.msra.mxu0 0.0
  %1286 = vmatprep.subr.mxu0 0.0
  %1287 = vmatpush1.msra.mxu0 0.0
  %1288 = vmatprep.subr.mxu0 0.0
  %1289 = vmatpush1.msra.mxu0 0.0
  %1290 = vmatprep.subr.mxu0 0.0
  %1291 = vmatpush1.msra.mxu0 0.0
  %1292 = vmatprep.subr.mxu0 0.0
  %1293 = vmatpush1.msra.mxu0 0.0
  %1294 = vmatprep.subr.mxu0 0.0
  %1295 = vmatpush1.msra.mxu0 0.0
  %1296 = vmatprep.subr.mxu0 0.0
  %1297 = vmatpush1.msra.mxu0 0.0
  %1298 = vmatprep.subr.mxu0 0.0
  %1299 = vmatpush1.msra.mxu0 0.0
  %1300 = vmatprep.subr.mxu0 0.0
  %1301 = vmatpush1.msra.mxu0 0.0
  %1302 = vmatprep.subr.mxu0 0.0
  %1303 = vmatpush1.msra.mxu0 0.0
  %1304 = vmatprep.subr.mxu0 0.0
  %1305 = vmatpush1.msra.mxu0 0.0
  %1306 = vmatprep.subr.mxu0 0.0
  %1307 = vmatpush1.msra.mxu0 0.0
  %1308 = vmatprep.subr.mxu0 0.0
  %1309 = vmatpush1.msra.mxu0 0.0
  %1310 = vmatprep.mubr.f32.mxu0 0.0
  %1311 = vmatmul.mubr.f32.gmra.mrb[0].mxu0 %v1173
  %v1312 = vpop.f32.mrb[0].mxu0
  %v1313 = vadd.f32 0.0, %v1312
  %v1314 = vpop.f32.mrb[0].mxu0
  %v1315 = vadd.f32 0.0, %v1314
  %1316 = vdwg.mxu0
  %1317 = vmatprep.subr.mxu0 %v1160
  %1318 = vmatpush1.msra.mxu0 %v1159
  %1319 = vmatprep.subr.mxu0 %v1168
  %1320 = vmatpush1.msra.mxu0 %v1167
  %1321 = vmatprep.subr.mxu0 0.0
  %1322 = vmatpush1.msra.mxu0 0.0
  %1323 = vmatprep.subr.mxu0 0.0
  %1324 = vmatpush1.msra.mxu0 0.0
  %1325 = vmatprep.subr.mxu0 0.0
  %1326 = vmatpush1.msra.mxu0 0.0
  %1327 = vmatprep.subr.mxu0 0.0
  %1328 = vmatpush1.msra.mxu0 0.0
  %1329 = vmatprep.subr.mxu0 0.0
  %1330 = vmatpush1.msra.mxu0 0.0
  %1331 = vmatprep.subr.mxu0 0.0
  %1332 = vmatpush1.msra.mxu0 0.0
  %1333 = vmatprep.subr.mxu0 0.0
  %1334 = vmatpush1.msra.mxu0 0.0
  %1335 = vmatprep.subr.mxu0 0.0
  %1336 = vmatpush1.msra.mxu0 0.0
  %1337 = vmatprep.subr.mxu0 0.0
  %1338 = vmatpush1.msra.mxu0 0.0
  %1339 = vmatprep.subr.mxu0 0.0
  %1340 = vmatpush1.msra.mxu0 0.0
  %1341 = vmatprep.subr.mxu0 0.0
  %1342 = vmatpush1.msra.mxu0 0.0
  %1343 = vmatprep.subr.mxu0 0.0
  %1344 = vmatpush1.msra.mxu0 0.0
  %1345 = vmatprep.subr.mxu0 0.0
  %1346 = vmatpush1.msra.mxu0 0.0
  %1347 = vmatprep.subr.mxu0 0.0
  %1348 = vmatpush1.msra.mxu0 0.0
  %1349 = vmatprep.subr.mxu0 0.0
  %1350 = vmatpush1.msra.mxu0 0.0
  %1351 = vmatprep.subr.mxu0 0.0
  %1352 = vmatpush1.msra.mxu0 0.0
  %1353 = vmatprep.subr.mxu0 0.0
  %1354 = vmatpush1.msra.mxu0 0.0
  %1355 = vmatprep.subr.mxu0 0.0
  %1356 = vmatpush1.msra.mxu0 0.0
  %1357 = vmatprep.subr.mxu0 0.0
  %1358 = vmatpush1.msra.mxu0 0.0
  %1359 = vmatprep.subr.mxu0 0.0
  %1360 = vmatpush1.msra.mxu0 0.0
  %1361 = vmatprep.subr.mxu0 0.0
  %1362 = vmatpush1.msra.mxu0 0.0
  %1363 = vmatprep.subr.mxu0 0.0
  %1364 = vmatpush1.msra.mxu0 0.0
  %1365 = vmatprep.subr.mxu0 0.0
  %1366 = vmatpush1.msra.mxu0 0.0
  %1367 = vmatprep.subr.mxu0 0.0
  %1368 = vmatpush1.msra.mxu0 0.0
  %1369 = vmatprep.subr.mxu0 0.0
  %1370 = vmatpush1.msra.mxu0 0.0
  %1371 = vmatprep.subr.mxu0 0.0
  %1372 = vmatpush1.msra.mxu0 0.0
  %1373 = vmatprep.subr.mxu0 0.0
  %1374 = vmatpush1.msra.mxu0 0.0
  %1375 = vmatprep.subr.mxu0 0.0
  %1376 = vmatpush1.msra.mxu0 0.0
  %1377 = vmatprep.subr.mxu0 0.0
  %1378 = vmatpush1.msra.mxu0 0.0
  %1379 = vmatprep.subr.mxu0 0.0
  %1380 = vmatpush1.msra.mxu0 0.0
  %1381 = vmatprep.mubr.f32.mxu0 0.0
  %1382 = vmatmul.mubr.f32.gmra.mrb[0].mxu0 %v1173
  %v1383 = vpop.f32.mrb[0].mxu0
  %v1384 = vadd.f32 0.0, %v1383
  %v1385 = vpop.f32.mrb[0].mxu0
  %v1386 = vadd.f32 0.0, %v1385
  %1387 = vdwg.mxu0
  %1388 = vmatprep.subr.mxu0 %v1162
  %1389 = vmatpush1.msra.mxu0 %v1161
  %1390 = vmatprep.subr.mxu0 %v1170
  %1391 = vmatpush1.msra.mxu0 %v1169
  %1392 = vmatprep.subr.mxu0 0.0
  %1393 = vmatpush1.msra.mxu0 0.0
  %1394 = vmatprep.subr.mxu0 0.0
  %1395 = vmatpush1.msra.mxu0 0.0
  %1396 = vmatprep.subr.mxu0 0.0
  %1397 = vmatpush1.msra.mxu0 0.0
  %1398 = vmatprep.subr.mxu0 0.0
  %1399 = vmatpush1.msra.mxu0 0.0
  %1400 = vmatprep.subr.mxu0 0.0
  %1401 = vmatpush1.msra.mxu0 0.0
  %1402 = vmatprep.subr.mxu0 0.0
  %1403 = vmatpush1.msra.mxu0 0.0
  %1404 = vmatprep.subr.mxu0 0.0
  %1405 = vmatpush1.msra.mxu0 0.0
  %1406 = vmatprep.subr.mxu0 0.0
  %1407 = vmatpush1.msra.mxu0 0.0
  %1408 = vmatprep.subr.mxu0 0.0
  %1409 = vmatpush1.msra.mxu0 0.0
  %1410 = vmatprep.subr.mxu0 0.0
  %1411 = vmatpush1.msra.mxu0 0.0
  %1412 = vmatprep.subr.mxu0 0.0
  %1413 = vmatpush1.msra.mxu0 0.0
  %1414 = vmatprep.subr.mxu0 0.0
  %1415 = vmatpush1.msra.mxu0 0.0
  %1416 = vmatprep.subr.mxu0 0.0
  %1417 = vmatpush1.msra.mxu0 0.0
  %1418 = vmatprep.subr.mxu0 0.0
  %1419 = vmatpush1.msra.mxu0 0.0
  %1420 = vmatprep.subr.mxu0 0.0
  %1421 = vmatpush1.msra.mxu0 0.0
  %1422 = vmatprep.subr.mxu0 0.0
  %1423 = vmatpush1.msra.mxu0 0.0
  %1424 = vmatprep.subr.mxu0 0.0
  %1425 = vmatpush1.msra.mxu0 0.0
  %1426 = vmatprep.subr.mxu0 0.0
  %1427 = vmatpush1.msra.mxu0 0.0
  %1428 = vmatprep.subr.mxu0 0.0
  %1429 = vmatpush1.msra.mxu0 0.0
  %1430 = vmatprep.subr.mxu0 0.0
  %1431 = vmatpush1.msra.mxu0 0.0
  %1432 = vmatprep.subr.mxu0 0.0
  %1433 = vmatpush1.msra.mxu0 0.0
  %1434 = vmatprep.subr.mxu0 0.0
  %1435 = vmatpush1.msra.mxu0 0.0
  %1436 = vmatprep.subr.mxu0 0.0
  %1437 = vmatpush1.msra.mxu0 0.0
  %1438 = vmatprep.subr.mxu0 0.0
  %1439 = vmatpush1.msra.mxu0 0.0
  %1440 = vmatprep.subr.mxu0 0.0
  %1441 = vmatpush1.msra.mxu0 0.0
  %1442 = vmatprep.subr.mxu0 0.0
  %1443 = vmatpush1.msra.mxu0 0.0
  %1444 = vmatprep.subr.mxu0 0.0
  %1445 = vmatpush1.msra.mxu0 0.0
  %1446 = vmatprep.subr.mxu0 0.0
  %1447 = vmatpush1.msra.mxu0 0.0
  %1448 = vmatprep.subr.mxu0 0.0
  %1449 = vmatpush1.msra.mxu0 0.0
  %1450 = vmatprep.subr.mxu0 0.0
  %1451 = vmatpush1.msra.mxu0 0.0
  %1452 = vmatprep.mubr.f32.mxu0 0.0
  %1453 = vmatmul.mubr.f32.gmra.mrb[0].mxu0 %v1173
  %v1454 = vpop.f32.mrb[0].mxu0
  %v1455 = vadd.f32 0.0, %v1454
  %v1456 = vpop.f32.mrb[0].mxu0
  %v1457 = vadd.f32 0.0, %v1456
  %1458 = vdwg.mxu0
  %v1460 = vsel %vm1171, %v1154, 0
  %1462 = vmatprep.subr.mxu0 %v1156
  %1463 = vmatpush1.msra.mxu0 %v1155
  %1464 = vmatprep.subr.mxu0 %v1164
  %1465 = vmatpush1.msra.mxu0 %v1163
  %1466 = vmatprep.subr.mxu0 0.0
  %1467 = vmatpush1.msra.mxu0 0.0
  %1468 = vmatprep.subr.mxu0 0.0
  %1469 = vmatpush1.msra.mxu0 0.0
  %1470 = vmatprep.subr.mxu0 0.0
  %1471 = vmatpush1.msra.mxu0 0.0
  %1472 = vmatprep.subr.mxu0 0.0
  %1473 = vmatpush1.msra.mxu0 0.0
  %1474 = vmatprep.subr.mxu0 0.0
  %1475 = vmatpush1.msra.mxu0 0.0
  %1476 = vmatprep.subr.mxu0 0.0
  %1477 = vmatpush1.msra.mxu0 0.0
  %1478 = vmatprep.subr.mxu0 0.0
  %1479 = vmatpush1.msra.mxu0 0.0
  %1480 = vmatprep.subr.mxu0 0.0
  %1481 = vmatpush1.msra.mxu0 0.0
  %1482 = vmatprep.subr.mxu0 0.0
  %1483 = vmatpush1.msra.mxu0 0.0
  %1484 = vmatprep.subr.mxu0 0.0
  %1485 = vmatpush1.msra.mxu0 0.0
  %1486 = vmatprep.subr.mxu0 0.0
  %1487 = vmatpush1.msra.mxu0 0.0
  %1488 = vmatprep.subr.mxu0 0.0
  %1489 = vmatpush1.msra.mxu0 0.0
  %1490 = vmatprep.subr.mxu0 0.0
  %1491 = vmatpush1.msra.mxu0 0.0
  %1492 = vmatprep.subr.mxu0 0.0
  %1493 = vmatpush1.msra.mxu0 0.0
  %1494 = vmatprep.subr.mxu0 0.0
  %1495 = vmatpush1.msra.mxu0 0.0
  %1496 = vmatprep.subr.mxu0 0.0
  %1497 = vmatpush1.msra.mxu0 0.0
  %1498 = vmatprep.subr.mxu0 0.0
  %1499 = vmatpush1.msra.mxu0 0.0
  %1500 = vmatprep.subr.mxu0 0.0
  %1501 = vmatpush1.msra.mxu0 0.0
  %1502 = vmatprep.subr.mxu0 0.0
  %1503 = vmatpush1.msra.mxu0 0.0
  %1504 = vmatprep.subr.mxu0 0.0
  %1505 = vmatpush1.msra.mxu0 0.0
  %1506 = vmatprep.subr.mxu0 0.0
  %1507 = vmatpush1.msra.mxu0 0.0
  %1508 = vmatprep.subr.mxu0 0.0
  %1509 = vmatpush1.msra.mxu0 0.0
  %1510 = vmatprep.subr.mxu0 0.0
  %1511 = vmatpush1.msra.mxu0 0.0
  %1512 = vmatprep.subr.mxu0 0.0
  %1513 = vmatpush1.msra.mxu0 0.0
  %1514 = vmatprep.subr.mxu0 0.0
  %1515 = vmatpush1.msra.mxu0 0.0
  %1516 = vmatprep.subr.mxu0 0.0
  %1517 = vmatpush1.msra.mxu0 0.0
  %1518 = vmatprep.subr.mxu0 0.0
  %1519 = vmatpush1.msra.mxu0 0.0
  %1520 = vmatprep.subr.mxu0 0.0
  %1521 = vmatpush1.msra.mxu0 0.0
  %1522 = vmatprep.subr.mxu0 0.0
  %1523 = vmatpush1.msra.mxu0 0.0
  %1524 = vmatprep.subr.mxu0 0.0
  %1525 = vmatpush1.msra.mxu0 0.0
  %1526 = vmatprep.mubr.f32.mxu0 0.0
  %1527 = vmatmul.mubr.f32.gmra.mrb[0].mxu0 %v1460
  %v1528 = vpop.f32.mrb[0].mxu0
  %v1529 = vadd.f32 0.0, %v1528
  %v1530 = vpop.f32.mrb[0].mxu0
  %v1531 = vadd.f32 0.0, %v1530
  %1532 = vdwg.mxu0
  %1533 = vmatprep.subr.mxu0 %v1158
  %1534 = vmatpush1.msra.mxu0 %v1157
  %1535 = vmatprep.subr.mxu0 %v1166
  %1536 = vmatpush1.msra.mxu0 %v1165
  %1537 = vmatprep.subr.mxu0 0.0
  %1538 = vmatpush1.msra.mxu0 0.0
  %1539 = vmatprep.subr.mxu0 0.0
  %1540 = vmatpush1.msra.mxu0 0.0
  %1541 = vmatprep.subr.mxu0 0.0
  %1542 = vmatpush1.msra.mxu0 0.0
  %1543 = vmatprep.subr.mxu0 0.0
  %1544 = vmatpush1.msra.mxu0 0.0
  %1545 = vmatprep.subr.mxu0 0.0
  %1546 = vmatpush1.msra.mxu0 0.0
  %1547 = vmatprep.subr.mxu0 0.0
  %1548 = vmatpush1.msra.mxu0 0.0
  %1549 = vmatprep.subr.mxu0 0.0
  %1550 = vmatpush1.msra.mxu0 0.0
  %1551 = vmatprep.subr.mxu0 0.0
  %1552 = vmatpush1.msra.mxu0 0.0
  %1553 = vmatprep.subr.mxu0 0.0
  %1554 = vmatpush1.msra.mxu0 0.0
  %1555 = vmatprep.subr.mxu0 0.0
  %1556 = vmatpush1.msra.mxu0 0.0
  %1557 = vmatprep.subr.mxu0 0.0
  %1558 = vmatpush1.msra.mxu0 0.0
  %1559 = vmatprep.subr.mxu0 0.0
  %1560 = vmatpush1.msra.mxu0 0.0
  %1561 = vmatprep.subr.mxu0 0.0
  %1562 = vmatpush1.msra.mxu0 0.0
  %1563 = vmatprep.subr.mxu0 0.0
  %1564 = vmatpush1.msra.mxu0 0.0
  %1565 = vmatprep.subr.mxu0 0.0
  %1566 = vmatpush1.msra.mxu0 0.0
  %1567 = vmatprep.subr.mxu0 0.0
  %1568 = vmatpush1.msra.mxu0 0.0
  %1569 = vmatprep.subr.mxu0 0.0
  %1570 = vmatpush1.msra.mxu0 0.0
  %1571 = vmatprep.subr.mxu0 0.0
  %1572 = vmatpush1.msra.mxu0 0.0
  %1573 = vmatprep.subr.mxu0 0.0
  %1574 = vmatpush1.msra.mxu0 0.0
  %1575 = vmatprep.subr.mxu0 0.0
  %1576 = vmatpush1.msra.mxu0 0.0
  %1577 = vmatprep.subr.mxu0 0.0
  %1578 = vmatpush1.msra.mxu0 0.0
  %1579 = vmatprep.subr.mxu0 0.0
  %1580 = vmatpush1.msra.mxu0 0.0
  %1581 = vmatprep.subr.mxu0 0.0
  %1582 = vmatpush1.msra.mxu0 0.0
  %1583 = vmatprep.subr.mxu0 0.0
  %1584 = vmatpush1.msra.mxu0 0.0
  %1585 = vmatprep.subr.mxu0 0.0
  %1586 = vmatpush1.msra.mxu0 0.0
  %1587 = vmatprep.subr.mxu0 0.0
  %1588 = vmatpush1.msra.mxu0 0.0
  %1589 = vmatprep.subr.mxu0 0.0
  %1590 = vmatpush1.msra.mxu0 0.0
  %1591 = vmatprep.subr.mxu0 0.0
  %1592 = vmatpush1.msra.mxu0 0.0
  %1593 = vmatprep.subr.mxu0 0.0
  %1594 = vmatpush1.msra.mxu0 0.0
  %1595 = vmatprep.subr.mxu0 0.0
  %1596 = vmatpush1.msra.mxu0 0.0
  %1597 = vmatprep.mubr.f32.mxu0 0.0
  %1598 = vmatmul.mubr.f32.gmra.mrb[0].mxu0 %v1460
  %v1599 = vpop.f32.mrb[0].mxu0
  %v1600 = vadd.f32 0.0, %v1599
  %v1601 = vpop.f32.mrb[0].mxu0
  %v1602 = vadd.f32 0.0, %v1601
  %1603 = vdwg.mxu0
  %1604 = vmatprep.subr.mxu0 %v1160
  %1605 = vmatpush1.msra.mxu0 %v1159
  %1606 = vmatprep.subr.mxu0 %v1168
  %1607 = vmatpush1.msra.mxu0 %v1167
  %1608 = vmatprep.subr.mxu0 0.0
  %1609 = vmatpush1.msra.mxu0 0.0
  %1610 = vmatprep.subr.mxu0 0.0
  %1611 = vmatpush1.msra.mxu0 0.0
  %1612 = vmatprep.subr.mxu0 0.0
  %1613 = vmatpush1.msra.mxu0 0.0
  %1614 = vmatprep.subr.mxu0 0.0
  %1615 = vmatpush1.msra.mxu0 0.0
  %1616 = vmatprep.subr.mxu0 0.0
  %1617 = vmatpush1.msra.mxu0 0.0
  %1618 = vmatprep.subr.mxu0 0.0
  %1619 = vmatpush1.msra.mxu0 0.0
  %1620 = vmatprep.subr.mxu0 0.0
  %1621 = vmatpush1.msra.mxu0 0.0
  %1622 = vmatprep.subr.mxu0 0.0
  %1623 = vmatpush1.msra.mxu0 0.0
  %1624 = vmatprep.subr.mxu0 0.0
  %1625 = vmatpush1.msra.mxu0 0.0
  %1626 = vmatprep.subr.mxu0 0.0
  %1627 = vmatpush1.msra.mxu0 0.0
  %1628 = vmatprep.subr.mxu0 0.0
  %1629 = vmatpush1.msra.mxu0 0.0
  %1630 = vmatprep.subr.mxu0 0.0
  %1631 = vmatpush1.msra.mxu0 0.0
  %1632 = vmatprep.subr.mxu0 0.0
  %1633 = vmatpush1.msra.mxu0 0.0
  %1634 = vmatprep.subr.mxu0 0.0
  %1635 = vmatpush1.msra.mxu0 0.0
  %1636 = vmatprep.subr.mxu0 0.0
  %1637 = vmatpush1.msra.mxu0 0.0
  %1638 = vmatprep.subr.mxu0 0.0
  %1639 = vmatpush1.msra.mxu0 0.0
  %1640 = vmatprep.subr.mxu0 0.0
  %1641 = vmatpush1.msra.mxu0 0.0
  %1642 = vmatprep.subr.mxu0 0.0
  %1643 = vmatpush1.msra.mxu0 0.0
  %1644 = vmatprep.subr.mxu0 0.0
  %1645 = vmatpush1.msra.mxu0 0.0
  %1646 = vmatprep.subr.mxu0 0.0
  %1647 = vmatpush1.msra.mxu0 0.0
  %1648 = vmatprep.subr.mxu0 0.0
  %1649 = vmatpush1.msra.mxu0 0.0
  %1650 = vmatprep.subr.mxu0 0.0
  %1651 = vmatpush1.msra.mxu0 0.0
  %1652 = vmatprep.subr.mxu0 0.0
  %1653 = vmatpush1.msra.mxu0 0.0
  %1654 = vmatprep.subr.mxu0 0.0
  %1655 = vmatpush1.msra.mxu0 0.0
  %1656 = vmatprep.subr.mxu0 0.0
  %1657 = vmatpush1.msra.mxu0 0.0
  %1658 = vmatprep.subr.mxu0 0.0
  %1659 = vmatpush1.msra.mxu0 0.0
  %1660 = vmatprep.subr.mxu0 0.0
  %1661 = vmatpush1.msra.mxu0 0.0
  %1662 = vmatprep.subr.mxu0 0.0
  %1663 = vmatpush1.msra.mxu0 0.0
  %1664 = vmatprep.subr.mxu0 0.0
  %1665 = vmatpush1.msra.mxu0 0.0
  %1666 = vmatprep.subr.mxu0 0.0
  %1667 = vmatpush1.msra.mxu0 0.0
  %1668 = vmatprep.mubr.f32.mxu0 0.0
  %1669 = vmatmul.mubr.f32.gmra.mrb[0].mxu0 %v1460
  %v1670 = vpop.f32.mrb[0].mxu0
  %v1671 = vadd.f32 0.0, %v1670
  %v1672 = vpop.f32.mrb[0].mxu0
  %v1673 = vadd.f32 0.0, %v1672
  %1674 = vdwg.mxu0
  %1675 = vmatprep.subr.mxu0 %v1162
  %1676 = vmatpush1.msra.mxu0 %v1161
  %1677 = vmatprep.subr.mxu0 %v1170
  %1678 = vmatpush1.msra.mxu0 %v1169
  %1679 = vmatprep.subr.mxu0 0.0
  %1680 = vmatpush1.msra.mxu0 0.0
  %1681 = vmatprep.subr.mxu0 0.0
  %1682 = vmatpush1.msra.mxu0 0.0
  %1683 = vmatprep.subr.mxu0 0.0
  %1684 = vmatpush1.msra.mxu0 0.0
  %1685 = vmatprep.subr.mxu0 0.0
  %1686 = vmatpush1.msra.mxu0 0.0
  %1687 = vmatprep.subr.mxu0 0.0
  %1688 = vmatpush1.msra.mxu0 0.0
  %1689 = vmatprep.subr.mxu0 0.0
  %1690 = vmatpush1.msra.mxu0 0.0
  %1691 = vmatprep.subr.mxu0 0.0
  %1692 = vmatpush1.msra.mxu0 0.0
  %1693 = vmatprep.subr.mxu0 0.0
  %1694 = vmatpush1.msra.mxu0 0.0
  %1695 = vmatprep.subr.mxu0 0.0
  %1696 = vmatpush1.msra.mxu0 0.0
  %1697 = vmatprep.subr.mxu0 0.0
  %1698 = vmatpush1.msra.mxu0 0.0
  %1699 = vmatprep.subr.mxu0 0.0
  %1700 = vmatpush1.msra.mxu0 0.0
  %1701 = vmatprep.subr.mxu0 0.0
  %1702 = vmatpush1.msra.mxu0 0.0
  %1703 = vmatprep.subr.mxu0 0.0
  %1704 = vmatpush1.msra.mxu0 0.0
  %1705 = vmatprep.subr.mxu0 0.0
  %1706 = vmatpush1.msra.mxu0 0.0
  %1707 = vmatprep.subr.mxu0 0.0
  %1708 = vmatpush1.msra.mxu0 0.0
  %1709 = vmatprep.subr.mxu0 0.0
  %1710 = vmatpush1.msra.mxu0 0.0
  %1711 = vmatprep.subr.mxu0 0.0
  %1712 = vmatpush1.msra.mxu0 0.0
  %1713 = vmatprep.subr.mxu0 0.0
  %1714 = vmatpush1.msra.mxu0 0.0
  %1715 = vmatprep.subr.mxu0 0.0
  %1716 = vmatpush1.msra.mxu0 0.0
  %1717 = vmatprep.subr.mxu0 0.0
  %1718 = vmatpush1.msra.mxu0 0.0
  %1719 = vmatprep.subr.mxu0 0.0
  %1720 = vmatpush1.msra.mxu0 0.0
  %1721 = vmatprep.subr.mxu0 0.0
  %1722 = vmatpush1.msra.mxu0 0.0
  %1723 = vmatprep.subr.mxu0 0.0
  %1724 = vmatpush1.msra.mxu0 0.0
  %1725 = vmatprep.subr.mxu0 0.0
  %1726 = vmatpush1.msra.mxu0 0.0
  %1727 = vmatprep.subr.mxu0 0.0
  %1728 = vmatpush1.msra.mxu0 0.0
  %1729 = vmatprep.subr.mxu0 0.0
  %1730 = vmatpush1.msra.mxu0 0.0
  %1731 = vmatprep.subr.mxu0 0.0
  %1732 = vmatpush1.msra.mxu0 0.0
  %1733 = vmatprep.subr.mxu0 0.0
  %1734 = vmatpush1.msra.mxu0 0.0
  %1735 = vmatprep.subr.mxu0 0.0
  %1736 = vmatpush1.msra.mxu0 0.0
  %1737 = vmatprep.subr.mxu0 0.0
  %1738 = vmatpush1.msra.mxu0 0.0
  %1739 = vmatprep.mubr.f32.mxu0 0.0
  %1740 = vmatmul.mubr.f32.gmra.mrb[0].mxu0 %v1460
  %v1741 = vpop.f32.mrb[0].mxu0
  %v1742 = vadd.f32 0.0, %v1741
  %v1743 = vpop.f32.mrb[0].mxu0
  %v1744 = vadd.f32 0.0, %v1743
  %1745 = vdwg.mxu0
  %v1746 = vlaneseq
  %v1747 = vshrl.u32 %v1746, 7
  %v1748 = vsub.s32 0, %v1747
  %v1749 = vrot.slane %v1242, %v1748
  %v1750 = vlaneseq
  %v1751 = vshrl.u32 %v1750, 7
  %v1752 = vsub.s32 0, %v1751
  %v1753 = vrot.slane %v1244, %v1752
  %v1754 = vlaneseq
  %v1755 = vshrl.u32 %v1754, 7
  %v1756 = vsub.s32 0, %v1755
  %v1757 = vrot.slane %v1313, %v1756
  %v1758 = vlaneseq
  %v1759 = vshrl.u32 %v1758, 7
  %v1760 = vsub.s32 0, %v1759
  %v1761 = vrot.slane %v1315, %v1760
  %v1762 = vlaneseq
  %v1763 = vshrl.u32 %v1762, 7
  %v1764 = vsub.s32 0, %v1763
  %v1765 = vrot.slane %v1384, %v1764
  %v1766 = vlaneseq
  %v1767 = vshrl.u32 %v1766, 7
  %v1768 = vsub.s32 0, %v1767
  %v1769 = vrot.slane %v1386, %v1768
  %v1770 = vlaneseq
  %v1771 = vshrl.u32 %v1770, 7
  %v1772 = vsub.s32 0, %v1771
  %v1773 = vrot.slane %v1455, %v1772
  %v1774 = vlaneseq
  %v1775 = vshrl.u32 %v1774, 7
  %v1776 = vsub.s32 0, %v1775
  %v1777 = vrot.slane %v1457, %v1776
  %v1778 = vmul.f32 %v205, %v1749
  %v1779 = vmul.f32 %v207, %v1753
  %v1780 = vmul.f32 %v246, %v1757
  %v1781 = vmul.f32 %v248, %v1761
  %v1782 = vmul.f32 %v287, %v1765
  %v1783 = vmul.f32 %v289, %v1769
  %v1784 = vmul.f32 %v328, %v1773
  %v1785 = vmul.f32 %v330, %v1777
  %v1786 = vlaneseq
  %v1787 = vshrl.u32 %v1786, 7
  %v1788 = vsub.s32 0, %v1787
  %v1789 = vrot.slane %v1529, %v1788
  %v1790 = vlaneseq
  %v1791 = vshrl.u32 %v1790, 7
  %v1792 = vsub.s32 0, %v1791
  %v1793 = vrot.slane %v1531, %v1792
  %v1794 = vlaneseq
  %v1795 = vshrl.u32 %v1794, 7
  %v1796 = vsub.s32 0, %v1795
  %v1797 = vrot.slane %v1600, %v1796
  %v1798 = vlaneseq
  %v1799 = vshrl.u32 %v1798, 7
  %v1800 = vsub.s32 0, %v1799
  %v1801 = vrot.slane %v1602, %v1800
  %v1802 = vlaneseq
  %v1803 = vshrl.u32 %v1802, 7
  %v1804 = vsub.s32 0, %v1803
  %v1805 = vrot.slane %v1671, %v1804
  %v1806 = vlaneseq
  %v1807 = vshrl.u32 %v1806, 7
  %v1808 = vsub.s32 0, %v1807
  %v1809 = vrot.slane %v1673, %v1808
  %v1810 = vlaneseq
  %v1811 = vshrl.u32 %v1810, 7
  %v1812 = vsub.s32 0, %v1811
  %v1813 = vrot.slane %v1742, %v1812
  %v1814 = vlaneseq
  %v1815 = vshrl.u32 %v1814, 7
  %v1816 = vsub.s32 0, %v1815
  %v1817 = vrot.slane %v1744, %v1816
  %v1818 = vadd.f32 %v1778, %v1789
  %v1819 = vadd.f32 %v1779, %v1793
  %v1820 = vadd.f32 %v1780, %v1797
  %v1821 = vadd.f32 %v1781, %v1801
  %v1822 = vadd.f32 %v1782, %v1805
  %v1823 = vadd.f32 %v1783, %v1809
  %v1824 = vadd.f32 %v1784, %v1813
  %v1825 = vadd.f32 %v1785, %v1817
  %v1826 = vmax.f32 %v1818, 0.0
  %v1827 = vmax.f32 %v1819, 0.0
  %v1828 = vmax.f32 %v1820, 0.0
  %v1829 = vmax.f32 %v1821, 0.0
  %v1830 = vmax.f32 %v1822, 0.0
  %v1831 = vmax.f32 %v1823, 0.0
  %v1832 = vmax.f32 %v1824, 0.0
  %v1833 = vmax.f32 %v1825, 0.0
  %v1834 = vpack.c.bf16 %v1826, %v1826
  %v1835 = vpack.c.bf16 %v1827, %v1827
  %v1836 = vpack.c.bf16 %v1828, %v1828
  %v1837 = vpack.c.bf16 %v1829, %v1829
  %v1838 = vpack.c.bf16 %v1830, %v1830
  %v1839 = vpack.c.bf16 %v1831, %v1831
  %v1840 = vpack.c.bf16 %v1832, %v1832
  %v1841 = vpack.c.bf16 %v1833, %v1833
  %v1850 = vcombine.low %v1834, %v1835
  %v1851 = vcombine.low %v1836, %v1837
  %v1852 = vcombine.low %v1838, %v1839
  %v1853 = vcombine.low %v1840, %v1841
  %v1855 = vunpack.c.l.s4 1966171168
  %v1856 = vunpack.c.0.s8 %v1855
  %v1857 = vlaneseq
  %v1858 = vshrl.u32 %v1857, 7
  %v1859 = vsub.s32 %v1856, %v1858
  %v1860 = vrot.slane %v1850, %v1859
  %v1862 = vunpack.c.l.s4 1966171168
  %v1863 = vunpack.c.0.s8 %v1862
  %v1864 = vlaneseq
  %v1865 = vshrl.u32 %v1864, 7
  %v1866 = vsub.s32 %v1863, %v1865
  %v1867 = vrot.slane %v1851, %v1866
  %v1869 = vunpack.c.l.s4 1966171168
  %v1870 = vunpack.c.0.s8 %v1869
  %v1871 = vlaneseq
  %v1872 = vshrl.u32 %v1871, 7
  %v1873 = vsub.s32 %v1870, %v1872
  %v1874 = vrot.slane %v1852, %v1873
  %v1876 = vunpack.c.l.s4 1966171168
  %v1877 = vunpack.c.0.s8 %v1876
  %v1878 = vlaneseq
  %v1879 = vshrl.u32 %v1878, 7
  %v1880 = vsub.s32 %v1877, %v1879
  %v1881 = vrot.slane %v1853, %v1880
  %v1882 = vcombine.low %v1860, %v1867
  %v1883 = vcombine.low %v1874, %v1881
  %v1885 = vunpack.c.l.s4 1966171168
  %v1886 = vunpack.c.0.s8 %v1885
  %v1887 = vlaneseq
  %v1888 = vshrl.u32 %v1887, 7
  %v1889 = vsub.s32 %v1886, %v1888
  %v1890 = vrot.slane %v1882, %v1889
  %v1892 = vunpack.c.l.s4 1966171168
  %v1893 = vunpack.c.0.s8 %v1892
  %v1894 = vlaneseq
  %v1895 = vshrl.u32 %v1894, 7
  %v1896 = vsub.s32 %v1893, %v1895
  %v1897 = vrot.slane %v1883, %v1896
  %v1898 = vcombine.low %v1890, %v1897
  %1900 = vst [vmem:[%s7] sm:$0xff] %v1898
  // Predicated region
  $region30: #{_lambda_.3} parent=0 // pred_check
    _
  $region31: #{_lambda_.3} parent=0 // pred_check_branch
    %1902 = sbr.rel (0) target = $region33
  $region32: #{_lambda_.3} parent=0 // pred_region
    _
  $region33: #{_lambda_.3} parent=0 // pred_fallthru
    _
  // Predicated region
  $region34: #{_lambda_.3} parent=0 // pred_check
    _
  $region35: #{_lambda_.3} parent=0 // pred_check_branch
    %1904 = sbr.rel (0) target = $region37
  $region36: #{_lambda_.3} parent=0 // pred_region
    _
  $region37: #{_lambda_.3} parent=0 // pred_fallthru
    _

// kernel: _lambda_.4
$region0: #{_lambda_.4}
  #allocation0 [shape = 'u32[]', space=smem, size = 0x4, offset = 0x4, fixed_abs, tag = 'smem constant byte address 0x4 - core index']
  #allocation1 [shape = 'u32[144,128]{1,0:T(1,128)}', space=vmem, size = 0x12000, scoped, tag = 'internal scratch']
  %s0 = inlined_call_operand.vmem [shape: bf16[64,432], index: 0, kind: input, shape index: {}]
  %s1 = inlined_call_operand.vmem [shape: bf16[432,128], index: 1, kind: input, shape index: {}]
  %s2 = inlined_call_operand.vmem [shape: f32[64,1], index: 2, kind: input, shape index: {}]
  %s3 = inlined_call_operand.vmem [shape: f32[8,1], index: 3, kind: input, shape index: {}]
  %s4 = inlined_call_operand.vmem [shape: f32[8,1], index: 4, kind: input, shape index: {}]
  %s5 = inlined_call_operand.vmem [shape: f32[8,64], index: 5, kind: input, shape index: {}]
  %s6 = inlined_call_operand.vmem [shape: f32[64,8], index: 6, kind: input, shape index: {}]
  %s7 = inlined_call_operand.vmem [shape: bf16[64,128], index: 7, kind: output, shape index: {}]
  %s8 = sld [smem:[#allocation0]]
  $region38: #{_lambda_.4} parent=0
    _
  %s10 = ssub.s32 1, %s8
  %s11 = scalar_select 0, %s10, %s8
  // Predicated region
  $region2: #{_lambda_.4} parent=0 // pred_check
    _
  $region3: #{_lambda_.4} parent=0 // pred_check_branch
    %13 = sbr.rel (0) target = $region5
  $region4: #{_lambda_.4} parent=0 // pred_region
    _
  $region5: #{_lambda_.4} parent=0 // pred_fallthru
    _
  // Predicated region
  $region6: #{_lambda_.4} parent=0 // pred_check
    _
  $region7: #{_lambda_.4} parent=0 // pred_check_branch
    %15 = sbr.rel (0) target = $region9
  $region8: #{_lambda_.4} parent=0 // pred_region
    _
  $region9: #{_lambda_.4} parent=0 // pred_fallthru
    _
  // Predicated region
  $region10: #{_lambda_.4} parent=0 // pred_check
    _
  $region11: #{_lambda_.4} parent=0 // pred_check_branch
    %17 = sbr.rel (0) target = $region13
  $region12: #{_lambda_.4} parent=0 // pred_region
    _
  $region13: #{_lambda_.4} parent=0 // pred_fallthru
    _
  // Predicated region
  $region14: #{_lambda_.4} parent=0 // pred_check
    _
  $region15: #{_lambda_.4} parent=0 // pred_check_branch
    %19 = sbr.rel (0) target = $region17
  $region16: #{_lambda_.4} parent=0 // pred_region
    _
  $region17: #{_lambda_.4} parent=0 // pred_fallthru
    _
  // Predicated region
  $region18: #{_lambda_.4} parent=0 // pred_check
    _
  $region19: #{_lambda_.4} parent=0 // pred_check_branch
    %21 = sbr.rel (0) target = $region21
  $region20: #{_lambda_.4} parent=0 // pred_region
    _
  $region21: #{_lambda_.4} parent=0 // pred_fallthru
    _
  // Predicated region
  $region22: #{_lambda_.4} parent=0 // pred_check
    _
  $region23: #{_lambda_.4} parent=0 // pred_check_branch
    %23 = sbr.rel (0) target = $region25
  $region24: #{_lambda_.4} parent=0 // pred_region
    _
  $region25: #{_lambda_.4} parent=0 // pred_fallthru
    _
  // Predicated region
  $region26: #{_lambda_.4} parent=0 // pred_check
    _
  $region27: #{_lambda_.4} parent=0 // pred_check_branch
    %25 = sbr.rel (0) target = $region29
  $region28: #{_lambda_.4} parent=0 // pred_region
    _
  $region29: #{_lambda_.4} parent=0 // pred_fallthru
    _
  %v27 = vld [vmem:[%s0] sm:$0xff]
  %v28 = vld [vmem:[%s0 + $0x8] sm:$0xff]
  %v29 = vld [vmem:[%s0 + $0x10] sm:$0xff]
  %v30 = vld [vmem:[%s0 + $0x18] sm:$0xff]
  %v31 = vld [vmem:[%s0 + $0x20] sm:$0xff]
  %v32 = vld [vmem:[%s0 + $0x28] sm:$0xff]
  %v33 = vld [vmem:[%s0 + $0x30] sm:$0xff]
  %v34 = vld [vmem:[%s0 + $0x38] sm:$0xff]
  %v35 = vld [vmem:[%s0 + $0x40] sm:$0xff]
  %v36 = vld [vmem:[%s0 + $0x48] sm:$0xff]
  %v37 = vld [vmem:[%s0 + $0x50] sm:$0xff]
  %v38 = vld [vmem:[%s0 + $0x58] sm:$0xff]
  %v39 = vld [vmem:[%s0 + $0x60] sm:$0xff]
  %v40 = vld [vmem:[%s0 + $0x68] sm:$0xff]
  %v41 = vld [vmem:[%s0 + $0x70] sm:$0xff]
  %v42 = vld [vmem:[%s0 + $0x78] sm:$0xff]
  %v43 = vld [vmem:[%s1] sm:$0xf]
  %v44 = vld [vmem:[%s1 + $0x4] sm:$0xf]
  %v45 = vld [vmem:[%s1 + $0x8] sm:$0xf]
  %v46 = vld [vmem:[%s1 + $0xc] sm:$0xf]
  %v47 = vld [vmem:[%s1 + $0x10] sm:$0xf]
  %v48 = vld [vmem:[%s1 + $0x14] sm:$0xf]
  %v49 = vld [vmem:[%s1 + $0x18] sm:$0xf]
  %v50 = vld [vmem:[%s1 + $0x1c] sm:$0xf]
  %v51 = vld [vmem:[%s1 + $0x20] sm:$0xf]
  %v52 = vld [vmem:[%s1 + $0x24] sm:$0xf]
  %v53 = vld [vmem:[%s1 + $0x28] sm:$0xf]
  %v54 = vld [vmem:[%s1 + $0x2c] sm:$0xf]
  %v55 = vld [vmem:[%s1 + $0x30] sm:$0xf]
  %v56 = vld [vmem:[%s1 + $0x34] sm:$0xf]
  %v57 = vld [vmem:[%s1 + $0x38] sm:$0xf]
  %v58 = vld [vmem:[%s1 + $0x3c] sm:$0xf]
  %v59 = vld [vmem:[%s1 + $0x40] sm:$0xf]
  %v60 = vld [vmem:[%s1 + $0x44] sm:$0xf]
  %v61 = vld [vmem:[%s1 + $0x48] sm:$0xf]
  %v62 = vld [vmem:[%s1 + $0x4c] sm:$0xf]
  %v63 = vld [vmem:[%s1 + $0x50] sm:$0xf]
  %v64 = vld [vmem:[%s1 + $0x54] sm:$0xf]
  %v65 = vld [vmem:[%s1 + $0x58] sm:$0xf]
  %v66 = vld [vmem:[%s1 + $0x5c] sm:$0xf]
  %v67 = vld [vmem:[%s1 + $0x60] sm:$0xf]
  %v68 = vld [vmem:[%s1 + $0x64] sm:$0xf]
  %v69 = vld [vmem:[%s1 + $0x68] sm:$0xf]
  %v70 = vld [vmem:[%s1 + $0x6c] sm:$0xf]
  %v71 = vld [vmem:[%s1 + $0x70] sm:$0xf]
  %v72 = vld [vmem:[%s1 + $0x74] sm:$0xf]
  %v73 = vld [vmem:[%s1 + $0x78] sm:$0xf]
  %v74 = vld [vmem:[%s1 + $0x7c] sm:$0xf]
  %v75 = vld [vmem:[%s1 + $0x80] sm:$0xf]
  %v76 = vld [vmem:[%s1 + $0x84] sm:$0xf]
  %v77 = vld [vmem:[%s1 + $0x88] sm:$0xf]
  %v78 = vld [vmem:[%s1 + $0x8c] sm:$0xf]
  %v79 = vld [vmem:[%s1 + $0x90] sm:$0xf]
  %v80 = vld [vmem:[%s1 + $0x94] sm:$0xf]
  %v81 = vld [vmem:[%s1 + $0x98] sm:$0xf]
  %v82 = vld [vmem:[%s1 + $0x9c] sm:$0xf]
  %v83 = vld [vmem:[%s1 + $0xa0] sm:$0xf]
  %v84 = vld [vmem:[%s1 + $0xa4] sm:$0xf]
  %v85 = vld [vmem:[%s1 + $0xa8] sm:$0xf]
  %v86 = vld [vmem:[%s1 + $0xac] sm:$0xf]
  %v87 = vld [vmem:[%s1 + $0xb0] sm:$0xf]
  %v88 = vld [vmem:[%s1 + $0xb4] sm:$0xf]
  %v89 = vld [vmem:[%s1 + $0xb8] sm:$0xf]
  %v90 = vld [vmem:[%s1 + $0xbc] sm:$0xf]
  %v91 = vld [vmem:[%s1 + $0xc0] sm:$0xf]
  %v92 = vld [vmem:[%s1 + $0xc4] sm:$0xf]
  %v93 = vld [vmem:[%s1 + $0xc8] sm:$0xf]
  %v94 = vld [vmem:[%s1 + $0xcc] sm:$0xf]
  %v95 = vld [vmem:[%s1 + $0xd0] sm:$0xf]
  %v96 = vld [vmem:[%s1 + $0xd4] sm:$0xf]
  %v97 = vld [vmem:[%s2] sm:$0xff]
  %v98 = vld [vmem:[%s2 + $0x8] sm:$0xff]
  %v99 = vld [vmem:[%s2 + $0x10] sm:$0xff]
  %v100 = vld [vmem:[%s2 + $0x18] sm:$0xff]
  %v101 = vld [vmem:[%s2 + $0x20] sm:$0xff]
  %v102 = vld [vmem:[%s2 + $0x28] sm:$0xff]
  %v103 = vld [vmem:[%s2 + $0x30] sm:$0xff]
  %v104 = vld [vmem:[%s2 + $0x38] sm:$0xff]
  %106 = vset.pattern.permute.xlu0 0
  %107 = vperm.xlu0 %106, %v97
  %v108 = vpop.permute.xlu0 %107
  %111 = vset.pattern.permute.xlu0 0
  %112 = vperm.xlu0 %111, %v98
  %v113 = vpop.permute.xlu0 %112
  %116 = vset.pattern.permute.xlu0 0
  %117 = vperm.xlu0 %116, %v99
  %v118 = vpop.permute.xlu0 %117
  %121 = vset.pattern.permute.xlu0 0
  %122 = vperm.xlu0 %121, %v100
  %v123 = vpop.permute.xlu0 %122
  %126 = vset.pattern.permute.xlu0 0
  %127 = vperm.xlu0 %126, %v101
  %v128 = vpop.permute.xlu0 %127
  %131 = vset.pattern.permute.xlu0 0
  %132 = vperm.xlu0 %131, %v102
  %v133 = vpop.permute.xlu0 %132
  %136 = vset.pattern.permute.xlu0 0
  %137 = vperm.xlu0 %136, %v103
  %v138 = vpop.permute.xlu0 %137
  %141 = vset.pattern.permute.xlu0 0
  %142 = vperm.xlu0 %141, %v104
  %v143 = vpop.permute.xlu0 %142
  %v161 = vunpack.c.l.b16 %v27
  %v162 = vunpack.c.h.b16 %v27
  %v163 = vunpack.c.l.b16 %v28
  %v164 = vunpack.c.h.b16 %v28
  %v165 = vunpack.c.l.b16 %v29
  %v166 = vunpack.c.h.b16 %v29
  %v167 = vunpack.c.l.b16 %v30
  %v168 = vunpack.c.h.b16 %v30
  %v169 = vunpack.c.l.b16 %v31
  %v170 = vunpack.c.h.b16 %v31
  %v171 = vunpack.c.l.b16 %v32
  %v172 = vunpack.c.h.b16 %v32
  %v173 = vunpack.c.l.b16 %v33
  %v174 = vunpack.c.h.b16 %v33
  %v175 = vunpack.c.l.b16 %v34
  %v176 = vunpack.c.h.b16 %v34
  %v177 = vunpack.c.l.b16 %v35
  %v178 = vunpack.c.h.b16 %v35
  %v179 = vunpack.c.l.b16 %v36
  %v180 = vunpack.c.h.b16 %v36
  %v181 = vunpack.c.l.b16 %v37
  %v182 = vunpack.c.h.b16 %v37
  %v183 = vunpack.c.l.b16 %v38
  %v184 = vunpack.c.h.b16 %v38
  %v185 = vunpack.c.l.b16 %v39
  %v186 = vunpack.c.h.b16 %v39
  %v187 = vunpack.c.l.b16 %v40
  %v188 = vunpack.c.h.b16 %v40
  %v189 = vunpack.c.l.b16 %v41
  %v190 = vunpack.c.h.b16 %v41
  %v191 = vunpack.c.l.b16 %v42
  %v192 = vunpack.c.h.b16 %v42
  %v193 = vpack.c.b16 %v165, %v161
  %v194 = vpack.c.b16 %v166, %v162
  %v195 = vpack.c.b16 %v167, %v163
  %v196 = vpack.c.b16 %v168, %v164
  %v197 = vpack.c.b16 %v173, %v169
  %v198 = vpack.c.b16 %v174, %v170
  %v199 = vpack.c.b16 %v175, %v171
  %v200 = vpack.c.b16 %v176, %v172
  %v201 = vpack.c.b16 %v181, %v177
  %v202 = vpack.c.b16 %v182, %v178
  %v203 = vpack.c.b16 %v183, %v179
  %v204 = vpack.c.b16 %v184, %v180
  %v205 = vpack.c.b16 %v189, %v185
  %v206 = vpack.c.b16 %v190, %v186
  %v207 = vpack.c.b16 %v191, %v187
  %v208 = vpack.c.b16 %v192, %v188
  %v275 = vunpack.c.l.b16 %v43
  %v276 = vunpack.c.l.b16 %v44
  %v277 = vunpack.c.l.b16 %v45
  %v278 = vunpack.c.l.b16 %v46
  %v279 = vunpack.c.l.b16 %v47
  %v280 = vunpack.c.l.b16 %v48
  %v281 = vunpack.c.l.b16 %v49
  %v282 = vunpack.c.l.b16 %v50
  %v283 = vunpack.c.l.b16 %v51
  %v284 = vunpack.c.l.b16 %v52
  %v285 = vunpack.c.l.b16 %v53
  %v286 = vunpack.c.l.b16 %v54
  %v287 = vunpack.c.l.b16 %v55
  %v288 = vunpack.c.l.b16 %v56
  %v289 = vunpack.c.l.b16 %v57
  %v290 = vunpack.c.l.b16 %v58
  %v291 = vunpack.c.l.b16 %v59
  %v292 = vunpack.c.l.b16 %v60
  %v293 = vunpack.c.l.b16 %v61
  %v294 = vunpack.c.l.b16 %v62
  %v295 = vunpack.c.l.b16 %v63
  %v296 = vunpack.c.l.b16 %v64
  %v297 = vunpack.c.l.b16 %v65
  %v298 = vunpack.c.l.b16 %v66
  %v299 = vunpack.c.l.b16 %v67
  %v300 = vunpack.c.l.b16 %v68
  %v301 = vunpack.c.l.b16 %v69
  %v302 = vunpack.c.l.b16 %v70
  %v303 = vunpack.c.l.b16 %v71
  %v304 = vunpack.c.l.b16 %v72
  %v305 = vunpack.c.l.b16 %v73
  %v306 = vunpack.c.l.b16 %v74
  %v307 = vunpack.c.l.b16 %v75
  %v308 = vunpack.c.l.b16 %v76
  %v309 = vunpack.c.l.b16 %v77
  %v310 = vunpack.c.l.b16 %v78
  %v311 = vunpack.c.l.b16 %v79
  %v312 = vunpack.c.l.b16 %v80
  %v313 = vunpack.c.l.b16 %v81
  %v314 = vunpack.c.l.b16 %v82
  %v315 = vunpack.c.l.b16 %v83
  %v316 = vunpack.c.l.b16 %v84
  %v317 = vunpack.c.l.b16 %v85
  %v318 = vunpack.c.l.b16 %v86
  %v319 = vunpack.c.l.b16 %v87
  %v320 = vunpack.c.l.b16 %v88
  %v321 = vunpack.c.l.b16 %v89
  %v322 = vunpack.c.l.b16 %v90
  %v323 = vunpack.c.l.b16 %v91
  %v324 = vunpack.c.l.b16 %v92
  %v325 = vunpack.c.l.b16 %v93
  %v326 = vunpack.c.l.b16 %v94
  %v327 = vunpack.c.l.b16 %v95
  %v328 = vunpack.c.l.b16 %v96
  %v329 = vpack.c.b16 %v276, %v275
  %v330 = vpack.c.b16 %v278, %v277
  %v331 = vpack.c.b16 %v280, %v279
  %v332 = vpack.c.b16 %v282, %v281
  %v333 = vpack.c.b16 %v284, %v283
  %v334 = vpack.c.b16 %v286, %v285
  %v335 = vpack.c.b16 %v288, %v287
  %v336 = vpack.c.b16 %v290, %v289
  %v337 = vpack.c.b16 %v292, %v291
  %v338 = vpack.c.b16 %v294, %v293
  %v339 = vpack.c.b16 %v296, %v295
  %v340 = vpack.c.b16 %v298, %v297
  %v341 = vpack.c.b16 %v300, %v299
  %v342 = vpack.c.b16 %v302, %v301
  %v343 = vpack.c.b16 %v304, %v303
  %v344 = vpack.c.b16 %v306, %v305
  %v345 = vpack.c.b16 %v308, %v307
  %v346 = vpack.c.b16 %v310, %v309
  %v347 = vpack.c.b16 %v312, %v311
  %v348 = vpack.c.b16 %v314, %v313
  %v349 = vpack.c.b16 %v316, %v315
  %v350 = vpack.c.b16 %v318, %v317
  %v351 = vpack.c.b16 %v320, %v319
  %v352 = vpack.c.b16 %v322, %v321
  %v353 = vpack.c.b16 %v324, %v323
  %v354 = vpack.c.b16 %v326, %v325
  %v355 = vpack.c.b16 %v328, %v327
  %vm383 = vcmask 392192
  %v385 = vsel %vm383, %v196, 0
  %v388 = vsel %vm383, %v200, 0
  %v391 = vsel %vm383, %v204, 0
  %v394 = vsel %vm383, %v208, 0
  %396 = vmatprep.subr.bf16.mxu0 0
  %397 = vmatpush1.bf16.msra.mxu0 %v329
  %398 = vmatprep.subr.bf16.mxu0 0
  %399 = vmatpush1.bf16.msra.mxu0 %v330
  %400 = vmatprep.subr.bf16.mxu0 0
  %401 = vmatpush1.bf16.msra.mxu0 %v331
  %402 = vmatprep.subr.bf16.mxu0 0
  %403 = vmatpush1.bf16.msra.mxu0 %v332
  %404 = vmatprep.subr.bf16.mxu0 0
  %405 = vmatpush1.bf16.msra.mxu0 %v333
  %406 = vmatprep.subr.bf16.mxu0 0
  %407 = vmatpush1.bf16.msra.mxu0 %v334
  %408 = vmatprep.subr.bf16.mxu0 0
  %409 = vmatpush1.bf16.msra.mxu0 %v335
  %410 = vmatprep.subr.bf16.mxu0 0
  %411 = vmatpush1.bf16.msra.mxu0 %v336
  %412 = vmatprep.subr.bf16.mxu0 0
  %413 = vmatpush1.bf16.msra.mxu0 %v337
  %414 = vmatprep.subr.bf16.mxu0 0
  %415 = vmatpush1.bf16.msra.mxu0 %v338
  %416 = vmatprep.subr.bf16.mxu0 0
  %417 = vmatpush1.bf16.msra.mxu0 %v339
  %418 = vmatprep.subr.bf16.mxu0 0
  %419 = vmatpush1.bf16.msra.mxu0 %v340
  %420 = vmatprep.subr.bf16.mxu0 0
  %421 = vmatpush1.bf16.msra.mxu0 %v341
  %422 = vmatprep.subr.bf16.mxu0 0
  %423 = vmatpush1.bf16.msra.mxu0 %v342
  %424 = vmatprep.subr.bf16.mxu0 0
  %425 = vmatpush1.bf16.msra.mxu0 %v343
  %426 = vmatprep.subr.bf16.mxu0 0
  %427 = vmatpush1.bf16.msra.mxu0 %v344
  %428 = vmatprep.mubr.bf16.mxu0 %v194
  %429 = vmatmul.mubr.bf16.gmra.mrb[0].mxu0 %v193
  %v430 = vpop.f32.mrb[0].mxu0
  %v431 = vadd.f32 %v108, %v430
  %v432 = vpop.f32.mrb[0].mxu0
  %v433 = vpop.f32.mrb[0].mxu0
  %v434 = vadd.f32 %v113, %v433
  %v435 = vpop.f32.mrb[0].mxu0
  %436 = vmatprep.mubr.bf16.mxu0 %v198
  %437 = vmatmul.mubr.bf16.gmra.mrb[0].mxu0 %v197
  %v438 = vpop.f32.mrb[0].mxu0
  %v439 = vadd.f32 %v118, %v438
  %v440 = vpop.f32.mrb[0].mxu0
  %v441 = vpop.f32.mrb[0].mxu0
  %v442 = vadd.f32 %v123, %v441
  %v443 = vpop.f32.mrb[0].mxu0
  %444 = vmatprep.mubr.bf16.mxu0 %v202
  %445 = vmatmul.mubr.bf16.gmra.mrb[0].mxu0 %v201
  %v446 = vpop.f32.mrb[0].mxu0
  %v447 = vadd.f32 %v128, %v446
  %v448 = vpop.f32.mrb[0].mxu0
  %v449 = vpop.f32.mrb[0].mxu0
  %v450 = vadd.f32 %v133, %v449
  %v451 = vpop.f32.mrb[0].mxu0
  %452 = vmatprep.mubr.bf16.mxu0 %v206
  %453 = vmatmul.mubr.bf16.gmra.mrb[0].mxu0 %v205
  %v454 = vpop.f32.mrb[0].mxu0
  %v455 = vadd.f32 %v138, %v454
  %v456 = vpop.f32.mrb[0].mxu0
  %v457 = vpop.f32.mrb[0].mxu0
  %v458 = vadd.f32 %v143, %v457
  %v459 = vpop.f32.mrb[0].mxu0
  %460 = vdwg.mxu0
  %461 = vmatprep.subr.bf16.mxu0 0
  %462 = vmatpush1.bf16.msra.mxu0 %v345
  %463 = vmatprep.subr.bf16.mxu0 0
  %464 = vmatpush1.bf16.msra.mxu0 %v346
  %465 = vmatprep.subr.bf16.mxu0 0
  %466 = vmatpush1.bf16.msra.mxu0 %v347
  %467 = vmatprep.subr.bf16.mxu0 0
  %468 = vmatpush1.bf16.msra.mxu0 %v348
  %469 = vmatprep.subr.bf16.mxu0 0
  %470 = vmatpush1.bf16.msra.mxu0 %v349
  %471 = vmatprep.subr.bf16.mxu0 0
  %472 = vmatpush1.bf16.msra.mxu0 %v350
  %473 = vmatprep.subr.bf16.mxu0 0
  %474 = vmatpush1.bf16.msra.mxu0 %v351
  %475 = vmatprep.subr.bf16.mxu0 0
  %476 = vmatpush1.bf16.msra.mxu0 %v352
  %477 = vmatprep.subr.bf16.mxu0 0
  %478 = vmatpush1.bf16.msra.mxu0 %v353
  %479 = vmatprep.subr.bf16.mxu0 0
  %480 = vmatpush1.bf16.msra.mxu0 %v354
  %481 = vmatprep.subr.bf16.mxu0 0
  %482 = vmatpush1.bf16.msra.mxu0 %v355
  %483 = vmatprep.subr.bf16.mxu0 0
  %484 = vmatpush1.bf16.msra.mxu0 0
  %485 = vmatprep.subr.bf16.mxu0 0
  %486 = vmatpush1.bf16.msra.mxu0 0
  %487 = vmatprep.subr.bf16.mxu0 0
  %488 = vmatpush1.bf16.msra.mxu0 0
  %489 = vmatprep.subr.bf16.mxu0 0
  %490 = vmatpush1.bf16.msra.mxu0 0
  %491 = vmatprep.subr.bf16.mxu0 0
  %492 = vmatpush1.bf16.msra.mxu0 0
  %493 = vmatprep.mubr.bf16.mxu0 %v385
  %494 = vmatmul.mubr.bf16.gmra.mrb[0].mxu0 %v195
  %v495 = vpop.f32.mrb[0].mxu0
  %v496 = vadd.f32 %v431, %v495
  %v497 = vpop.f32.mrb[0].mxu0
  %v498 = vpop.f32.mrb[0].mxu0
  %v499 = vadd.f32 %v434, %v498
  %v500 = vpop.f32.mrb[0].mxu0
  %501 = vmatprep.mubr.bf16.mxu0 %v388
  %502 = vmatmul.mubr.bf16.gmra.mrb[0].mxu0 %v199
  %v503 = vpop.f32.mrb[0].mxu0
  %v504 = vadd.f32 %v439, %v503
  %v505 = vpop.f32.mrb[0].mxu0
  %v506 = vpop.f32.mrb[0].mxu0
  %v507 = vadd.f32 %v442, %v506
  %v508 = vpop.f32.mrb[0].mxu0
  %509 = vmatprep.mubr.bf16.mxu0 %v391
  %510 = vmatmul.mubr.bf16.gmra.mrb[0].mxu0 %v203
  %v511 = vpop.f32.mrb[0].mxu0
  %v512 = vadd.f32 %v447, %v511
  %v513 = vpop.f32.mrb[0].mxu0
  %v514 = vpop.f32.mrb[0].mxu0
  %v515 = vadd.f32 %v450, %v514
  %v516 = vpop.f32.mrb[0].mxu0
  %517 = vmatprep.mubr.bf16.mxu0 %v394
  %518 = vmatmul.mubr.bf16.gmra.mrb[0].mxu0 %v207
  %v519 = vpop.f32.mrb[0].mxu0
  %v520 = vadd.f32 %v455, %v519
  %v521 = vpop.f32.mrb[0].mxu0
  %v522 = vpop.f32.mrb[0].mxu0
  %v523 = vadd.f32 %v458, %v522
  %v524 = vpop.f32.mrb[0].mxu0
  %525 = vdwg.mxu0
  %v526 = vld [vmem:[%s5] sm:$0xff]
  %527 = vadd.xlane.f32.xlu0 %v496
  %v528 = vpop.xlane.xlu0 %527
  %529 = vadd.xlane.f32.xlu0 %v499
  %v530 = vpop.xlane.xlu0 %529
  %531 = vadd.xlane.f32.xlu0 %v504
  %v532 = vpop.xlane.xlu0 %531
  %533 = vadd.xlane.f32.xlu0 %v507
  %v534 = vpop.xlane.xlu0 %533
  %535 = vadd.xlane.f32.xlu0 %v512
  %v536 = vpop.xlane.xlu0 %535
  %537 = vadd.xlane.f32.xlu0 %v515
  %v538 = vpop.xlane.xlu0 %537
  %539 = vadd.xlane.f32.xlu0 %v520
  %v540 = vpop.xlane.xlu0 %539
  %541 = vadd.xlane.f32.xlu0 %v523
  %v542 = vpop.xlane.xlu0 %541
  %vm543 = vcmask 523264
  %v545 = vsel %vm543, %v526, 0
  %547 = vmatprep.subr.mxu0 0.0
  %548 = vmatpush1.msra.mxu0 %v528
  %549 = vmatprep.subr.mxu0 0.0
  %550 = vmatpush1.msra.mxu0 %v530
  %551 = vmatprep.subr.mxu0 0.0
  %552 = vmatpush1.msra.mxu0 %v532
  %553 = vmatprep.subr.mxu0 0.0
  %554 = vmatpush1.msra.mxu0 %v534
  %555 = vmatprep.subr.mxu0 0.0
  %556 = vmatpush1.msra.mxu0 %v536
  %557 = vmatprep.subr.mxu0 0.0
  %558 = vmatpush1.msra.mxu0 %v538
  %559 = vmatprep.subr.mxu0 0.0
  %560 = vmatpush1.msra.mxu0 %v540
  %561 = vmatprep.subr.mxu0 0.0
  %562 = vmatpush1.msra.mxu0 %v542
  %563 = vmatprep.subr.mxu0 0.0
  %564 = vmatpush1.msra.mxu0 0.0
  %565 = vmatprep.subr.mxu0 0.0
  %566 = vmatpush1.msra.mxu0 0.0
  %567 = vmatprep.subr.mxu0 0.0
  %568 = vmatpush1.msra.mxu0 0.0
  %569 = vmatprep.subr.mxu0 0.0
  %570 = vmatpush1.msra.mxu0 0.0
  %571 = vmatprep.subr.mxu0 0.0
  %572 = vmatpush1.msra.mxu0 0.0
  %573 = vmatprep.subr.mxu0 0.0
  %574 = vmatpush1.msra.mxu0 0.0
  %575 = vmatprep.subr.mxu0 0.0
  %576 = vmatpush1.msra.mxu0 0.0
  %577 = vmatprep.subr.mxu0 0.0
  %578 = vmatpush1.msra.mxu0 0.0
  %579 = vmatprep.subr.mxu0 0.0
  %580 = vmatpush1.msra.mxu0 0.0
  %581 = vmatprep.subr.mxu0 0.0
  %582 = vmatpush1.msra.mxu0 0.0
  %583 = vmatprep.subr.mxu0 0.0
  %584 = vmatpush1.msra.mxu0 0.0
  %585 = vmatprep.subr.mxu0 0.0
  %586 = vmatpush1.msra.mxu0 0.0
  %587 = vmatprep.subr.mxu0 0.0
  %588 = vmatpush1.msra.mxu0 0.0
  %589 = vmatprep.subr.mxu0 0.0
  %590 = vmatpush1.msra.mxu0 0.0
  %591 = vmatprep.subr.mxu0 0.0
  %592 = vmatpush1.msra.mxu0 0.0
  %593 = vmatprep.subr.mxu0 0.0
  %594 = vmatpush1.msra.mxu0 0.0
  %595 = vmatprep.subr.mxu0 0.0
  %596 = vmatpush1.msra.mxu0 0.0
  %597 = vmatprep.subr.mxu0 0.0
  %598 = vmatpush1.msra.mxu0 0.0
  %599 = vmatprep.subr.mxu0 0.0
  %600 = vmatpush1.msra.mxu0 0.0
  %601 = vmatprep.subr.mxu0 0.0
  %602 = vmatpush1.msra.mxu0 0.0
  %603 = vmatprep.subr.mxu0 0.0
  %604 = vmatpush1.msra.mxu0 0.0
  %605 = vmatprep.subr.mxu0 0.0
  %606 = vmatpush1.msra.mxu0 0.0
  %607 = vmatprep.subr.mxu0 0.0
  %608 = vmatpush1.msra.mxu0 0.0
  %609 = vmatprep.subr.mxu0 0.0
  %610 = vmatpush1.msra.mxu0 0.0
  %611 = vmatprep.mubr.f32.mxu0 0.0
  %612 = vmatmul.mubr.f32.gmra.mrb[0].mxu0 %v545
  %v613 = vpop.f32.mrb[0].mxu0
  %v614 = vadd.f32 0.0, %v613
  %v615 = vpop.f32.mrb[0].mxu0
  %616 = vdwg.mxu0
  %v617 = vmul.f32 %v496, %v496
  %v618 = vmul.f32 %v499, %v499
  %v619 = vmul.f32 %v504, %v504
  %v620 = vmul.f32 %v507, %v507
  %v621 = vmul.f32 %v512, %v512
  %v622 = vmul.f32 %v515, %v515
  %v623 = vmul.f32 %v520, %v520
  %v624 = vmul.f32 %v523, %v523
  %625 = vadd.xlane.f32.xlu0 %v617
  %v626 = vpop.xlane.xlu0 %625
  %627 = vadd.xlane.f32.xlu0 %v618
  %v628 = vpop.xlane.xlu0 %627
  %629 = vadd.xlane.f32.xlu0 %v619
  %v630 = vpop.xlane.xlu0 %629
  %631 = vadd.xlane.f32.xlu0 %v620
  %v632 = vpop.xlane.xlu0 %631
  %633 = vadd.xlane.f32.xlu0 %v621
  %v634 = vpop.xlane.xlu0 %633
  %635 = vadd.xlane.f32.xlu0 %v622
  %v636 = vpop.xlane.xlu0 %635
  %637 = vadd.xlane.f32.xlu0 %v623
  %v638 = vpop.xlane.xlu0 %637
  %639 = vadd.xlane.f32.xlu0 %v624
  %v640 = vpop.xlane.xlu0 %639
  %641 = vmatprep.subr.mxu0 0.0
  %642 = vmatpush1.msra.mxu0 %v626
  %643 = vmatprep.subr.mxu0 0.0
  %644 = vmatpush1.msra.mxu0 %v628
  %645 = vmatprep.subr.mxu0 0.0
  %646 = vmatpush1.msra.mxu0 %v630
  %647 = vmatprep.subr.mxu0 0.0
  %648 = vmatpush1.msra.mxu0 %v632
  %649 = vmatprep.subr.mxu0 0.0
  %650 = vmatpush1.msra.mxu0 %v634
  %651 = vmatprep.subr.mxu0 0.0
  %652 = vmatpush1.msra.mxu0 %v636
  %653 = vmatprep.subr.mxu0 0.0
  %654 = vmatpush1.msra.mxu0 %v638
  %655 = vmatprep.subr.mxu0 0.0
  %656 = vmatpush1.msra.mxu0 %v640
  %657 = vmatprep.subr.mxu0 0.0
  %658 = vmatpush1.msra.mxu0 0.0
  %659 = vmatprep.subr.mxu0 0.0
  %660 = vmatpush1.msra.mxu0 0.0
  %661 = vmatprep.subr.mxu0 0.0
  %662 = vmatpush1.msra.mxu0 0.0
  %663 = vmatprep.subr.mxu0 0.0
  %664 = vmatpush1.msra.mxu0 0.0
  %665 = vmatprep.subr.mxu0 0.0
  %666 = vmatpush1.msra.mxu0 0.0
  %667 = vmatprep.subr.mxu0 0.0
  %668 = vmatpush1.msra.mxu0 0.0
  %669 = vmatprep.subr.mxu0 0.0
  %670 = vmatpush1.msra.mxu0 0.0
  %671 = vmatprep.subr.mxu0 0.0
  %672 = vmatpush1.msra.mxu0 0.0
  %673 = vmatprep.subr.mxu0 0.0
  %674 = vmatpush1.msra.mxu0 0.0
  %675 = vmatprep.subr.mxu0 0.0
  %676 = vmatpush1.msra.mxu0 0.0
  %677 = vmatprep.subr.mxu0 0.0
  %678 = vmatpush1.msra.mxu0 0.0
  %679 = vmatprep.subr.mxu0 0.0
  %680 = vmatpush1.msra.mxu0 0.0
  %681 = vmatprep.subr.mxu0 0.0
  %682 = vmatpush1.msra.mxu0 0.0
  %683 = vmatprep.subr.mxu0 0.0
  %684 = vmatpush1.msra.mxu0 0.0
  %685 = vmatprep.subr.mxu0 0.0
  %686 = vmatpush1.msra.mxu0 0.0
  %687 = vmatprep.subr.mxu0 0.0
  %688 = vmatpush1.msra.mxu0 0.0
  %689 = vmatprep.subr.mxu0 0.0
  %690 = vmatpush1.msra.mxu0 0.0
  %691 = vmatprep.subr.mxu0 0.0
  %692 = vmatpush1.msra.mxu0 0.0
  %693 = vmatprep.subr.mxu0 0.0
  %694 = vmatpush1.msra.mxu0 0.0
  %695 = vmatprep.subr.mxu0 0.0
  %696 = vmatpush1.msra.mxu0 0.0
  %697 = vmatprep.subr.mxu0 0.0
  %698 = vmatpush1.msra.mxu0 0.0
  %699 = vmatprep.subr.mxu0 0.0
  %700 = vmatpush1.msra.mxu0 0.0
  %701 = vmatprep.subr.mxu0 0.0
  %702 = vmatpush1.msra.mxu0 0.0
  %703 = vmatprep.subr.mxu0 0.0
  %704 = vmatpush1.msra.mxu0 0.0
  %705 = vmatprep.mubr.f32.mxu0 0.0
  %706 = vmatmul.mubr.f32.gmra.mrb[0].mxu0 %v545
  %v707 = vpop.f32.mrb[0].mxu0
  %v708 = vadd.f32 0.0, %v707
  %v709 = vpop.f32.mrb[0].mxu0
  %710 = vdwg.mxu0
  %v711 = vmul.f32 %v614, 0.0009765625
  %v712 = vmul.f32 %v708, 0.0009765625
  %v713 = vmul.f32 %v711, %v711
  %v714 = vsub.f32 %v712, %v713
  %v715 = vmax.f32 %v714, 0.0
  %v716 = vld [vmem:[%s3] sm:$0xff]
  %v717 = vadd.f32 %v715, 1e-05
  %v718 = vrsqrt.pop %v717
  %v719 = vmul.f32 %v716, %v718
  %v720 = vld [vmem:[%s4] sm:$0xff]
  %v721 = vmul.f32 %v711, %v719
  %v722 = vsub.f32 %v720, %v721
  %v723 = vld [vmem:[%s6] sm:$0xff]
  %v724 = vld [vmem:[%s6 + $0x8] sm:$0xff]
  %v725 = vld [vmem:[%s6 + $0x10] sm:$0xff]
  %v726 = vld [vmem:[%s6 + $0x18] sm:$0xff]
  %v727 = vld [vmem:[%s6 + $0x20] sm:$0xff]
  %v728 = vld [vmem:[%s6 + $0x28] sm:$0xff]
  %v729 = vld [vmem:[%s6 + $0x30] sm:$0xff]
  %v730 = vld [vmem:[%s6 + $0x38] sm:$0xff]
  %vm731 = vcmask 64512
  %v733 = vsel %vm731, %v723, 0
  %v736 = vsel %vm731, %v724, 0
  %v739 = vsel %vm731, %v725, 0
  %v742 = vsel %vm731, %v726, 0
  %v745 = vsel %vm731, %v727, 0
  %v748 = vsel %vm731, %v728, 0
  %v751 = vsel %vm731, %v729, 0
  %v754 = vsel %vm731, %v730, 0
  %756 = vmatprep.subr.mxu0 0.0
  %757 = vmatpush1.msra.mxu0 %v719
  %758 = vmatprep.subr.mxu0 0.0
  %759 = vmatpush1.msra.mxu0 0.0
  %760 = vmatprep.subr.mxu0 0.0
  %761 = vmatpush1.msra.mxu0 0.0
  %762 = vmatprep.subr.mxu0 0.0
  %763 = vmatpush1.msra.mxu0 0.0
  %764 = vmatprep.subr.mxu0 0.0
  %765 = vmatpush1.msra.mxu0 0.0
  %766 = vmatprep.subr.mxu0 0.0
  %767 = vmatpush1.msra.mxu0 0.0
  %768 = vmatprep.subr.mxu0 0.0
  %769 = vmatpush1.msra.mxu0 0.0
  %770 = vmatprep.subr.mxu0 0.0
  %771 = vmatpush1.msra.mxu0 0.0
  %772 = vmatprep.subr.mxu0 0.0
  %773 = vmatpush1.msra.mxu0 0.0
  %774 = vmatprep.subr.mxu0 0.0
  %775 = vmatpush1.msra.mxu0 0.0
  %776 = vmatprep.subr.mxu0 0.0
  %777 = vmatpush1.msra.mxu0 0.0
  %778 = vmatprep.subr.mxu0 0.0
  %779 = vmatpush1.msra.mxu0 0.0
  %780 = vmatprep.subr.mxu0 0.0
  %781 = vmatpush1.msra.mxu0 0.0
  %782 = vmatprep.subr.mxu0 0.0
  %783 = vmatpush1.msra.mxu0 0.0
  %784 = vmatprep.subr.mxu0 0.0
  %785 = vmatpush1.msra.mxu0 0.0
  %786 = vmatprep.subr.mxu0 0.0
  %787 = vmatpush1.msra.mxu0 0.0
  %788 = vmatprep.subr.mxu0 0.0
  %789 = vmatpush1.msra.mxu0 0.0
  %790 = vmatprep.subr.mxu0 0.0
  %791 = vmatpush1.msra.mxu0 0.0
  %792 = vmatprep.subr.mxu0 0.0
  %793 = vmatpush1.msra.mxu0 0.0
  %794 = vmatprep.subr.mxu0 0.0
  %795 = vmatpush1.msra.mxu0 0.0
  %796 = vmatprep.subr.mxu0 0.0
  %797 = vmatpush1.msra.mxu0 0.0
  %798 = vmatprep.subr.mxu0 0.0
  %799 = vmatpush1.msra.mxu0 0.0
  %800 = vmatprep.subr.mxu0 0.0
  %801 = vmatpush1.msra.mxu0 0.0
  %802 = vmatprep.subr.mxu0 0.0
  %803 = vmatpush1.msra.mxu0 0.0
  %804 = vmatprep.subr.mxu0 0.0
  %805 = vmatpush1.msra.mxu0 0.0
  %806 = vmatprep.subr.mxu0 0.0
  %807 = vmatpush1.msra.mxu0 0.0
  %808 = vmatprep.subr.mxu0 0.0
  %809 = vmatpush1.msra.mxu0 0.0
  %810 = vmatprep.subr.mxu0 0.0
  %811 = vmatpush1.msra.mxu0 0.0
  %812 = vmatprep.subr.mxu0 0.0
  %813 = vmatpush1.msra.mxu0 0.0
  %814 = vmatprep.subr.mxu0 0.0
  %815 = vmatpush1.msra.mxu0 0.0
  %816 = vmatprep.subr.mxu0 0.0
  %817 = vmatpush1.msra.mxu0 0.0
  %818 = vmatprep.subr.mxu0 0.0
  %819 = vmatpush1.msra.mxu0 0.0
  %820 = vmatprep.mubr.f32.mxu0 0.0
  %821 = vmatmul.mubr.f32.gmra.mrb[0].mxu0 %v733
  %v822 = vpop.f32.mrb[0].mxu0
  %v823 = vadd.f32 0.0, %v822
  %v824 = vpop.f32.mrb[0].mxu0
  %825 = vmatprep.mubr.f32.mxu0 0.0
  %826 = vmatmul.mubr.f32.gmra.mrb[0].mxu0 %v736
  %v827 = vpop.f32.mrb[0].mxu0
  %v828 = vadd.f32 0.0, %v827
  %v829 = vpop.f32.mrb[0].mxu0
  %830 = vmatprep.mubr.f32.mxu0 0.0
  %831 = vmatmul.mubr.f32.gmra.mrb[0].mxu0 %v739
  %v832 = vpop.f32.mrb[0].mxu0
  %v833 = vadd.f32 0.0, %v832
  %v834 = vpop.f32.mrb[0].mxu0
  %835 = vmatprep.mubr.f32.mxu0 0.0
  %836 = vmatmul.mubr.f32.gmra.mrb[0].mxu0 %v742
  %v837 = vpop.f32.mrb[0].mxu0
  %v838 = vadd.f32 0.0, %v837
  %v839 = vpop.f32.mrb[0].mxu0
  %840 = vmatprep.mubr.f32.mxu0 0.0
  %841 = vmatmul.mubr.f32.gmra.mrb[0].mxu0 %v745
  %v842 = vpop.f32.mrb[0].mxu0
  %v843 = vadd.f32 0.0, %v842
  %v844 = vpop.f32.mrb[0].mxu0
  %845 = vmatprep.mubr.f32.mxu0 0.0
  %846 = vmatmul.mubr.f32.gmra.mrb[0].mxu0 %v748
  %v847 = vpop.f32.mrb[0].mxu0
  %v848 = vadd.f32 0.0, %v847
  %v849 = vpop.f32.mrb[0].mxu0
  %850 = vmatprep.mubr.f32.mxu0 0.0
  %851 = vmatmul.mubr.f32.gmra.mrb[0].mxu0 %v751
  %v852 = vpop.f32.mrb[0].mxu0
  %v853 = vadd.f32 0.0, %v852
  %v854 = vpop.f32.mrb[0].mxu0
  %855 = vmatprep.mubr.f32.mxu0 0.0
  %856 = vmatmul.mubr.f32.gmra.mrb[0].mxu0 %v754
  %v857 = vpop.f32.mrb[0].mxu0
  %v858 = vadd.f32 0.0, %v857
  %v859 = vpop.f32.mrb[0].mxu0
  %860 = vdwg.mxu0
  %861 = vmatprep.subr.mxu0 0.0
  %862 = vmatpush1.msra.mxu0 %v722
  %863 = vmatprep.subr.mxu0 0.0
  %864 = vmatpush1.msra.mxu0 0.0
  %865 = vmatprep.subr.mxu0 0.0
  %866 = vmatpush1.msra.mxu0 0.0
  %867 = vmatprep.subr.mxu0 0.0
  %868 = vmatpush1.msra.mxu0 0.0
  %869 = vmatprep.subr.mxu0 0.0
  %870 = vmatpush1.msra.mxu0 0.0
  %871 = vmatprep.subr.mxu0 0.0
  %872 = vmatpush1.msra.mxu0 0.0
  %873 = vmatprep.subr.mxu0 0.0
  %874 = vmatpush1.msra.mxu0 0.0
  %875 = vmatprep.subr.mxu0 0.0
  %876 = vmatpush1.msra.mxu0 0.0
  %877 = vmatprep.subr.mxu0 0.0
  %878 = vmatpush1.msra.mxu0 0.0
  %879 = vmatprep.subr.mxu0 0.0
  %880 = vmatpush1.msra.mxu0 0.0
  %881 = vmatprep.subr.mxu0 0.0
  %882 = vmatpush1.msra.mxu0 0.0
  %883 = vmatprep.subr.mxu0 0.0
  %884 = vmatpush1.msra.mxu0 0.0
  %885 = vmatprep.subr.mxu0 0.0
  %886 = vmatpush1.msra.mxu0 0.0
  %887 = vmatprep.subr.mxu0 0.0
  %888 = vmatpush1.msra.mxu0 0.0
  %889 = vmatprep.subr.mxu0 0.0
  %890 = vmatpush1.msra.mxu0 0.0
  %891 = vmatprep.subr.mxu0 0.0
  %892 = vmatpush1.msra.mxu0 0.0
  %893 = vmatprep.subr.mxu0 0.0
  %894 = vmatpush1.msra.mxu0 0.0
  %895 = vmatprep.subr.mxu0 0.0
  %896 = vmatpush1.msra.mxu0 0.0
  %897 = vmatprep.subr.mxu0 0.0
  %898 = vmatpush1.msra.mxu0 0.0
  %899 = vmatprep.subr.mxu0 0.0
  %900 = vmatpush1.msra.mxu0 0.0
  %901 = vmatprep.subr.mxu0 0.0
  %902 = vmatpush1.msra.mxu0 0.0
  %903 = vmatprep.subr.mxu0 0.0
  %904 = vmatpush1.msra.mxu0 0.0
  %905 = vmatprep.subr.mxu0 0.0
  %906 = vmatpush1.msra.mxu0 0.0
  %907 = vmatprep.subr.mxu0 0.0
  %908 = vmatpush1.msra.mxu0 0.0
  %909 = vmatprep.subr.mxu0 0.0
  %910 = vmatpush1.msra.mxu0 0.0
  %911 = vmatprep.subr.mxu0 0.0
  %912 = vmatpush1.msra.mxu0 0.0
  %913 = vmatprep.subr.mxu0 0.0
  %914 = vmatpush1.msra.mxu0 0.0
  %915 = vmatprep.subr.mxu0 0.0
  %916 = vmatpush1.msra.mxu0 0.0
  %917 = vmatprep.subr.mxu0 0.0
  %918 = vmatpush1.msra.mxu0 0.0
  %919 = vmatprep.subr.mxu0 0.0
  %920 = vmatpush1.msra.mxu0 0.0
  %921 = vmatprep.subr.mxu0 0.0
  %922 = vmatpush1.msra.mxu0 0.0
  %923 = vmatprep.subr.mxu0 0.0
  %924 = vmatpush1.msra.mxu0 0.0
  %925 = vmatprep.mubr.f32.mxu0 0.0
  %926 = vmatmul.mubr.f32.gmra.mrb[0].mxu0 %v733
  %v927 = vpop.f32.mrb[0].mxu0
  %v928 = vadd.f32 0.0, %v927
  %v929 = vpop.f32.mrb[0].mxu0
  %930 = vmatprep.mubr.f32.mxu0 0.0
  %931 = vmatmul.mubr.f32.gmra.mrb[0].mxu0 %v736
  %v932 = vpop.f32.mrb[0].mxu0
  %v933 = vadd.f32 0.0, %v932
  %v934 = vpop.f32.mrb[0].mxu0
  %935 = vmatprep.mubr.f32.mxu0 0.0
  %936 = vmatmul.mubr.f32.gmra.mrb[0].mxu0 %v739
  %v937 = vpop.f32.mrb[0].mxu0
  %v938 = vadd.f32 0.0, %v937
  %v939 = vpop.f32.mrb[0].mxu0
  %940 = vmatprep.mubr.f32.mxu0 0.0
  %941 = vmatmul.mubr.f32.gmra.mrb[0].mxu0 %v742
  %v942 = vpop.f32.mrb[0].mxu0
  %v943 = vadd.f32 0.0, %v942
  %v944 = vpop.f32.mrb[0].mxu0
  %945 = vmatprep.mubr.f32.mxu0 0.0
  %946 = vmatmul.mubr.f32.gmra.mrb[0].mxu0 %v745
  %v947 = vpop.f32.mrb[0].mxu0
  %v948 = vadd.f32 0.0, %v947
  %v949 = vpop.f32.mrb[0].mxu0
  %950 = vmatprep.mubr.f32.mxu0 0.0
  %951 = vmatmul.mubr.f32.gmra.mrb[0].mxu0 %v748
  %v952 = vpop.f32.mrb[0].mxu0
  %v953 = vadd.f32 0.0, %v952
  %v954 = vpop.f32.mrb[0].mxu0
  %955 = vmatprep.mubr.f32.mxu0 0.0
  %956 = vmatmul.mubr.f32.gmra.mrb[0].mxu0 %v751
  %v957 = vpop.f32.mrb[0].mxu0
  %v958 = vadd.f32 0.0, %v957
  %v959 = vpop.f32.mrb[0].mxu0
  %960 = vmatprep.mubr.f32.mxu0 0.0
  %961 = vmatmul.mubr.f32.gmra.mrb[0].mxu0 %v754
  %v962 = vpop.f32.mrb[0].mxu0
  %v963 = vadd.f32 0.0, %v962
  %v964 = vpop.f32.mrb[0].mxu0
  %965 = vdwg.mxu0
  %967 = vset.pattern.permute.xlu0 0
  %968 = vperm.xlu0 %967, %v823
  %v969 = vpop.permute.xlu0 %968
  %972 = vset.pattern.permute.xlu0 0
  %973 = vperm.xlu0 %972, %v828
  %v974 = vpop.permute.xlu0 %973
  %977 = vset.pattern.permute.xlu0 0
  %978 = vperm.xlu0 %977, %v833
  %v979 = vpop.permute.xlu0 %978
  %982 = vset.pattern.permute.xlu0 0
  %983 = vperm.xlu0 %982, %v838
  %v984 = vpop.permute.xlu0 %983
  %987 = vset.pattern.permute.xlu0 0
  %988 = vperm.xlu0 %987, %v843
  %v989 = vpop.permute.xlu0 %988
  %992 = vset.pattern.permute.xlu0 0
  %993 = vperm.xlu0 %992, %v848
  %v994 = vpop.permute.xlu0 %993
  %997 = vset.pattern.permute.xlu0 0
  %998 = vperm.xlu0 %997, %v853
  %v999 = vpop.permute.xlu0 %998
  %1002 = vset.pattern.permute.xlu0 0
  %1003 = vperm.xlu0 %1002, %v858
  %v1004 = vpop.permute.xlu0 %1003
  %v1006 = vmul.f32 %v496, %v969
  %v1007 = vmul.f32 %v499, %v974
  %v1008 = vmul.f32 %v504, %v979
  %v1009 = vmul.f32 %v507, %v984
  %v1010 = vmul.f32 %v512, %v989
  %v1011 = vmul.f32 %v515, %v994
  %v1012 = vmul.f32 %v520, %v999
  %v1013 = vmul.f32 %v523, %v1004
  %1015 = vset.pattern.permute.xlu0 0
  %1016 = vperm.xlu0 %1015, %v928
  %v1017 = vpop.permute.xlu0 %1016
  %1020 = vset.pattern.permute.xlu0 0
  %1021 = vperm.xlu0 %1020, %v933
  %v1022 = vpop.permute.xlu0 %1021
  %1025 = vset.pattern.permute.xlu0 0
  %1026 = vperm.xlu0 %1025, %v938
  %v1027 = vpop.permute.xlu0 %1026
  %1030 = vset.pattern.permute.xlu0 0
  %1031 = vperm.xlu0 %1030, %v943
  %v1032 = vpop.permute.xlu0 %1031
  %1035 = vset.pattern.permute.xlu0 0
  %1036 = vperm.xlu0 %1035, %v948
  %v1037 = vpop.permute.xlu0 %1036
  %1040 = vset.pattern.permute.xlu0 0
  %1041 = vperm.xlu0 %1040, %v953
  %v1042 = vpop.permute.xlu0 %1041
  %1045 = vset.pattern.permute.xlu0 0
  %1046 = vperm.xlu0 %1045, %v958
  %v1047 = vpop.permute.xlu0 %1046
  %1050 = vset.pattern.permute.xlu0 0
  %1051 = vperm.xlu0 %1050, %v963
  %v1052 = vpop.permute.xlu0 %1051
  %v1054 = vadd.f32 %v1006, %v1017
  %v1055 = vadd.f32 %v1007, %v1022
  %v1056 = vadd.f32 %v1008, %v1027
  %v1057 = vadd.f32 %v1009, %v1032
  %v1058 = vadd.f32 %v1010, %v1037
  %v1059 = vadd.f32 %v1011, %v1042
  %v1060 = vadd.f32 %v1012, %v1047
  %v1061 = vadd.f32 %v1013, %v1052
  %v1062 = vmax.f32 %v1054, 0.0
  %v1063 = vmax.f32 %v1055, 0.0
  %v1064 = vmax.f32 %v1056, 0.0
  %v1065 = vmax.f32 %v1057, 0.0
  %v1066 = vmax.f32 %v1058, 0.0
  %v1067 = vmax.f32 %v1059, 0.0
  %v1068 = vmax.f32 %v1060, 0.0
  %v1069 = vmax.f32 %v1061, 0.0
  %v1070 = vpack.c.bf16 %v1063, %v1062
  %v1071 = vpack.c.bf16 %v1065, %v1064
  %v1072 = vpack.c.bf16 %v1067, %v1066
  %v1073 = vpack.c.bf16 %v1069, %v1068
  %v1078 = vunpack.c.l.b16 %v1070
  %v1079 = vunpack.c.h.b16 %v1070
  %v1080 = vunpack.c.l.b16 %v1071
  %v1081 = vunpack.c.h.b16 %v1071
  %v1082 = vunpack.c.l.b16 %v1072
  %v1083 = vunpack.c.h.b16 %v1072
  %v1084 = vunpack.c.l.b16 %v1073
  %v1085 = vunpack.c.h.b16 %v1073
  %v1086 = vpack.c.b16 %v1078, %v1078
  %v1087 = vpack.c.b16 %v1079, %v1079
  %v1088 = vpack.c.b16 %v1080, %v1080
  %v1089 = vpack.c.b16 %v1081, %v1081
  %v1090 = vpack.c.b16 %v1082, %v1082
  %v1091 = vpack.c.b16 %v1083, %v1083
  %v1092 = vpack.c.b16 %v1084, %v1084
  %v1093 = vpack.c.b16 %v1085, %v1085
  %1102 = vst [vmem:[%s7] sm:$0xf] %v1086
  %1103 = vst [vmem:[%s7 + $0x4] sm:$0xf] %v1087
  %1104 = vst [vmem:[%s7 + $0x8] sm:$0xf] %v1088
  %1105 = vst [vmem:[%s7 + $0xc] sm:$0xf] %v1089
  %1106 = vst [vmem:[%s7 + $0x10] sm:$0xf] %v1090
  %1107 = vst [vmem:[%s7 + $0x14] sm:$0xf] %v1091
  %1108 = vst [vmem:[%s7 + $0x18] sm:$0xf] %v1092
  %1109 = vst [vmem:[%s7 + $0x1c] sm:$0xf] %v1093
  // Predicated region
  $region30: #{_lambda_.4} parent=0 // pred_check
    _
  $region31: #{_lambda_.4} parent=0 // pred_check_branch
    %1111 = sbr.rel (0) target = $region33
  $region32: #{_lambda_.4} parent=0 // pred_region
    _
  $region33: #{_lambda_.4} parent=0 // pred_fallthru
    _
  // Predicated region
  $region34: #{_lambda_.4} parent=0 // pred_check
    _
  $region35: #{_lambda_.4} parent=0 // pred_check_branch
    %1113 = sbr.rel (0) target = $region37
  $region36: #{_lambda_.4} parent=0 // pred_region
    _
  $region37: #{_lambda_.4} parent=0 // pred_fallthru
    _

// kernel: _lambda_.5
$region0: #{_lambda_.5}
  #allocation0 [shape = 'u32[]', space=smem, size = 0x4, offset = 0x4, fixed_abs, tag = 'smem constant byte address 0x4 - core index']
  #allocation1 [shape = 'u32[144,128]{1,0:T(1,128)}', space=vmem, size = 0x12000, scoped, tag = 'internal scratch']
  %s0 = inlined_call_operand.vmem [shape: bf16[8,216], index: 0, kind: input, shape index: {}]
  %s1 = inlined_call_operand.vmem [shape: bf16[216,1024], index: 1, kind: input, shape index: {}]
  %s2 = inlined_call_operand.vmem [shape: f32[8,1], index: 2, kind: input, shape index: {}]
  %s3 = inlined_call_operand.vmem [shape: f32[8,1024], index: 3, kind: output, shape index: {}]
  %s4 = sld [smem:[#allocation0]]
  $region22: #{_lambda_.5} parent=0
    _
  %s6 = ssub.s32 1, %s4
  %s7 = scalar_select 0, %s6, %s4
  // Predicated region
  $region2: #{_lambda_.5} parent=0 // pred_check
    _
  $region3: #{_lambda_.5} parent=0 // pred_check_branch
    %9 = sbr.rel (0) target = $region5
  $region4: #{_lambda_.5} parent=0 // pred_region
    _
  $region5: #{_lambda_.5} parent=0 // pred_fallthru
    _
  // Predicated region
  $region6: #{_lambda_.5} parent=0 // pred_check
    _
  $region7: #{_lambda_.5} parent=0 // pred_check_branch
    %11 = sbr.rel (0) target = $region9
  $region8: #{_lambda_.5} parent=0 // pred_region
    _
  $region9: #{_lambda_.5} parent=0 // pred_fallthru
    _
  // Predicated region
  $region10: #{_lambda_.5} parent=0 // pred_check
    _
  $region11: #{_lambda_.5} parent=0 // pred_check_branch
    %13 = sbr.rel (0) target = $region13
  $region12: #{_lambda_.5} parent=0 // pred_region
    _
  $region13: #{_lambda_.5} parent=0 // pred_fallthru
    _
  %v15 = vld [vmem:[%s0] sm:$0xff]
  %v16 = vld [vmem:[%s1] sm:$0xff]
  %v17 = vld [vmem:[%s1 + $0x8] sm:$0xff]
  %v18 = vld [vmem:[%s1 + $0x10] sm:$0xff]
  %v19 = vld [vmem:[%s1 + $0x18] sm:$0xff]
  %v20 = vld [vmem:[%s1 + $0x20] sm:$0xff]
  %v21 = vld [vmem:[%s1 + $0x28] sm:$0xff]
  %v22 = vld [vmem:[%s1 + $0x30] sm:$0xff]
  %v23 = vld [vmem:[%s1 + $0x38] sm:$0xff]
  %v24 = vld [vmem:[%s1 + $0x40] sm:$0xff]
  %v25 = vld [vmem:[%s1 + $0x48] sm:$0xff]
  %v26 = vld [vmem:[%s1 + $0x50] sm:$0xff]
  %v27 = vld [vmem:[%s1 + $0x58] sm:$0xff]
  %v28 = vld [vmem:[%s1 + $0x60] sm:$0xff]
  %v29 = vld [vmem:[%s1 + $0x68] sm:$0xff]
  %v30 = vld [vmem:[%s1 + $0x70] sm:$0xff]
  %v31 = vld [vmem:[%s1 + $0x78] sm:$0xff]
  %v32 = vld [vmem:[%s1 + $0x80] sm:$0xff]
  %v33 = vld [vmem:[%s1 + $0x88] sm:$0xff]
  %v34 = vld [vmem:[%s1 + $0x90] sm:$0xff]
  %v35 = vld [vmem:[%s1 + $0x98] sm:$0xff]
  %v36 = vld [vmem:[%s1 + $0xa0] sm:$0xff]
  %v37 = vld [vmem:[%s1 + $0xa8] sm:$0xff]
  %v38 = vld [vmem:[%s1 + $0xb0] sm:$0xff]
  %v39 = vld [vmem:[%s1 + $0xb8] sm:$0xff]
  %v40 = vld [vmem:[%s1 + $0xc0] sm:$0xff]
  %v41 = vld [vmem:[%s1 + $0xc8] sm:$0xff]
  %v42 = vld [vmem:[%s1 + $0xd0] sm:$0xff]
  %v43 = vld [vmem:[%s1 + $0xd8] sm:$0xff]
  %v44 = vld [vmem:[%s1 + $0xe0] sm:$0xff]
  %v45 = vld [vmem:[%s1 + $0xe8] sm:$0xff]
  %v46 = vld [vmem:[%s1 + $0xf0] sm:$0xff]
  %v47 = vld [vmem:[%s1 + $0xf8] sm:$0xff]
  %v48 = vld [vmem:[%s1 + $0x100] sm:$0xff]
  %v49 = vld [vmem:[%s1 + $0x108] sm:$0xff]
  %v50 = vld [vmem:[%s1 + $0x110] sm:$0xff]
  %v51 = vld [vmem:[%s1 + $0x118] sm:$0xff]
  %v52 = vld [vmem:[%s1 + $0x120] sm:$0xff]
  %v53 = vld [vmem:[%s1 + $0x128] sm:$0xff]
  %v54 = vld [vmem:[%s1 + $0x130] sm:$0xff]
  %v55 = vld [vmem:[%s1 + $0x138] sm:$0xff]
  %v56 = vld [vmem:[%s1 + $0x140] sm:$0xff]
  %v57 = vld [vmem:[%s1 + $0x148] sm:$0xff]
  %v58 = vld [vmem:[%s1 + $0x150] sm:$0xff]
  %v59 = vld [vmem:[%s1 + $0x158] sm:$0xff]
  %v60 = vld [vmem:[%s1 + $0x160] sm:$0xff]
  %v61 = vld [vmem:[%s1 + $0x168] sm:$0xff]
  %v62 = vld [vmem:[%s1 + $0x170] sm:$0xff]
  %v63 = vld [vmem:[%s1 + $0x178] sm:$0xff]
  %v64 = vld [vmem:[%s1 + $0x180] sm:$0xff]
  %v65 = vld [vmem:[%s1 + $0x188] sm:$0xff]
  %v66 = vld [vmem:[%s1 + $0x190] sm:$0xff]
  %v67 = vld [vmem:[%s1 + $0x198] sm:$0xff]
  %v68 = vld [vmem:[%s1 + $0x1a0] sm:$0xff]
  %v69 = vld [vmem:[%s1 + $0x1a8] sm:$0xff]
  %v70 = vld [vmem:[%s1 + $0x1b0] sm:$0xff]
  %v71 = vld [vmem:[%s1 + $0x1b8] sm:$0xff]
  %v72 = vld [vmem:[%s1 + $0x1c0] sm:$0xff]
  %v73 = vld [vmem:[%s1 + $0x1c8] sm:$0xff]
  %v74 = vld [vmem:[%s1 + $0x1d0] sm:$0xff]
  %v75 = vld [vmem:[%s1 + $0x1d8] sm:$0xff]
  %v76 = vld [vmem:[%s1 + $0x1e0] sm:$0xff]
  %v77 = vld [vmem:[%s1 + $0x1e8] sm:$0xff]
  %v78 = vld [vmem:[%s1 + $0x1f0] sm:$0xff]
  %v79 = vld [vmem:[%s1 + $0x1f8] sm:$0xff]
  %v80 = vld [vmem:[%s1 + $0x200] sm:$0xff]
  %v81 = vld [vmem:[%s1 + $0x208] sm:$0xff]
  %v82 = vld [vmem:[%s1 + $0x210] sm:$0xff]
  %v83 = vld [vmem:[%s1 + $0x218] sm:$0xff]
  %v84 = vld [vmem:[%s1 + $0x220] sm:$0xff]
  %v85 = vld [vmem:[%s1 + $0x228] sm:$0xff]
  %v86 = vld [vmem:[%s1 + $0x230] sm:$0xff]
  %v87 = vld [vmem:[%s1 + $0x238] sm:$0xff]
  %v88 = vld [vmem:[%s1 + $0x240] sm:$0xff]
  %v89 = vld [vmem:[%s1 + $0x248] sm:$0xff]
  %v90 = vld [vmem:[%s1 + $0x250] sm:$0xff]
  %v91 = vld [vmem:[%s1 + $0x258] sm:$0xff]
  %v92 = vld [vmem:[%s1 + $0x260] sm:$0xff]
  %v93 = vld [vmem:[%s1 + $0x268] sm:$0xff]
  %v94 = vld [vmem:[%s1 + $0x270] sm:$0xff]
  %v95 = vld [vmem:[%s1 + $0x278] sm:$0xff]
  %v96 = vld [vmem:[%s1 + $0x280] sm:$0xff]
  %v97 = vld [vmem:[%s1 + $0x288] sm:$0xff]
  %v98 = vld [vmem:[%s1 + $0x290] sm:$0xff]
  %v99 = vld [vmem:[%s1 + $0x298] sm:$0xff]
  %v100 = vld [vmem:[%s1 + $0x2a0] sm:$0xff]
  %v101 = vld [vmem:[%s1 + $0x2a8] sm:$0xff]
  %v102 = vld [vmem:[%s1 + $0x2b0] sm:$0xff]
  %v103 = vld [vmem:[%s1 + $0x2b8] sm:$0xff]
  %v104 = vld [vmem:[%s1 + $0x2c0] sm:$0xff]
  %v105 = vld [vmem:[%s1 + $0x2c8] sm:$0xff]
  %v106 = vld [vmem:[%s1 + $0x2d0] sm:$0xff]
  %v107 = vld [vmem:[%s1 + $0x2d8] sm:$0xff]
  %v108 = vld [vmem:[%s1 + $0x2e0] sm:$0xff]
  %v109 = vld [vmem:[%s1 + $0x2e8] sm:$0xff]
  %v110 = vld [vmem:[%s1 + $0x2f0] sm:$0xff]
  %v111 = vld [vmem:[%s1 + $0x2f8] sm:$0xff]
  %v112 = vld [vmem:[%s1 + $0x300] sm:$0xff]
  %v113 = vld [vmem:[%s1 + $0x308] sm:$0xff]
  %v114 = vld [vmem:[%s1 + $0x310] sm:$0xff]
  %v115 = vld [vmem:[%s1 + $0x318] sm:$0xff]
  %v116 = vld [vmem:[%s1 + $0x320] sm:$0xff]
  %v117 = vld [vmem:[%s1 + $0x328] sm:$0xff]
  %v118 = vld [vmem:[%s1 + $0x330] sm:$0xff]
  %v119 = vld [vmem:[%s1 + $0x338] sm:$0xff]
  %v120 = vld [vmem:[%s1 + $0x340] sm:$0xff]
  %v121 = vld [vmem:[%s1 + $0x348] sm:$0xff]
  %v122 = vld [vmem:[%s1 + $0x350] sm:$0xff]
  %v123 = vld [vmem:[%s1 + $0x358] sm:$0xff]
  %v124 = vld [vmem:[%s2] sm:$0xff]
  %126 = vset.pattern.permute.xlu0 0
  %127 = vperm.xlu0 %126, %v124
  %v128 = vpop.permute.xlu0 %127
  %v131 = vunpack.c.l.b16 %v15
  %v132 = vunpack.c.h.b16 %v15
  %v133 = vpack.c.b16 %v131, %v131
  %v134 = vpack.c.b16 %v132, %v132
  %v244 = vunpack.c.l.b16 %v16
  %v245 = vunpack.c.h.b16 %v16
  %v246 = vunpack.c.l.b16 %v17
  %v247 = vunpack.c.h.b16 %v17
  %v248 = vunpack.c.l.b16 %v18
  %v249 = vunpack.c.h.b16 %v18
  %v250 = vunpack.c.l.b16 %v19
  %v251 = vunpack.c.h.b16 %v19
  %v252 = vunpack.c.l.b16 %v20
  %v253 = vunpack.c.h.b16 %v20
  %v254 = vunpack.c.l.b16 %v21
  %v255 = vunpack.c.h.b16 %v21
  %v256 = vunpack.c.l.b16 %v22
  %v257 = vunpack.c.h.b16 %v22
  %v258 = vunpack.c.l.b16 %v23
  %v259 = vunpack.c.h.b16 %v23
  %v260 = vunpack.c.l.b16 %v24
  %v261 = vunpack.c.h.b16 %v24
  %v262 = vunpack.c.l.b16 %v25
  %v263 = vunpack.c.h.b16 %v25
  %v264 = vunpack.c.l.b16 %v26
  %v265 = vunpack.c.h.b16 %v26
  %v266 = vunpack.c.l.b16 %v27
  %v267 = vunpack.c.h.b16 %v27
  %v268 = vunpack.c.l.b16 %v28
  %v269 = vunpack.c.h.b16 %v28
  %v270 = vunpack.c.l.b16 %v29
  %v271 = vunpack.c.h.b16 %v29
  %v272 = vunpack.c.l.b16 %v30
  %v273 = vunpack.c.h.b16 %v30
  %v274 = vunpack.c.l.b16 %v31
  %v275 = vunpack.c.h.b16 %v31
  %v276 = vunpack.c.l.b16 %v32
  %v277 = vunpack.c.h.b16 %v32
  %v278 = vunpack.c.l.b16 %v33
  %v279 = vunpack.c.h.b16 %v33
  %v280 = vunpack.c.l.b16 %v34
  %v281 = vunpack.c.h.b16 %v34
  %v282 = vunpack.c.l.b16 %v35
  %v283 = vunpack.c.h.b16 %v35
  %v284 = vunpack.c.l.b16 %v36
  %v285 = vunpack.c.h.b16 %v36
  %v286 = vunpack.c.l.b16 %v37
  %v287 = vunpack.c.h.b16 %v37
  %v288 = vunpack.c.l.b16 %v38
  %v289 = vunpack.c.h.b16 %v38
  %v290 = vunpack.c.l.b16 %v39
  %v291 = vunpack.c.h.b16 %v39
  %v292 = vunpack.c.l.b16 %v40
  %v293 = vunpack.c.h.b16 %v40
  %v294 = vunpack.c.l.b16 %v41
  %v295 = vunpack.c.h.b16 %v41
  %v296 = vunpack.c.l.b16 %v42
  %v297 = vunpack.c.h.b16 %v42
  %v298 = vunpack.c.l.b16 %v43
  %v299 = vunpack.c.h.b16 %v43
  %v300 = vunpack.c.l.b16 %v44
  %v301 = vunpack.c.h.b16 %v44
  %v302 = vunpack.c.l.b16 %v45
  %v303 = vunpack.c.h.b16 %v45
  %v304 = vunpack.c.l.b16 %v46
  %v305 = vunpack.c.h.b16 %v46
  %v306 = vunpack.c.l.b16 %v47
  %v307 = vunpack.c.h.b16 %v47
  %v308 = vunpack.c.l.b16 %v48
  %v309 = vunpack.c.h.b16 %v48
  %v310 = vunpack.c.l.b16 %v49
  %v311 = vunpack.c.h.b16 %v49
  %v312 = vunpack.c.l.b16 %v50
  %v313 = vunpack.c.h.b16 %v50
  %v314 = vunpack.c.l.b16 %v51
  %v315 = vunpack.c.h.b16 %v51
  %v316 = vunpack.c.l.b16 %v52
  %v317 = vunpack.c.h.b16 %v52
  %v318 = vunpack.c.l.b16 %v53
  %v319 = vunpack.c.h.b16 %v53
  %v320 = vunpack.c.l.b16 %v54
  %v321 = vunpack.c.h.b16 %v54
  %v322 = vunpack.c.l.b16 %v55
  %v323 = vunpack.c.h.b16 %v55
  %v324 = vunpack.c.l.b16 %v56
  %v325 = vunpack.c.h.b16 %v56
  %v326 = vunpack.c.l.b16 %v57
  %v327 = vunpack.c.h.b16 %v57
  %v328 = vunpack.c.l.b16 %v58
  %v329 = vunpack.c.h.b16 %v58
  %v330 = vunpack.c.l.b16 %v59
  %v331 = vunpack.c.h.b16 %v59
  %v332 = vunpack.c.l.b16 %v60
  %v333 = vunpack.c.h.b16 %v60
  %v334 = vunpack.c.l.b16 %v61
  %v335 = vunpack.c.h.b16 %v61
  %v336 = vunpack.c.l.b16 %v62
  %v337 = vunpack.c.h.b16 %v62
  %v338 = vunpack.c.l.b16 %v63
  %v339 = vunpack.c.h.b16 %v63
  %v340 = vunpack.c.l.b16 %v64
  %v341 = vunpack.c.h.b16 %v64
  %v342 = vunpack.c.l.b16 %v65
  %v343 = vunpack.c.h.b16 %v65
  %v344 = vunpack.c.l.b16 %v66
  %v345 = vunpack.c.h.b16 %v66
  %v346 = vunpack.c.l.b16 %v67
  %v347 = vunpack.c.h.b16 %v67
  %v348 = vunpack.c.l.b16 %v68
  %v349 = vunpack.c.h.b16 %v68
  %v350 = vunpack.c.l.b16 %v69
  %v351 = vunpack.c.h.b16 %v69
  %v352 = vunpack.c.l.b16 %v70
  %v353 = vunpack.c.h.b16 %v70
  %v354 = vunpack.c.l.b16 %v71
  %v355 = vunpack.c.h.b16 %v71
  %v356 = vunpack.c.l.b16 %v72
  %v357 = vunpack.c.h.b16 %v72
  %v358 = vunpack.c.l.b16 %v73
  %v359 = vunpack.c.h.b16 %v73
  %v360 = vunpack.c.l.b16 %v74
  %v361 = vunpack.c.h.b16 %v74
  %v362 = vunpack.c.l.b16 %v75
  %v363 = vunpack.c.h.b16 %v75
  %v364 = vunpack.c.l.b16 %v76
  %v365 = vunpack.c.h.b16 %v76
  %v366 = vunpack.c.l.b16 %v77
  %v367 = vunpack.c.h.b16 %v77
  %v368 = vunpack.c.l.b16 %v78
  %v369 = vunpack.c.h.b16 %v78
  %v370 = vunpack.c.l.b16 %v79
  %v371 = vunpack.c.h.b16 %v79
  %v372 = vunpack.c.l.b16 %v80
  %v373 = vunpack.c.h.b16 %v80
  %v374 = vunpack.c.l.b16 %v81
  %v375 = vunpack.c.h.b16 %v81
  %v376 = vunpack.c.l.b16 %v82
  %v377 = vunpack.c.h.b16 %v82
  %v378 = vunpack.c.l.b16 %v83
  %v379 = vunpack.c.h.b16 %v83
  %v380 = vunpack.c.l.b16 %v84
  %v381 = vunpack.c.h.b16 %v84
  %v382 = vunpack.c.l.b16 %v85
  %v383 = vunpack.c.h.b16 %v85
  %v384 = vunpack.c.l.b16 %v86
  %v385 = vunpack.c.h.b16 %v86
  %v386 = vunpack.c.l.b16 %v87
  %v387 = vunpack.c.h.b16 %v87
  %v388 = vunpack.c.l.b16 %v88
  %v389 = vunpack.c.h.b16 %v88
  %v390 = vunpack.c.l.b16 %v89
  %v391 = vunpack.c.h.b16 %v89
  %v392 = vunpack.c.l.b16 %v90
  %v393 = vunpack.c.h.b16 %v90
  %v394 = vunpack.c.l.b16 %v91
  %v395 = vunpack.c.h.b16 %v91
  %v396 = vunpack.c.l.b16 %v92
  %v397 = vunpack.c.h.b16 %v92
  %v398 = vunpack.c.l.b16 %v93
  %v399 = vunpack.c.h.b16 %v93
  %v400 = vunpack.c.l.b16 %v94
  %v401 = vunpack.c.h.b16 %v94
  %v402 = vunpack.c.l.b16 %v95
  %v403 = vunpack.c.h.b16 %v95
  %v404 = vunpack.c.l.b16 %v96
  %v405 = vunpack.c.h.b16 %v96
  %v406 = vunpack.c.l.b16 %v97
  %v407 = vunpack.c.h.b16 %v97
  %v408 = vunpack.c.l.b16 %v98
  %v409 = vunpack.c.h.b16 %v98
  %v410 = vunpack.c.l.b16 %v99
  %v411 = vunpack.c.h.b16 %v99
  %v412 = vunpack.c.l.b16 %v100
  %v413 = vunpack.c.h.b16 %v100
  %v414 = vunpack.c.l.b16 %v101
  %v415 = vunpack.c.h.b16 %v101
  %v416 = vunpack.c.l.b16 %v102
  %v417 = vunpack.c.h.b16 %v102
  %v418 = vunpack.c.l.b16 %v103
  %v419 = vunpack.c.h.b16 %v103
  %v420 = vunpack.c.l.b16 %v104
  %v421 = vunpack.c.h.b16 %v104
  %v422 = vunpack.c.l.b16 %v105
  %v423 = vunpack.c.h.b16 %v105
  %v424 = vunpack.c.l.b16 %v106
  %v425 = vunpack.c.h.b16 %v106
  %v426 = vunpack.c.l.b16 %v107
  %v427 = vunpack.c.h.b16 %v107
  %v428 = vunpack.c.l.b16 %v108
  %v429 = vunpack.c.h.b16 %v108
  %v430 = vunpack.c.l.b16 %v109
  %v431 = vunpack.c.h.b16 %v109
  %v432 = vunpack.c.l.b16 %v110
  %v433 = vunpack.c.h.b16 %v110
  %v434 = vunpack.c.l.b16 %v111
  %v435 = vunpack.c.h.b16 %v111
  %v436 = vunpack.c.l.b16 %v112
  %v437 = vunpack.c.h.b16 %v112
  %v438 = vunpack.c.l.b16 %v113
  %v439 = vunpack.c.h.b16 %v113
  %v440 = vunpack.c.l.b16 %v114
  %v441 = vunpack.c.h.b16 %v114
  %v442 = vunpack.c.l.b16 %v115
  %v443 = vunpack.c.h.b16 %v115
  %v444 = vunpack.c.l.b16 %v116
  %v445 = vunpack.c.h.b16 %v116
  %v446 = vunpack.c.l.b16 %v117
  %v447 = vunpack.c.h.b16 %v117
  %v448 = vunpack.c.l.b16 %v118
  %v449 = vunpack.c.h.b16 %v118
  %v450 = vunpack.c.l.b16 %v119
  %v451 = vunpack.c.h.b16 %v119
  %v452 = vunpack.c.l.b16 %v120
  %v453 = vunpack.c.h.b16 %v120
  %v454 = vunpack.c.l.b16 %v121
  %v455 = vunpack.c.h.b16 %v121
  %v456 = vunpack.c.l.b16 %v122
  %v457 = vunpack.c.h.b16 %v122
  %v458 = vunpack.c.l.b16 %v123
  %v459 = vunpack.c.h.b16 %v123
  %v460 = vpack.c.b16 %v252, %v244
  %v461 = vpack.c.b16 %v253, %v245
  %v462 = vpack.c.b16 %v254, %v246
  %v463 = vpack.c.b16 %v255, %v247
  %v464 = vpack.c.b16 %v256, %v248
  %v465 = vpack.c.b16 %v257, %v249
  %v466 = vpack.c.b16 %v258, %v250
  %v467 = vpack.c.b16 %v259, %v251
  %v468 = vpack.c.b16 %v268, %v260
  %v469 = vpack.c.b16 %v269, %v261
  %v470 = vpack.c.b16 %v270, %v262
  %v471 = vpack.c.b16 %v271, %v263
  %v472 = vpack.c.b16 %v272, %v264
  %v473 = vpack.c.b16 %v273, %v265
  %v474 = vpack.c.b16 %v274, %v266
  %v475 = vpack.c.b16 %v275, %v267
  %v476 = vpack.c.b16 %v284, %v276
  %v477 = vpack.c.b16 %v285, %v277
  %v478 = vpack.c.b16 %v286, %v278
  %v479 = vpack.c.b16 %v287, %v279
  %v480 = vpack.c.b16 %v288, %v280
  %v481 = vpack.c.b16 %v289, %v281
  %v482 = vpack.c.b16 %v290, %v282
  %v483 = vpack.c.b16 %v291, %v283
  %v484 = vpack.c.b16 %v300, %v292
  %v485 = vpack.c.b16 %v301, %v293
  %v486 = vpack.c.b16 %v302, %v294
  %v487 = vpack.c.b16 %v303, %v295
  %v488 = vpack.c.b16 %v304, %v296
  %v489 = vpack.c.b16 %v305, %v297
  %v490 = vpack.c.b16 %v306, %v298
  %v491 = vpack.c.b16 %v307, %v299
  %v492 = vpack.c.b16 %v316, %v308
  %v493 = vpack.c.b16 %v317, %v309
  %v494 = vpack.c.b16 %v318, %v310
  %v495 = vpack.c.b16 %v319, %v311
  %v496 = vpack.c.b16 %v320, %v312
  %v497 = vpack.c.b16 %v321, %v313
  %v498 = vpack.c.b16 %v322, %v314
  %v499 = vpack.c.b16 %v323, %v315
  %v500 = vpack.c.b16 %v332, %v324
  %v501 = vpack.c.b16 %v333, %v325
  %v502 = vpack.c.b16 %v334, %v326
  %v503 = vpack.c.b16 %v335, %v327
  %v504 = vpack.c.b16 %v336, %v328
  %v505 = vpack.c.b16 %v337, %v329
  %v506 = vpack.c.b16 %v338, %v330
  %v507 = vpack.c.b16 %v339, %v331
  %v508 = vpack.c.b16 %v348, %v340
  %v509 = vpack.c.b16 %v349, %v341
  %v510 = vpack.c.b16 %v350, %v342
  %v511 = vpack.c.b16 %v351, %v343
  %v512 = vpack.c.b16 %v352, %v344
  %v513 = vpack.c.b16 %v353, %v345
  %v514 = vpack.c.b16 %v354, %v346
  %v515 = vpack.c.b16 %v355, %v347
  %v516 = vpack.c.b16 %v364, %v356
  %v517 = vpack.c.b16 %v365, %v357
  %v518 = vpack.c.b16 %v366, %v358
  %v519 = vpack.c.b16 %v367, %v359
  %v520 = vpack.c.b16 %v368, %v360
  %v521 = vpack.c.b16 %v369, %v361
  %v522 = vpack.c.b16 %v370, %v362
  %v523 = vpack.c.b16 %v371, %v363
  %v524 = vpack.c.b16 %v380, %v372
  %v525 = vpack.c.b16 %v381, %v373
  %v526 = vpack.c.b16 %v382, %v374
  %v527 = vpack.c.b16 %v383, %v375
  %v528 = vpack.c.b16 %v384, %v376
  %v529 = vpack.c.b16 %v385, %v377
  %v530 = vpack.c.b16 %v386, %v378
  %v531 = vpack.c.b16 %v387, %v379
  %v532 = vpack.c.b16 %v396, %v388
  %v533 = vpack.c.b16 %v397, %v389
  %v534 = vpack.c.b16 %v398, %v390
  %v535 = vpack.c.b16 %v399, %v391
  %v536 = vpack.c.b16 %v400, %v392
  %v537 = vpack.c.b16 %v401, %v393
  %v538 = vpack.c.b16 %v402, %v394
  %v539 = vpack.c.b16 %v403, %v395
  %v540 = vpack.c.b16 %v412, %v404
  %v541 = vpack.c.b16 %v413, %v405
  %v542 = vpack.c.b16 %v414, %v406
  %v543 = vpack.c.b16 %v415, %v407
  %v544 = vpack.c.b16 %v416, %v408
  %v545 = vpack.c.b16 %v417, %v409
  %v546 = vpack.c.b16 %v418, %v410
  %v547 = vpack.c.b16 %v419, %v411
  %v548 = vpack.c.b16 %v428, %v420
  %v549 = vpack.c.b16 %v429, %v421
  %v550 = vpack.c.b16 %v430, %v422
  %v551 = vpack.c.b16 %v431, %v423
  %v552 = vpack.c.b16 %v432, %v424
  %v553 = vpack.c.b16 %v433, %v425
  %v554 = vpack.c.b16 %v434, %v426
  %v555 = vpack.c.b16 %v435, %v427
  %v556 = vpack.c.b16 %v444, %v436
  %v557 = vpack.c.b16 %v445, %v437
  %v558 = vpack.c.b16 %v446, %v438
  %v559 = vpack.c.b16 %v447, %v439
  %v560 = vpack.c.b16 %v448, %v440
  %v561 = vpack.c.b16 %v449, %v441
  %v562 = vpack.c.b16 %v450, %v442
  %v563 = vpack.c.b16 %v451, %v443
  %v564 = vpack.c.b16 %v452, %v452
  %v565 = vpack.c.b16 %v453, %v453
  %v566 = vpack.c.b16 %v454, %v454
  %v567 = vpack.c.b16 %v455, %v455
  %v568 = vpack.c.b16 %v456, %v456
  %v569 = vpack.c.b16 %v457, %v457
  %v570 = vpack.c.b16 %v458, %v458
  %v571 = vpack.c.b16 %v459, %v459
  %vm676 = vcmask 719872
  %v678 = vsel %vm676, %v134, 0
  %vm680 = vcmask 1043456
  %v682 = vsel %vm680, %v564, 0
  %v685 = vsel %vm680, %v565, 0
  %v688 = vsel %vm680, %v566, 0
  %v691 = vsel %vm680, %v567, 0
  %v694 = vsel %vm680, %v568, 0
  %v697 = vsel %vm680, %v569, 0
  %v700 = vsel %vm680, %v570, 0
  %v703 = vsel %vm680, %v571, 0
  %705 = vmatprep.subr.bf16.mxu0 %v461
  %706 = vmatpush1.bf16.msra.mxu0 %v460
  %707 = vmatprep.subr.bf16.mxu0 %v469
  %708 = vmatpush1.bf16.msra.mxu0 %v468
  %709 = vmatprep.subr.bf16.mxu0 %v477
  %710 = vmatpush1.bf16.msra.mxu0 %v476
  %711 = vmatprep.subr.bf16.mxu0 %v485
  %712 = vmatpush1.bf16.msra.mxu0 %v484
  %713 = vmatprep.subr.bf16.mxu0 %v493
  %714 = vmatpush1.bf16.msra.mxu0 %v492
  %715 = vmatprep.subr.bf16.mxu0 %v501
  %716 = vmatpush1.bf16.msra.mxu0 %v500
  %717 = vmatprep.subr.bf16.mxu0 %v509
  %718 = vmatpush1.bf16.msra.mxu0 %v508
  %719 = vmatprep.subr.bf16.mxu0 %v517
  %720 = vmatpush1.bf16.msra.mxu0 %v516
  %721 = vmatprep.subr.bf16.mxu0 %v525
  %722 = vmatpush1.bf16.msra.mxu0 %v524
  %723 = vmatprep.subr.bf16.mxu0 %v533
  %724 = vmatpush1.bf16.msra.mxu0 %v532
  %725 = vmatprep.subr.bf16.mxu0 %v541
  %726 = vmatpush1.bf16.msra.mxu0 %v540
  %727 = vmatprep.subr.bf16.mxu0 %v549
  %728 = vmatpush1.bf16.msra.mxu0 %v548
  %729 = vmatprep.subr.bf16.mxu0 %v557
  %730 = vmatpush1.bf16.msra.mxu0 %v556
  %731 = vmatprep.subr.bf16.mxu0 %v685
  %732 = vmatpush1.bf16.msra.mxu0 %v682
  %733 = vmatprep.subr.bf16.mxu0 0
  %734 = vmatpush1.bf16.msra.mxu0 0
  %735 = vmatprep.subr.bf16.mxu0 0
  %736 = vmatpush1.bf16.msra.mxu0 0
  %737 = vmatprep.mubr.bf16.mxu0 %v678
  %738 = vmatmul.mubr.bf16.gmra.mrb[0].mxu0 %v133
  %v739 = vpop.f32.mrb[0].mxu0
  %v740 = vadd.f32 %v128, %v739
  %v741 = vpop.f32.mrb[0].mxu0
  %v742 = vadd.f32 %v128, %v741
  %v743 = vpop.f32.mrb[0].mxu0
  %v744 = vpop.f32.mrb[0].mxu0
  %745 = vdwg.mxu0
  %746 = vmatprep.subr.bf16.mxu0 %v463
  %747 = vmatpush1.bf16.msra.mxu0 %v462
  %748 = vmatprep.subr.bf16.mxu0 %v471
  %749 = vmatpush1.bf16.msra.mxu0 %v470
  %750 = vmatprep.subr.bf16.mxu0 %v479
  %751 = vmatpush1.bf16.msra.mxu0 %v478
  %752 = vmatprep.subr.bf16.mxu0 %v487
  %753 = vmatpush1.bf16.msra.mxu0 %v486
  %754 = vmatprep.subr.bf16.mxu0 %v495
  %755 = vmatpush1.bf16.msra.mxu0 %v494
  %756 = vmatprep.subr.bf16.mxu0 %v503
  %757 = vmatpush1.bf16.msra.mxu0 %v502
  %758 = vmatprep.subr.bf16.mxu0 %v511
  %759 = vmatpush1.bf16.msra.mxu0 %v510
  %760 = vmatprep.subr.bf16.mxu0 %v519
  %761 = vmatpush1.bf16.msra.mxu0 %v518
  %762 = vmatprep.subr.bf16.mxu0 %v527
  %763 = vmatpush1.bf16.msra.mxu0 %v526
  %764 = vmatprep.subr.bf16.mxu0 %v535
  %765 = vmatpush1.bf16.msra.mxu0 %v534
  %766 = vmatprep.subr.bf16.mxu0 %v543
  %767 = vmatpush1.bf16.msra.mxu0 %v542
  %768 = vmatprep.subr.bf16.mxu0 %v551
  %769 = vmatpush1.bf16.msra.mxu0 %v550
  %770 = vmatprep.subr.bf16.mxu0 %v559
  %771 = vmatpush1.bf16.msra.mxu0 %v558
  %772 = vmatprep.subr.bf16.mxu0 %v691
  %773 = vmatpush1.bf16.msra.mxu0 %v688
  %774 = vmatprep.subr.bf16.mxu0 0
  %775 = vmatpush1.bf16.msra.mxu0 0
  %776 = vmatprep.subr.bf16.mxu0 0
  %777 = vmatpush1.bf16.msra.mxu0 0
  %778 = vmatprep.mubr.bf16.mxu0 %v678
  %779 = vmatmul.mubr.bf16.gmra.mrb[0].mxu0 %v133
  %v780 = vpop.f32.mrb[0].mxu0
  %v781 = vadd.f32 %v128, %v780
  %v782 = vpop.f32.mrb[0].mxu0
  %v783 = vadd.f32 %v128, %v782
  %v784 = vpop.f32.mrb[0].mxu0
  %v785 = vpop.f32.mrb[0].mxu0
  %786 = vdwg.mxu0
  %787 = vmatprep.subr.bf16.mxu0 %v465
  %788 = vmatpush1.bf16.msra.mxu0 %v464
  %789 = vmatprep.subr.bf16.mxu0 %v473
  %790 = vmatpush1.bf16.msra.mxu0 %v472
  %791 = vmatprep.subr.bf16.mxu0 %v481
  %792 = vmatpush1.bf16.msra.mxu0 %v480
  %793 = vmatprep.subr.bf16.mxu0 %v489
  %794 = vmatpush1.bf16.msra.mxu0 %v488
  %795 = vmatprep.subr.bf16.mxu0 %v497
  %796 = vmatpush1.bf16.msra.mxu0 %v496
  %797 = vmatprep.subr.bf16.mxu0 %v505
  %798 = vmatpush1.bf16.msra.mxu0 %v504
  %799 = vmatprep.subr.bf16.mxu0 %v513
  %800 = vmatpush1.bf16.msra.mxu0 %v512
  %801 = vmatprep.subr.bf16.mxu0 %v521
  %802 = vmatpush1.bf16.msra.mxu0 %v520
  %803 = vmatprep.subr.bf16.mxu0 %v529
  %804 = vmatpush1.bf16.msra.mxu0 %v528
  %805 = vmatprep.subr.bf16.mxu0 %v537
  %806 = vmatpush1.bf16.msra.mxu0 %v536
  %807 = vmatprep.subr.bf16.mxu0 %v545
  %808 = vmatpush1.bf16.msra.mxu0 %v544
  %809 = vmatprep.subr.bf16.mxu0 %v553
  %810 = vmatpush1.bf16.msra.mxu0 %v552
  %811 = vmatprep.subr.bf16.mxu0 %v561
  %812 = vmatpush1.bf16.msra.mxu0 %v560
  %813 = vmatprep.subr.bf16.mxu0 %v697
  %814 = vmatpush1.bf16.msra.mxu0 %v694
  %815 = vmatprep.subr.bf16.mxu0 0
  %816 = vmatpush1.bf16.msra.mxu0 0
  %817 = vmatprep.subr.bf16.mxu0 0
  %818 = vmatpush1.bf16.msra.mxu0 0
  %819 = vmatprep.mubr.bf16.mxu0 %v678
  %820 = vmatmul.mubr.bf16.gmra.mrb[0].mxu0 %v133
  %v821 = vpop.f32.mrb[0].mxu0
  %v822 = vadd.f32 %v128, %v821
  %v823 = vpop.f32.mrb[0].mxu0
  %v824 = vadd.f32 %v128, %v823
  %v825 = vpop.f32.mrb[0].mxu0
  %v826 = vpop.f32.mrb[0].mxu0
  %827 = vdwg.mxu0
  %828 = vmatprep.subr.bf16.mxu0 %v467
  %829 = vmatpush1.bf16.msra.mxu0 %v466
  %830 = vmatprep.subr.bf16.mxu0 %v475
  %831 = vmatpush1.bf16.msra.mxu0 %v474
  %832 = vmatprep.subr.bf16.mxu0 %v483
  %833 = vmatpush1.bf16.msra.mxu0 %v482
  %834 = vmatprep.subr.bf16.mxu0 %v491
  %835 = vmatpush1.bf16.msra.mxu0 %v490
  %836 = vmatprep.subr.bf16.mxu0 %v499
  %837 = vmatpush1.bf16.msra.mxu0 %v498
  %838 = vmatprep.subr.bf16.mxu0 %v507
  %839 = vmatpush1.bf16.msra.mxu0 %v506
  %840 = vmatprep.subr.bf16.mxu0 %v515
  %841 = vmatpush1.bf16.msra.mxu0 %v514
  %842 = vmatprep.subr.bf16.mxu0 %v523
  %843 = vmatpush1.bf16.msra.mxu0 %v522
  %844 = vmatprep.subr.bf16.mxu0 %v531
  %845 = vmatpush1.bf16.msra.mxu0 %v530
  %846 = vmatprep.subr.bf16.mxu0 %v539
  %847 = vmatpush1.bf16.msra.mxu0 %v538
  %848 = vmatprep.subr.bf16.mxu0 %v547
  %849 = vmatpush1.bf16.msra.mxu0 %v546
  %850 = vmatprep.subr.bf16.mxu0 %v555
  %851 = vmatpush1.bf16.msra.mxu0 %v554
  %852 = vmatprep.subr.bf16.mxu0 %v563
  %853 = vmatpush1.bf16.msra.mxu0 %v562
  %854 = vmatprep.subr.bf16.mxu0 %v703
  %855 = vmatpush1.bf16.msra.mxu0 %v700
  %856 = vmatprep.subr.bf16.mxu0 0
  %857 = vmatpush1.bf16.msra.mxu0 0
  %858 = vmatprep.subr.bf16.mxu0 0
  %859 = vmatpush1.bf16.msra.mxu0 0
  %860 = vmatprep.mubr.bf16.mxu0 %v678
  %861 = vmatmul.mubr.bf16.gmra.mrb[0].mxu0 %v133
  %v862 = vpop.f32.mrb[0].mxu0
  %v863 = vadd.f32 %v128, %v862
  %v864 = vpop.f32.mrb[0].mxu0
  %v865 = vadd.f32 %v128, %v864
  %v866 = vpop.f32.mrb[0].mxu0
  %v867 = vpop.f32.mrb[0].mxu0
  %868 = vdwg.mxu0
  %v869 = vmul.f32 %v740, 0.5
  %v870 = vmul.f32 %v742, 0.5
  %v871 = vmul.f32 %v781, 0.5
  %v872 = vmul.f32 %v783, 0.5
  %v873 = vmul.f32 %v822, 0.5
  %v874 = vmul.f32 %v824, 0.5
  %v875 = vmul.f32 %v863, 0.5
  %v876 = vmul.f32 %v865, 0.5
  %v877 = vtanh.pop %v869
  %v878 = vtanh.pop %v870
  %v879 = vtanh.pop %v871
  %v880 = vtanh.pop %v872
  %v881 = vtanh.pop %v873
  %v882 = vtanh.pop %v874
  %v883 = vtanh.pop %v875
  %v884 = vtanh.pop %v876
  %v885 = vmul.f32 %v877, 0.5
  %v886 = vmul.f32 %v878, 0.5
  %v887 = vmul.f32 %v879, 0.5
  %v888 = vmul.f32 %v880, 0.5
  %v889 = vmul.f32 %v881, 0.5
  %v890 = vmul.f32 %v882, 0.5
  %v891 = vmul.f32 %v883, 0.5
  %v892 = vmul.f32 %v884, 0.5
  %v893 = vadd.f32 %v885, 0.5
  %v894 = vadd.f32 %v886, 0.5
  %v895 = vadd.f32 %v887, 0.5
  %v896 = vadd.f32 %v888, 0.5
  %v897 = vadd.f32 %v889, 0.5
  %v898 = vadd.f32 %v890, 0.5
  %v899 = vadd.f32 %v891, 0.5
  %v900 = vadd.f32 %v892, 0.5
  %901 = vst [vmem:[%s3] sm:$0xff] %v893
  %902 = vst [vmem:[%s3 + $0x8] sm:$0xff] %v894
  %903 = vst [vmem:[%s3 + $0x10] sm:$0xff] %v895
  %904 = vst [vmem:[%s3 + $0x18] sm:$0xff] %v896
  %905 = vst [vmem:[%s3 + $0x20] sm:$0xff] %v897
  %906 = vst [vmem:[%s3 + $0x28] sm:$0xff] %v898
  %907 = vst [vmem:[%s3 + $0x30] sm:$0xff] %v899
  %908 = vst [vmem:[%s3 + $0x38] sm:$0xff] %v900
  // Predicated region
  $region14: #{_lambda_.5} parent=0 // pred_check
    _
  $region15: #{_lambda_.5} parent=0 // pred_check_branch
    %910 = sbr.rel (0) target = $region17
  $region16: #{_lambda_.5} parent=0 // pred_region
    _
  $region17: #{_lambda_.5} parent=0 // pred_fallthru
    _
  // Predicated region
  $region18: #{_lambda_.5} parent=0 // pred_check
    _
  $region19: #{_lambda_.5} parent=0 // pred_check_branch
    %912 = sbr.rel (0) target = $region21
  $region20: #{_lambda_.5} parent=0 // pred_region
    _
  $region21: #{_lambda_.5} parent=0 // pred_fallthru
    _

</llo_original>
